<compile_context>
chip_gen: v7x
topology: tpu7x:2x2x1
jax: 0.10.0
libtpu: 0.0.40
codegen_flags: <defaults>
</compile_context>

<pallas_src>
import jax
import jax.numpy as jnp
from jax.experimental import pallas as pl
from jax.experimental.pallas import tpu as pltpu

_NEG = -1e30  # fill for padded logit columns (exp() underflows to exactly 0)


def _head_kernel(x_ref, w1_ref, b1_ref, w2_ref, b2_ref, logits_ref, prob_ref):
    # x_ref:  [tm, 1536] bf16      w1_ref: [1536, 768] bf16   b1_ref: [1, 768] f32
    # w2_ref: [768, 128] bf16      b2_ref: [1, 128]   f32 (cols >=2 are -1e30)
    # logits_ref / prob_ref: [tm, 128] f32  (lane-dense, unmasked stores)
    x = x_ref[...]

    # dense(1536 -> 768) + tanh   (MXU matmul w/ f32 accumulation, EUP tanh)
    h = jnp.dot(x, w1_ref[...], preferred_element_type=jnp.float32) + b1_ref[...]
    h = jnp.tanh(h)

    # out_proj(768 -> 2), padded to 128 lanes for full MXU width
    z = jnp.dot(h.astype(jnp.bfloat16), w2_ref[...],
                preferred_element_type=jnp.float32) + b2_ref[...]
    logits_ref[...] = z

    # softmax over the class axis; padded columns hold -1e30 -> exp == 0,
    # so max/sum over the full 128 lanes equal the 2-class max/sum.
    m = jnp.max(z, axis=-1, keepdims=True)
    e = jnp.exp(z - m)
    denom = jnp.sum(e, axis=-1, keepdims=True)
    prob_ref[...] = e * pl.reciprocal(denom, approx=True)


def _round_up(n, m):
    return ((n + m - 1) // m) * m


def roberta_classification_head(x2, w1, b1, w2p, b2p):
    """x2: [M, 1536] bf16 -> (logits [M, 2] f32, prob [M, 2] f32).

    w1:  [1536, 768] bf16     b1:  [1, 768] f32
    w2p: [768, 128]  bf16     b2p: [1, 128] f32  (padded class columns = -1e30)
    """
    M = x2.shape[0]
    Np = 128                                   # padded class axis (lane-dense)
    tm = min(512, _round_up(M, 8))             # row tile, multiple of 8
    Mp = _round_up(M, tm)
    if Mp != M:
        x2 = jnp.pad(x2, ((0, Mp - M), (0, 0)))

    grid = (Mp // tm,)
    kernel = pl.pallas_call(
        _head_kernel,
        out_shape=(
            jax.ShapeDtypeStruct((Mp, Np), jnp.float32),  # logits (padded)
            jax.ShapeDtypeStruct((Mp, Np), jnp.float32),  # prob   (padded)
        ),
        grid=grid,
        in_specs=[
            pl.BlockSpec((tm, 1536), lambda i: (i, 0)),     # x tile (pipelined)
            pl.BlockSpec((1536, 768), lambda i: (0, 0)),    # W1 resident
            pl.BlockSpec((1, 768), lambda i: (0, 0)),       # b1 resident
            pl.BlockSpec((768, Np), lambda i: (0, 0)),      # W2 (padded) resident
            pl.BlockSpec((1, Np), lambda i: (0, 0)),        # b2 (padded) resident
        ],
        out_specs=(
            pl.BlockSpec((tm, Np), lambda i: (i, 0)),
            pl.BlockSpec((tm, Np), lambda i: (i, 0)),
        ),
        compiler_params=pltpu.CompilerParams(
            dimension_semantics=("parallel",)),   # shards M across v7x's 2 TCs
    )
    logits_p, prob_p = kernel(x2, w1, b1, w2p, b2p)
    return logits_p[:M, :2], prob_p[:M, :2]


def _prepare_params(params):
    """Convert logical f32 params to kernel-ready (bf16, lane-padded) format."""
    w1 = params["w1"].astype(jnp.bfloat16)                      # [1536, 768]
    b1 = params["b1"].reshape(1, 768).astype(jnp.float32)       # [1, 768]
    w2p = jnp.zeros((768, 128), jnp.bfloat16).at[:, :2].set(
        params["w2"].astype(jnp.bfloat16))                      # [768, 128]
    b2p = jnp.full((1, 128), _NEG, jnp.float32).at[:, :2].set(
        params["b2"].reshape(1, 2).astype(jnp.float32))         # [1, 128]
    return w1, b1, w2p, b2p


def model_forward(features, params, labels=None):
    """Mirrors Model.forward given encoder output `features` [B, S, 768]."""
    # TODO(synk): the pretrained RoBERTa/CodeBERT encoder (self.encoder) has no
    # clean in-script Pallas equivalent; `features` stands in for its output.
    B = features.shape[0]
    assert B % 2 == 0, "reshape(-1, 1536) requires an even batch (row pairing)."
    # CLS slice + pair-reshape + bf16 cast: a single tiny fused XLA op feeding
    # the kernel a lane-dense [M, 1536] bf16 slab.
    x2 = features[:, 0, :].reshape(-1, 1536).astype(jnp.bfloat16)   # [M, 1536]
    w1, b1, w2p, b2p = _prepare_params(params)
    logits, prob = roberta_classification_head(x2, w1, b1, w2p, b2p)
    if labels is not None:
        # CrossEntropyLoss(logits, labels) — tiny (M, 2) reduction, kept as glue.
        logz = logits - jax.nn.logsumexp(logits, axis=-1, keepdims=True)
        loss = -jnp.mean(jnp.take_along_axis(logz, labels[:, None], axis=-1))
        return loss, prob
    return prob


def init_params(key):
    k1, k2, k3, k4 = jax.random.split(key, 4)
    # Stored as [in, out] (x @ W), equivalent to PyTorch's x @ W.T with W [out, in].
    w1 = jax.random.normal(k1, (1536, 768), jnp.float32) * 0.02
    b1 = jax.random.normal(k2, (768,), jnp.float32) * 0.02
    w2 = jax.random.normal(k3, (768, 2), jnp.float32) * 0.02
    b2 = jax.random.normal(k4, (2,), jnp.float32) * 0.02
    return {"w1": w1, "b1": b1, "w2": w2, "b2": b2}


if __name__ == "__main__":
    key = jax.random.PRNGKey(0)
    kf, kp, kl = jax.random.split(key, 3)

    B, S, H = 8, 8, 768                       # small batch/seq; H fixed by the head
    features = jax.random.normal(kf, (B, S, H), jnp.float32)   # encoder-output stand-in
    params = init_params(kp)
    labels = jax.random.randint(kl, (B // 2,), 0, 2)

    # labels=None path: returns prob
    prob = model_forward(features, params)
    prob = jax.block_until_ready(prob)

    # labels path: returns (loss, prob)
    loss, prob2 = model_forward(features, params, labels)
    loss = jax.block_until_ready(loss)
    prob2 = jax.block_until_ready(prob2)

    # sanity: shapes, softmax rows sum to ~1 (bf16 matmuls + approx reciprocal)
    assert prob.shape == (B // 2, 2)
    assert prob2.shape == (B // 2, 2)
    assert jnp.allclose(jnp.sum(prob, axis=-1), 1.0, atol=1e-2)
    assert bool(jnp.isfinite(loss))

    print("KERNEL_OK")
</pallas_src>

<mosaic_0001>
module attributes {stable_mosaic.version = 11 : i64} {
  func.func @_head_kernel(%arg0: i32, %arg1: memref<8x1536xbf16, #tpu.memory_space<vmem>>, %arg2: memref<1536x768xbf16, #tpu.memory_space<vmem>>, %arg3: memref<1x768xf32, #tpu.memory_space<vmem>>, %arg4: memref<768x128xbf16, #tpu.memory_space<vmem>>, %arg5: memref<1x128xf32, #tpu.memory_space<vmem>>, %arg6: memref<8x128xf32, #tpu.memory_space<vmem>>, %arg7: memref<8x128xf32, #tpu.memory_space<vmem>>) attributes {dimension_semantics = [#tpu.dimension_semantics<parallel>], iteration_bounds = array<i64: 1>, scalar_prefetch = 0 : i64, scratch_operands = 0 : i64, tpu.core_type = #tpu.core_type<tc>, window_params = [{transform_indices = @transform_0, window_bounds = array<i64: 8, 1536>}, {pipeline_mode = #tpu.pipeline_mode<synchronous>, transform_indices = @transform_1, window_bounds = array<i64: 1536, 768>}, {pipeline_mode = #tpu.pipeline_mode<synchronous>, transform_indices = @transform_2, window_bounds = array<i64: 1, 768>}, {pipeline_mode = #tpu.pipeline_mode<synchronous>, transform_indices = @transform_3, window_bounds = array<i64: 768, 128>}, {pipeline_mode = #tpu.pipeline_mode<synchronous>, transform_indices = @transform_4, window_bounds = array<i64: 1, 128>}, {transform_indices = @transform_5, window_bounds = array<i64: 8, 128>}, {transform_indices = @transform_6, window_bounds = array<i64: 8, 128>}]} {
    %c0 = arith.constant 0 : index
    %c0_0 = arith.constant 0 : index
    %0 = vector.load %arg1[%c0, %c0_0] : memref<8x1536xbf16, #tpu.memory_space<vmem>>, vector<8x1536xbf16>
    %c0_1 = arith.constant 0 : index
    %c0_2 = arith.constant 0 : index
    %1 = vector.load %arg2[%c0_1, %c0_2] : memref<1536x768xbf16, #tpu.memory_space<vmem>>, vector<1536x768xbf16>
    %cst = arith.constant dense<0.000000e+00> : vector<8x768xf32>
    %2 = tpu.matmul %0, %1, %cst {dimension_numbers = #tpu.dot_dimension_numbers<[1], [0], [0], [1], [0, 0, 1, 1], [], []>} : vector<8x1536xbf16>, vector<1536x768xbf16>, vector<8x768xf32> -> vector<8x768xf32>
    %c0_3 = arith.constant 0 : index
    %c0_4 = arith.constant 0 : index
    %3 = vector.load %arg3[%c0_3, %c0_4] : memref<1x768xf32, #tpu.memory_space<vmem>>, vector<1x768xf32>
    %4 = vector.broadcast %3 : vector<1x768xf32> to vector<8x768xf32>
    %5 = arith.addf %2, %4 : vector<8x768xf32>
    %6 = math.tanh %5 : vector<8x768xf32>
    %7 = arith.truncf %6 : vector<8x768xf32> to vector<8x768xbf16>
    %c0_5 = arith.constant 0 : index
    %c0_6 = arith.constant 0 : index
    %8 = vector.load %arg4[%c0_5, %c0_6] : memref<768x128xbf16, #tpu.memory_space<vmem>>, vector<768x128xbf16>
    %cst_7 = arith.constant dense<0.000000e+00> : vector<8x128xf32>
    %9 = tpu.matmul %7, %8, %cst_7 {dimension_numbers = #tpu.dot_dimension_numbers<[1], [0], [0], [1], [0, 0, 1, 1], [], []>} : vector<8x768xbf16>, vector<768x128xbf16>, vector<8x128xf32> -> vector<8x128xf32>
    %c0_8 = arith.constant 0 : index
    %c0_9 = arith.constant 0 : index
    %10 = vector.load %arg5[%c0_8, %c0_9] : memref<1x128xf32, #tpu.memory_space<vmem>>, vector<1x128xf32>
    %11 = vector.broadcast %10 : vector<1x128xf32> to vector<8x128xf32>
    %12 = arith.addf %9, %11 : vector<8x128xf32>
    %c0_10 = arith.constant 0 : index
    %c0_11 = arith.constant 0 : index
    %13 = vector.load %arg6[%c0_10, %c0_11] : memref<8x128xf32, #tpu.memory_space<vmem>>, vector<8x128xf32>
    tpu.vector_store %arg6[%c0_10, %c0_11], %12 {strides = array<i32>} : memref<8x128xf32, #tpu.memory_space<vmem>>, vector<8x128xf32>,
    %cst_12 = arith.constant dense<0xFF800000> : vector<8xf32>
    %14 = vector.multi_reduction <maximumf>, %12, %cst_12 [1] : vector<8x128xf32> to vector<8xf32>
    %15 = vector.shape_cast %14 : vector<8xf32> to vector<8x1xf32>
    %16 = vector.broadcast %15 : vector<8x1xf32> to vector<8x128xf32>
    %17 = arith.subf %12, %16 : vector<8x128xf32>
    %18 = math.exp %17 : vector<8x128xf32>
    %cst_13 = arith.constant dense<0.000000e+00> : vector<8xf32>
    %19 = vector.multi_reduction <add>, %18, %cst_13 [1] : vector<8x128xf32> to vector<8xf32>
    %20 = vector.shape_cast %19 : vector<8xf32> to vector<8x1xf32>
    %21 = tpu.reciprocal %20 {approx = true} : vector<8x1xf32> -> vector<8x1xf32>
    %22 = vector.broadcast %21 : vector<8x1xf32> to vector<8x128xf32>
    %23 = arith.mulf %18, %22 : vector<8x128xf32>
    %c0_14 = arith.constant 0 : index
    %c0_15 = arith.constant 0 : index
    %24 = vector.load %arg7[%c0_14, %c0_15] : memref<8x128xf32, #tpu.memory_space<vmem>>, vector<8x128xf32>
    tpu.vector_store %arg7[%c0_14, %c0_15], %23 {strides = array<i32>} : memref<8x128xf32, #tpu.memory_space<vmem>>, vector<8x128xf32>,
    return
  }
  func.func @transform_0(%arg0: i32) -> (i32, i32) {
    %c0_i32 = arith.constant 0 : i32
    %c0_i32_0 = arith.constant 0 : i32
    return %arg0, %c0_i32 : i32, i32
  }
  func.func @transform_1(%arg0: i32) -> (i32, i32) {
    %c0_i32 = arith.constant 0 : i32
    %c0_i32_0 = arith.constant 0 : i32
    %c0_i32_1 = arith.constant 0 : i32
    return %c0_i32, %c0_i32_0 : i32, i32
  }
  func.func @transform_2(%arg0: i32) -> (i32, i32) {
    %c0_i32 = arith.constant 0 : i32
    %c0_i32_0 = arith.constant 0 : i32
    %c0_i32_1 = arith.constant 0 : i32
    return %c0_i32, %c0_i32_0 : i32, i32
  }
  func.func @transform_3(%arg0: i32) -> (i32, i32) {
    %c0_i32 = arith.constant 0 : i32
    %c0_i32_0 = arith.constant 0 : i32
    %c0_i32_1 = arith.constant 0 : i32
    return %c0_i32, %c0_i32_0 : i32, i32
  }
  func.func @transform_4(%arg0: i32) -> (i32, i32) {
    %c0_i32 = arith.constant 0 : i32
    %c0_i32_0 = arith.constant 0 : i32
    %c0_i32_1 = arith.constant 0 : i32
    return %c0_i32, %c0_i32_0 : i32, i32
  }
  func.func @transform_5(%arg0: i32) -> (i32, i32) {
    %c0_i32 = arith.constant 0 : i32
    %c0_i32_0 = arith.constant 0 : i32
    return %arg0, %c0_i32 : i32, i32
  }
  func.func @transform_6(%arg0: i32) -> (i32, i32) {
    %c0_i32 = arith.constant 0 : i32
    %c0_i32_0 = arith.constant 0 : i32
    return %arg0, %c0_i32 : i32, i32
  }
}

</mosaic_0001>

<llo_original>
// kernel: tpu_custom_call.1
$region0: #{tpu_custom_call.1}
  #allocation0 [shape = 'u32[]', space=smem, size = 0x4, offset = 0x4, fixed_abs, tag = 'smem constant byte address 0x4 - core index']
  #allocation1 [shape = 'u32[144,128]{1,0:T(1,128)}', space=vmem, size = 0x12000, scoped, tag = 'internal scratch']
  %s0 = inlined_call_operand.hbm [shape: bf16[8,1536], index: 0, kind: input, shape index: {}]
  %s1 = inlined_call_operand.hbm [shape: bf16[1536,768], index: 1, kind: input, shape index: {}]
  %s2 = inlined_call_operand.hbm [shape: f32[1,768], index: 2, kind: input, shape index: {}]
  %s3 = inlined_call_operand.hbm [shape: bf16[768,128], index: 3, kind: input, shape index: {}]
  %s4 = inlined_call_operand.hbm [shape: f32[1,128], index: 4, kind: input, shape index: {}]
  %s5 = inlined_call_operand.hbm [shape: f32[8,128], index: 5, kind: output, shape index: {0}]
  %s6 = inlined_call_operand.hbm [shape: f32[8,128], index: 6, kind: output, shape index: {1}]
  %7 = xla_tuple %s5, %s6
  %s8 = sld [smem:[#allocation0]]
  $region58: #{tpu_custom_call.1} parent=0
    _
  %s10 = ssub.s32 1, %s8
  %s11 = scalar_select 0, %s10, %s8
  $region1: #{tpu_custom_call.1} parent=0
    #allocation2 [shape = 'u8[24576]{0}', space=vmem, size = 0x6000, scoped, tag = 'input window, operand 0, single buffered']
    #allocation3 [shape = 's32[1]{0}', space=sflag, size = 0x4, scoped, tag = 'scoped memory for tpu_custom_call.1']
    #allocation4 [shape = 's32[1]{0}', space=sflag, size = 0x4, scoped, tag = 'scoped memory for tpu_custom_call.1']
    #allocation5 [shape = 'u8[2359296]{0}', space=vmem, size = 0x240000, scoped, tag = 'input window, operand 1, single buffered']
    #allocation6 [shape = 's32[1]{0}', space=sflag, size = 0x4, scoped, tag = 'scoped memory for tpu_custom_call.1']
    #allocation7 [shape = 'u8[3072]{0}', space=vmem, size = 0xc00, scoped, tag = 'input window, operand 2, single buffered']
    #allocation8 [shape = 'u8[196608]{0}', space=vmem, size = 0x30000, scoped, tag = 'input window, operand 3, single buffered']
    #allocation9 [shape = 's32[1]{0}', space=sflag, size = 0x4, scoped, tag = 'scoped memory for tpu_custom_call.1']
    #allocation10 [shape = 'u8[512]{0}', space=vmem, size = 0x400, scoped, tag = 'input window, operand 4, single buffered']
    #allocation11 [shape = 'u8[4096]{0}', space=vmem, size = 0x1000, scoped, tag = 'output window, operand 0, single buffered']
    #allocation12 [shape = 'u8[4096]{0}', space=vmem, size = 0x1000, scoped, tag = 'output window, operand 1, single buffered']
    #allocation13 [shape = 's32[1]{0}', space=sflag, size = 0x4, scoped, tag = 'scoped memory for tpu_custom_call.1']
    %12 = vsyncpa [#allocation3], 0
    %13 = vsyncpa [#allocation6], 0
    %14 = vsyncpa [#allocation9], 0
    %15 = vsyncpa [#allocation4], 0
    %16 = vsyncpa [#allocation13], 0
    // Predicated region
    $region2: #{tpu_custom_call.1} parent=1 // pred_check
      _
    $region3: #{tpu_custom_call.1} parent=1 // pred_check_branch
      %18 = sbr.rel (0) target = $region5
    $region4: #{tpu_custom_call.1} parent=1 // pred_region
      %s20 = ssub.s32 768, 768
      %21 = vsyncadd [#allocation3], %s20
      %s23 = sshll.u32 [#allocation2], 4
      %s24 = int_to_ptr.vmem [resolvable:$true] %s23
      %26 = dma.hbm_to_vmem [thread:$0]  %s0, 768, %s24, [#allocation3]
    $region5: #{tpu_custom_call.1} parent=1 // pred_fallthru
      _
    // Predicated region
    $region6: #{tpu_custom_call.1} parent=1 // pred_check
      _
    $region7: #{tpu_custom_call.1} parent=1 // pred_check_branch
      %28 = sbr.rel (0) target = $region9
    $region8: #{tpu_custom_call.1} parent=1 // pred_region
      %s30 = ssub.s32 73728, 73728
      %31 = vsyncadd [#allocation6], %s30
      %s32 = sshll.u32 [#allocation5], 4
      %s33 = int_to_ptr.vmem [resolvable:$true] %s32
      %38 = dma.hbm_to_vmem [thread:$0]  %s1, 73728, %s33, [#allocation6], 384, 384, 24
    $region9: #{tpu_custom_call.1} parent=1 // pred_fallthru
      _
    // Predicated region
    $region10: #{tpu_custom_call.1} parent=1 // pred_check
      _
    $region11: #{tpu_custom_call.1} parent=1 // pred_check_branch
      %40 = sbr.rel (0) target = $region13
    $region12: #{tpu_custom_call.1} parent=1 // pred_region
      %s42 = ssub.s32 96, 96
      %43 = vsyncadd [#allocation6], %s42
      %s45 = sshll.u32 [#allocation7], 4
      %s46 = int_to_ptr.vmem [resolvable:$true] %s45
      %48 = dma.hbm_to_vmem [thread:$0]  %s2, 96, %s46, [#allocation6]
    $region13: #{tpu_custom_call.1} parent=1 // pred_fallthru
      _
    // Predicated region
    $region14: #{tpu_custom_call.1} parent=1 // pred_check
      _
    $region15: #{tpu_custom_call.1} parent=1 // pred_check_branch
      %50 = sbr.rel (0) target = $region17
    $region16: #{tpu_custom_call.1} parent=1 // pred_region
      %s52 = ssub.s32 6144, 6144
      %53 = vsyncadd [#allocation9], %s52
      %s54 = sshll.u32 [#allocation8], 4
      %s55 = int_to_ptr.vmem [resolvable:$true] %s54
      %60 = dma.hbm_to_vmem [thread:$0]  %s3, 6144, %s55, [#allocation9], 64, 64, 4
    $region17: #{tpu_custom_call.1} parent=1 // pred_fallthru
      _
    // Predicated region
    $region18: #{tpu_custom_call.1} parent=1 // pred_check
      _
    $region19: #{tpu_custom_call.1} parent=1 // pred_check_branch
      %62 = sbr.rel (0) target = $region21
    $region20: #{tpu_custom_call.1} parent=1 // pred_region
      %s64 = ssub.s32 16, 16
      %65 = vsyncadd [#allocation9], %s64
      %s67 = sshll.u32 [#allocation10], 4
      %s68 = int_to_ptr.vmem [resolvable:$true] %s67
      %70 = dma.hbm_to_vmem [thread:$0]  %s4, 16, %s68, [#allocation9]
    $region21: #{tpu_custom_call.1} parent=1 // pred_fallthru
      _
    // Predicated region
    $region22: #{tpu_custom_call.1} parent=1 // pred_check
      _
    $region23: #{tpu_custom_call.1} parent=1 // pred_check_branch
      %72 = sbr.rel (0) target = $region25
    $region24: #{tpu_custom_call.1} parent=1 // pred_region
      %73 = dma.done [#allocation3], 768
    $region25: #{tpu_custom_call.1} parent=1 // pred_fallthru
      _
    // Predicated region
    $region26: #{tpu_custom_call.1} parent=1 // pred_check
      _
    $region27: #{tpu_custom_call.1} parent=1 // pred_check_branch
      %75 = sbr.rel (0) target = $region29
    $region28: #{tpu_custom_call.1} parent=1 // pred_region
      %76 = dma.done [#allocation6], 73728
    $region29: #{tpu_custom_call.1} parent=1 // pred_fallthru
      _
    // Predicated region
    $region30: #{tpu_custom_call.1} parent=1 // pred_check
      _
    $region31: #{tpu_custom_call.1} parent=1 // pred_check_branch
      %78 = sbr.rel (0) target = $region33
    $region32: #{tpu_custom_call.1} parent=1 // pred_region
      %79 = dma.done [#allocation6], 96
    $region33: #{tpu_custom_call.1} parent=1 // pred_fallthru
      _
    // Predicated region
    $region34: #{tpu_custom_call.1} parent=1 // pred_check
      _
    $region35: #{tpu_custom_call.1} parent=1 // pred_check_branch
      %81 = sbr.rel (0) target = $region37
    $region36: #{tpu_custom_call.1} parent=1 // pred_region
      %82 = dma.done [#allocation9], 6144
    $region37: #{tpu_custom_call.1} parent=1 // pred_fallthru
      _
    // Predicated region
    $region38: #{tpu_custom_call.1} parent=1 // pred_check
      _
    $region39: #{tpu_custom_call.1} parent=1 // pred_check_branch
      %84 = sbr.rel (0) target = $region41
    $region40: #{tpu_custom_call.1} parent=1 // pred_region
      %85 = dma.done [#allocation9], 16
    $region41: #{tpu_custom_call.1} parent=1 // pred_fallthru
      _
    %v87 = vld [vmem:[#allocation2] sm:$0xff]
    %v88 = vld [vmem:[#allocation2 + $0x8] sm:$0xff]
    %v89 = vld [vmem:[#allocation2 + $0x10] sm:$0xff]
    %v90 = vld [vmem:[#allocation2 + $0x18] sm:$0xff]
    %v91 = vld [vmem:[#allocation2 + $0x20] sm:$0xff]
    %v92 = vld [vmem:[#allocation2 + $0x28] sm:$0xff]
    %v93 = vld [vmem:[#allocation5] sm:$0xff]
    %v94 = vld [vmem:[#allocation5 + $0x8] sm:$0xff]
    %v95 = vld [vmem:[#allocation5 + $0x10] sm:$0xff]
    %v96 = vld [vmem:[#allocation5 + $0x18] sm:$0xff]
    %v97 = vld [vmem:[#allocation5 + $0x20] sm:$0xff]
    %v98 = vld [vmem:[#allocation5 + $0x28] sm:$0xff]
    %v99 = vld [vmem:[#allocation5 + $0x30] sm:$0xff]
    %v100 = vld [vmem:[#allocation5 + $0x38] sm:$0xff]
    %v101 = vld [vmem:[#allocation5 + $0x40] sm:$0xff]
    %v102 = vld [vmem:[#allocation5 + $0x48] sm:$0xff]
    %v103 = vld [vmem:[#allocation5 + $0x50] sm:$0xff]
    %v104 = vld [vmem:[#allocation5 + $0x58] sm:$0xff]
    %v105 = vld [vmem:[#allocation5 + $0x60] sm:$0xff]
    %v106 = vld [vmem:[#allocation5 + $0x68] sm:$0xff]
    %v107 = vld [vmem:[#allocation5 + $0x70] sm:$0xff]
    %v108 = vld [vmem:[#allocation5 + $0x78] sm:$0xff]
    %v109 = vld [vmem:[#allocation5 + $0x80] sm:$0xff]
    %v110 = vld [vmem:[#allocation5 + $0x88] sm:$0xff]
    %v111 = vld [vmem:[#allocation5 + $0x90] sm:$0xff]
    %v112 = vld [vmem:[#allocation5 + $0x98] sm:$0xff]
    %v113 = vld [vmem:[#allocation5 + $0xa0] sm:$0xff]
    %v114 = vld [vmem:[#allocation5 + $0xa8] sm:$0xff]
    %v115 = vld [vmem:[#allocation5 + $0xb0] sm:$0xff]
    %v116 = vld [vmem:[#allocation5 + $0xb8] sm:$0xff]
    %v117 = vld [vmem:[#allocation5 + $0xc0] sm:$0xff]
    %v118 = vld [vmem:[#allocation5 + $0xc8] sm:$0xff]
    %v119 = vld [vmem:[#allocation5 + $0xd0] sm:$0xff]
    %v120 = vld [vmem:[#allocation5 + $0xd8] sm:$0xff]
    %v121 = vld [vmem:[#allocation5 + $0xe0] sm:$0xff]
    %v122 = vld [vmem:[#allocation5 + $0xe8] sm:$0xff]
    %v123 = vld [vmem:[#allocation5 + $0xf0] sm:$0xff]
    %v124 = vld [vmem:[#allocation5 + $0xf8] sm:$0xff]
    %v125 = vld [vmem:[#allocation5 + $0x100] sm:$0xff]
    %v126 = vld [vmem:[#allocation5 + $0x108] sm:$0xff]
    %v127 = vld [vmem:[#allocation5 + $0x110] sm:$0xff]
    %v128 = vld [vmem:[#allocation5 + $0x118] sm:$0xff]
    %v129 = vld [vmem:[#allocation5 + $0x120] sm:$0xff]
    %v130 = vld [vmem:[#allocation5 + $0x128] sm:$0xff]
    %v131 = vld [vmem:[#allocation5 + $0x130] sm:$0xff]
    %v132 = vld [vmem:[#allocation5 + $0x138] sm:$0xff]
    %v133 = vld [vmem:[#allocation5 + $0x140] sm:$0xff]
    %v134 = vld [vmem:[#allocation5 + $0x148] sm:$0xff]
    %v135 = vld [vmem:[#allocation5 + $0x150] sm:$0xff]
    %v136 = vld [vmem:[#allocation5 + $0x158] sm:$0xff]
    %v137 = vld [vmem:[#allocation5 + $0x160] sm:$0xff]
    %v138 = vld [vmem:[#allocation5 + $0x168] sm:$0xff]
    %v139 = vld [vmem:[#allocation5 + $0x170] sm:$0xff]
    %v140 = vld [vmem:[#allocation5 + $0x178] sm:$0xff]
    %v141 = vld [vmem:[#allocation5 + $0x180] sm:$0xff]
    %v142 = vld [vmem:[#allocation5 + $0x188] sm:$0xff]
    %v143 = vld [vmem:[#allocation5 + $0x190] sm:$0xff]
    %v144 = vld [vmem:[#allocation5 + $0x198] sm:$0xff]
    %v145 = vld [vmem:[#allocation5 + $0x1a0] sm:$0xff]
    %v146 = vld [vmem:[#allocation5 + $0x1a8] sm:$0xff]
    %v147 = vld [vmem:[#allocation5 + $0x1b0] sm:$0xff]
    %v148 = vld [vmem:[#allocation5 + $0x1b8] sm:$0xff]
    %v149 = vld [vmem:[#allocation5 + $0x1c0] sm:$0xff]
    %v150 = vld [vmem:[#allocation5 + $0x1c8] sm:$0xff]
    %v151 = vld [vmem:[#allocation5 + $0x1d0] sm:$0xff]
    %v152 = vld [vmem:[#allocation5 + $0x1d8] sm:$0xff]
    %v153 = vld [vmem:[#allocation5 + $0x1e0] sm:$0xff]
    %v154 = vld [vmem:[#allocation5 + $0x1e8] sm:$0xff]
    %v155 = vld [vmem:[#allocation5 + $0x1f0] sm:$0xff]
    %v156 = vld [vmem:[#allocation5 + $0x1f8] sm:$0xff]
    %v157 = vld [vmem:[#allocation5 + $0x200] sm:$0xff]
    %v158 = vld [vmem:[#allocation5 + $0x208] sm:$0xff]
    %v159 = vld [vmem:[#allocation5 + $0x210] sm:$0xff]
    %v160 = vld [vmem:[#allocation5 + $0x218] sm:$0xff]
    %v161 = vld [vmem:[#allocation5 + $0x220] sm:$0xff]
    %v162 = vld [vmem:[#allocation5 + $0x228] sm:$0xff]
    %v163 = vld [vmem:[#allocation5 + $0x230] sm:$0xff]
    %v164 = vld [vmem:[#allocation5 + $0x238] sm:$0xff]
    %v165 = vld [vmem:[#allocation5 + $0x240] sm:$0xff]
    %v166 = vld [vmem:[#allocation5 + $0x248] sm:$0xff]
    %v167 = vld [vmem:[#allocation5 + $0x250] sm:$0xff]
    %v168 = vld [vmem:[#allocation5 + $0x258] sm:$0xff]
    %v169 = vld [vmem:[#allocation5 + $0x260] sm:$0xff]
    %v170 = vld [vmem:[#allocation5 + $0x268] sm:$0xff]
    %v171 = vld [vmem:[#allocation5 + $0x270] sm:$0xff]
    %v172 = vld [vmem:[#allocation5 + $0x278] sm:$0xff]
    %v173 = vld [vmem:[#allocation5 + $0x280] sm:$0xff]
    %v174 = vld [vmem:[#allocation5 + $0x288] sm:$0xff]
    %v175 = vld [vmem:[#allocation5 + $0x290] sm:$0xff]
    %v176 = vld [vmem:[#allocation5 + $0x298] sm:$0xff]
    %v177 = vld [vmem:[#allocation5 + $0x2a0] sm:$0xff]
    %v178 = vld [vmem:[#allocation5 + $0x2a8] sm:$0xff]
    %v179 = vld [vmem:[#allocation5 + $0x2b0] sm:$0xff]
    %v180 = vld [vmem:[#allocation5 + $0x2b8] sm:$0xff]
    %v181 = vld [vmem:[#allocation5 + $0x2c0] sm:$0xff]
    %v182 = vld [vmem:[#allocation5 + $0x2c8] sm:$0xff]
    %v183 = vld [vmem:[#allocation5 + $0x2d0] sm:$0xff]
    %v184 = vld [vmem:[#allocation5 + $0x2d8] sm:$0xff]
    %v185 = vld [vmem:[#allocation5 + $0x2e0] sm:$0xff]
    %v186 = vld [vmem:[#allocation5 + $0x2e8] sm:$0xff]
    %v187 = vld [vmem:[#allocation5 + $0x2f0] sm:$0xff]
    %v188 = vld [vmem:[#allocation5 + $0x2f8] sm:$0xff]
    %v189 = vld [vmem:[#allocation5 + $0x300] sm:$0xff]
    %v190 = vld [vmem:[#allocation5 + $0x308] sm:$0xff]
    %v191 = vld [vmem:[#allocation5 + $0x310] sm:$0xff]
    %v192 = vld [vmem:[#allocation5 + $0x318] sm:$0xff]
    %v193 = vld [vmem:[#allocation5 + $0x320] sm:$0xff]
    %v194 = vld [vmem:[#allocation5 + $0x328] sm:$0xff]
    %v195 = vld [vmem:[#allocation5 + $0x330] sm:$0xff]
    %v196 = vld [vmem:[#allocation5 + $0x338] sm:$0xff]
    %v197 = vld [vmem:[#allocation5 + $0x340] sm:$0xff]
    %v198 = vld [vmem:[#allocation5 + $0x348] sm:$0xff]
    %v199 = vld [vmem:[#allocation5 + $0x350] sm:$0xff]
    %v200 = vld [vmem:[#allocation5 + $0x358] sm:$0xff]
    %v201 = vld [vmem:[#allocation5 + $0x360] sm:$0xff]
    %v202 = vld [vmem:[#allocation5 + $0x368] sm:$0xff]
    %v203 = vld [vmem:[#allocation5 + $0x370] sm:$0xff]
    %v204 = vld [vmem:[#allocation5 + $0x378] sm:$0xff]
    %v205 = vld [vmem:[#allocation5 + $0x380] sm:$0xff]
    %v206 = vld [vmem:[#allocation5 + $0x388] sm:$0xff]
    %v207 = vld [vmem:[#allocation5 + $0x390] sm:$0xff]
    %v208 = vld [vmem:[#allocation5 + $0x398] sm:$0xff]
    %v209 = vld [vmem:[#allocation5 + $0x3a0] sm:$0xff]
    %v210 = vld [vmem:[#allocation5 + $0x3a8] sm:$0xff]
    %v211 = vld [vmem:[#allocation5 + $0x3b0] sm:$0xff]
    %v212 = vld [vmem:[#allocation5 + $0x3b8] sm:$0xff]
    %v213 = vld [vmem:[#allocation5 + $0x3c0] sm:$0xff]
    %v214 = vld [vmem:[#allocation5 + $0x3c8] sm:$0xff]
    %v215 = vld [vmem:[#allocation5 + $0x3d0] sm:$0xff]
    %v216 = vld [vmem:[#allocation5 + $0x3d8] sm:$0xff]
    %v217 = vld [vmem:[#allocation5 + $0x3e0] sm:$0xff]
    %v218 = vld [vmem:[#allocation5 + $0x3e8] sm:$0xff]
    %v219 = vld [vmem:[#allocation5 + $0x3f0] sm:$0xff]
    %v220 = vld [vmem:[#allocation5 + $0x3f8] sm:$0xff]
    %v221 = vld [vmem:[#allocation5 + $0x400] sm:$0xff]
    %v222 = vld [vmem:[#allocation5 + $0x408] sm:$0xff]
    %v223 = vld [vmem:[#allocation5 + $0x410] sm:$0xff]
    %v224 = vld [vmem:[#allocation5 + $0x418] sm:$0xff]
    %v225 = vld [vmem:[#allocation5 + $0x420] sm:$0xff]
    %v226 = vld [vmem:[#allocation5 + $0x428] sm:$0xff]
    %v227 = vld [vmem:[#allocation5 + $0x430] sm:$0xff]
    %v228 = vld [vmem:[#allocation5 + $0x438] sm:$0xff]
    %v229 = vld [vmem:[#allocation5 + $0x440] sm:$0xff]
    %v230 = vld [vmem:[#allocation5 + $0x448] sm:$0xff]
    %v231 = vld [vmem:[#allocation5 + $0x450] sm:$0xff]
    %v232 = vld [vmem:[#allocation5 + $0x458] sm:$0xff]
    %v233 = vld [vmem:[#allocation5 + $0x460] sm:$0xff]
    %v234 = vld [vmem:[#allocation5 + $0x468] sm:$0xff]
    %v235 = vld [vmem:[#allocation5 + $0x470] sm:$0xff]
    %v236 = vld [vmem:[#allocation5 + $0x478] sm:$0xff]
    %v237 = vld [vmem:[#allocation5 + $0x480] sm:$0xff]
    %v238 = vld [vmem:[#allocation5 + $0x488] sm:$0xff]
    %v239 = vld [vmem:[#allocation5 + $0x490] sm:$0xff]
    %v240 = vld [vmem:[#allocation5 + $0x498] sm:$0xff]
    %v241 = vld [vmem:[#allocation5 + $0x4a0] sm:$0xff]
    %v242 = vld [vmem:[#allocation5 + $0x4a8] sm:$0xff]
    %v243 = vld [vmem:[#allocation5 + $0x4b0] sm:$0xff]
    %v244 = vld [vmem:[#allocation5 + $0x4b8] sm:$0xff]
    %v245 = vld [vmem:[#allocation5 + $0x4c0] sm:$0xff]
    %v246 = vld [vmem:[#allocation5 + $0x4c8] sm:$0xff]
    %v247 = vld [vmem:[#allocation5 + $0x4d0] sm:$0xff]
    %v248 = vld [vmem:[#allocation5 + $0x4d8] sm:$0xff]
    %v249 = vld [vmem:[#allocation5 + $0x4e0] sm:$0xff]
    %v250 = vld [vmem:[#allocation5 + $0x4e8] sm:$0xff]
    %v251 = vld [vmem:[#allocation5 + $0x4f0] sm:$0xff]
    %v252 = vld [vmem:[#allocation5 + $0x4f8] sm:$0xff]
    %v253 = vld [vmem:[#allocation5 + $0x500] sm:$0xff]
    %v254 = vld [vmem:[#allocation5 + $0x508] sm:$0xff]
    %v255 = vld [vmem:[#allocation5 + $0x510] sm:$0xff]
    %v256 = vld [vmem:[#allocation5 + $0x518] sm:$0xff]
    %v257 = vld [vmem:[#allocation5 + $0x520] sm:$0xff]
    %v258 = vld [vmem:[#allocation5 + $0x528] sm:$0xff]
    %v259 = vld [vmem:[#allocation5 + $0x530] sm:$0xff]
    %v260 = vld [vmem:[#allocation5 + $0x538] sm:$0xff]
    %v261 = vld [vmem:[#allocation5 + $0x540] sm:$0xff]
    %v262 = vld [vmem:[#allocation5 + $0x548] sm:$0xff]
    %v263 = vld [vmem:[#allocation5 + $0x550] sm:$0xff]
    %v264 = vld [vmem:[#allocation5 + $0x558] sm:$0xff]
    %v265 = vld [vmem:[#allocation5 + $0x560] sm:$0xff]
    %v266 = vld [vmem:[#allocation5 + $0x568] sm:$0xff]
    %v267 = vld [vmem:[#allocation5 + $0x570] sm:$0xff]
    %v268 = vld [vmem:[#allocation5 + $0x578] sm:$0xff]
    %v269 = vld [vmem:[#allocation5 + $0x580] sm:$0xff]
    %v270 = vld [vmem:[#allocation5 + $0x588] sm:$0xff]
    %v271 = vld [vmem:[#allocation5 + $0x590] sm:$0xff]
    %v272 = vld [vmem:[#allocation5 + $0x598] sm:$0xff]
    %v273 = vld [vmem:[#allocation5 + $0x5a0] sm:$0xff]
    %v274 = vld [vmem:[#allocation5 + $0x5a8] sm:$0xff]
    %v275 = vld [vmem:[#allocation5 + $0x5b0] sm:$0xff]
    %v276 = vld [vmem:[#allocation5 + $0x5b8] sm:$0xff]
    %v277 = vld [vmem:[#allocation5 + $0x5c0] sm:$0xff]
    %v278 = vld [vmem:[#allocation5 + $0x5c8] sm:$0xff]
    %v279 = vld [vmem:[#allocation5 + $0x5d0] sm:$0xff]
    %v280 = vld [vmem:[#allocation5 + $0x5d8] sm:$0xff]
    %v281 = vld [vmem:[#allocation5 + $0x5e0] sm:$0xff]
    %v282 = vld [vmem:[#allocation5 + $0x5e8] sm:$0xff]
    %v283 = vld [vmem:[#allocation5 + $0x5f0] sm:$0xff]
    %v284 = vld [vmem:[#allocation5 + $0x5f8] sm:$0xff]
    %v285 = vld [vmem:[#allocation5 + $0x600] sm:$0xff]
    %v286 = vld [vmem:[#allocation5 + $0x608] sm:$0xff]
    %v287 = vld [vmem:[#allocation5 + $0x610] sm:$0xff]
    %v288 = vld [vmem:[#allocation5 + $0x618] sm:$0xff]
    %v289 = vld [vmem:[#allocation5 + $0x620] sm:$0xff]
    %v290 = vld [vmem:[#allocation5 + $0x628] sm:$0xff]
    %v291 = vld [vmem:[#allocation5 + $0x630] sm:$0xff]
    %v292 = vld [vmem:[#allocation5 + $0x638] sm:$0xff]
    %v293 = vld [vmem:[#allocation5 + $0x640] sm:$0xff]
    %v294 = vld [vmem:[#allocation5 + $0x648] sm:$0xff]
    %v295 = vld [vmem:[#allocation5 + $0x650] sm:$0xff]
    %v296 = vld [vmem:[#allocation5 + $0x658] sm:$0xff]
    %v297 = vld [vmem:[#allocation5 + $0x660] sm:$0xff]
    %v298 = vld [vmem:[#allocation5 + $0x668] sm:$0xff]
    %v299 = vld [vmem:[#allocation5 + $0x670] sm:$0xff]
    %v300 = vld [vmem:[#allocation5 + $0x678] sm:$0xff]
    %v301 = vld [vmem:[#allocation5 + $0x680] sm:$0xff]
    %v302 = vld [vmem:[#allocation5 + $0x688] sm:$0xff]
    %v303 = vld [vmem:[#allocation5 + $0x690] sm:$0xff]
    %v304 = vld [vmem:[#allocation5 + $0x698] sm:$0xff]
    %v305 = vld [vmem:[#allocation5 + $0x6a0] sm:$0xff]
    %v306 = vld [vmem:[#allocation5 + $0x6a8] sm:$0xff]
    %v307 = vld [vmem:[#allocation5 + $0x6b0] sm:$0xff]
    %v308 = vld [vmem:[#allocation5 + $0x6b8] sm:$0xff]
    %v309 = vld [vmem:[#allocation5 + $0x6c0] sm:$0xff]
    %v310 = vld [vmem:[#allocation5 + $0x6c8] sm:$0xff]
    %v311 = vld [vmem:[#allocation5 + $0x6d0] sm:$0xff]
    %v312 = vld [vmem:[#allocation5 + $0x6d8] sm:$0xff]
    %v313 = vld [vmem:[#allocation5 + $0x6e0] sm:$0xff]
    %v314 = vld [vmem:[#allocation5 + $0x6e8] sm:$0xff]
    %v315 = vld [vmem:[#allocation5 + $0x6f0] sm:$0xff]
    %v316 = vld [vmem:[#allocation5 + $0x6f8] sm:$0xff]
    %v317 = vld [vmem:[#allocation5 + $0x700] sm:$0xff]
    %v318 = vld [vmem:[#allocation5 + $0x708] sm:$0xff]
    %v319 = vld [vmem:[#allocation5 + $0x710] sm:$0xff]
    %v320 = vld [vmem:[#allocation5 + $0x718] sm:$0xff]
    %v321 = vld [vmem:[#allocation5 + $0x720] sm:$0xff]
    %v322 = vld [vmem:[#allocation5 + $0x728] sm:$0xff]
    %v323 = vld [vmem:[#allocation5 + $0x730] sm:$0xff]
    %v324 = vld [vmem:[#allocation5 + $0x738] sm:$0xff]
    %v325 = vld [vmem:[#allocation5 + $0x740] sm:$0xff]
    %v326 = vld [vmem:[#allocation5 + $0x748] sm:$0xff]
    %v327 = vld [vmem:[#allocation5 + $0x750] sm:$0xff]
    %v328 = vld [vmem:[#allocation5 + $0x758] sm:$0xff]
    %v329 = vld [vmem:[#allocation5 + $0x760] sm:$0xff]
    %v330 = vld [vmem:[#allocation5 + $0x768] sm:$0xff]
    %v331 = vld [vmem:[#allocation5 + $0x770] sm:$0xff]
    %v332 = vld [vmem:[#allocation5 + $0x778] sm:$0xff]
    %v333 = vld [vmem:[#allocation5 + $0x780] sm:$0xff]
    %v334 = vld [vmem:[#allocation5 + $0x788] sm:$0xff]
    %v335 = vld [vmem:[#allocation5 + $0x790] sm:$0xff]
    %v336 = vld [vmem:[#allocation5 + $0x798] sm:$0xff]
    %v337 = vld [vmem:[#allocation5 + $0x7a0] sm:$0xff]
    %v338 = vld [vmem:[#allocation5 + $0x7a8] sm:$0xff]
    %v339 = vld [vmem:[#allocation5 + $0x7b0] sm:$0xff]
    %v340 = vld [vmem:[#allocation5 + $0x7b8] sm:$0xff]
    %v341 = vld [vmem:[#allocation5 + $0x7c0] sm:$0xff]
    %v342 = vld [vmem:[#allocation5 + $0x7c8] sm:$0xff]
    %v343 = vld [vmem:[#allocation5 + $0x7d0] sm:$0xff]
    %v344 = vld [vmem:[#allocation5 + $0x7d8] sm:$0xff]
    %v345 = vld [vmem:[#allocation5 + $0x7e0] sm:$0xff]
    %v346 = vld [vmem:[#allocation5 + $0x7e8] sm:$0xff]
    %v347 = vld [vmem:[#allocation5 + $0x7f0] sm:$0xff]
    %v348 = vld [vmem:[#allocation5 + $0x7f8] sm:$0xff]
    %v349 = vld [vmem:[#allocation5 + $0x800] sm:$0xff]
    %v350 = vld [vmem:[#allocation5 + $0x808] sm:$0xff]
    %v351 = vld [vmem:[#allocation5 + $0x810] sm:$0xff]
    %v352 = vld [vmem:[#allocation5 + $0x818] sm:$0xff]
    %v353 = vld [vmem:[#allocation5 + $0x820] sm:$0xff]
    %v354 = vld [vmem:[#allocation5 + $0x828] sm:$0xff]
    %v355 = vld [vmem:[#allocation5 + $0x830] sm:$0xff]
    %v356 = vld [vmem:[#allocation5 + $0x838] sm:$0xff]
    %v357 = vld [vmem:[#allocation5 + $0x840] sm:$0xff]
    %v358 = vld [vmem:[#allocation5 + $0x848] sm:$0xff]
    %v359 = vld [vmem:[#allocation5 + $0x850] sm:$0xff]
    %v360 = vld [vmem:[#allocation5 + $0x858] sm:$0xff]
    %v361 = vld [vmem:[#allocation5 + $0x860] sm:$0xff]
    %v362 = vld [vmem:[#allocation5 + $0x868] sm:$0xff]
    %v363 = vld [vmem:[#allocation5 + $0x870] sm:$0xff]
    %v364 = vld [vmem:[#allocation5 + $0x878] sm:$0xff]
    %v365 = vld [vmem:[#allocation5 + $0x880] sm:$0xff]
    %v366 = vld [vmem:[#allocation5 + $0x888] sm:$0xff]
    %v367 = vld [vmem:[#allocation5 + $0x890] sm:$0xff]
    %v368 = vld [vmem:[#allocation5 + $0x898] sm:$0xff]
    %v369 = vld [vmem:[#allocation5 + $0x8a0] sm:$0xff]
    %v370 = vld [vmem:[#allocation5 + $0x8a8] sm:$0xff]
    %v371 = vld [vmem:[#allocation5 + $0x8b0] sm:$0xff]
    %v372 = vld [vmem:[#allocation5 + $0x8b8] sm:$0xff]
    %v373 = vld [vmem:[#allocation5 + $0x8c0] sm:$0xff]
    %v374 = vld [vmem:[#allocation5 + $0x8c8] sm:$0xff]
    %v375 = vld [vmem:[#allocation5 + $0x8d0] sm:$0xff]
    %v376 = vld [vmem:[#allocation5 + $0x8d8] sm:$0xff]
    %v377 = vld [vmem:[#allocation5 + $0x8e0] sm:$0xff]
    %v378 = vld [vmem:[#allocation5 + $0x8e8] sm:$0xff]
    %v379 = vld [vmem:[#allocation5 + $0x8f0] sm:$0xff]
    %v380 = vld [vmem:[#allocation5 + $0x8f8] sm:$0xff]
    %v381 = vld [vmem:[#allocation5 + $0x900] sm:$0xff]
    %v382 = vld [vmem:[#allocation5 + $0x908] sm:$0xff]
    %v383 = vld [vmem:[#allocation5 + $0x910] sm:$0xff]
    %v384 = vld [vmem:[#allocation5 + $0x918] sm:$0xff]
    %v385 = vld [vmem:[#allocation5 + $0x920] sm:$0xff]
    %v386 = vld [vmem:[#allocation5 + $0x928] sm:$0xff]
    %v387 = vld [vmem:[#allocation5 + $0x930] sm:$0xff]
    %v388 = vld [vmem:[#allocation5 + $0x938] sm:$0xff]
    %v389 = vld [vmem:[#allocation5 + $0x940] sm:$0xff]
    %v390 = vld [vmem:[#allocation5 + $0x948] sm:$0xff]
    %v391 = vld [vmem:[#allocation5 + $0x950] sm:$0xff]
    %v392 = vld [vmem:[#allocation5 + $0x958] sm:$0xff]
    %v393 = vld [vmem:[#allocation5 + $0x960] sm:$0xff]
    %v394 = vld [vmem:[#allocation5 + $0x968] sm:$0xff]
    %v395 = vld [vmem:[#allocation5 + $0x970] sm:$0xff]
    %v396 = vld [vmem:[#allocation5 + $0x978] sm:$0xff]
    %v397 = vld [vmem:[#allocation5 + $0x980] sm:$0xff]
    %v398 = vld [vmem:[#allocation5 + $0x988] sm:$0xff]
    %v399 = vld [vmem:[#allocation5 + $0x990] sm:$0xff]
    %v400 = vld [vmem:[#allocation5 + $0x998] sm:$0xff]
    %v401 = vld [vmem:[#allocation5 + $0x9a0] sm:$0xff]
    %v402 = vld [vmem:[#allocation5 + $0x9a8] sm:$0xff]
    %v403 = vld [vmem:[#allocation5 + $0x9b0] sm:$0xff]
    %v404 = vld [vmem:[#allocation5 + $0x9b8] sm:$0xff]
    %v405 = vld [vmem:[#allocation5 + $0x9c0] sm:$0xff]
    %v406 = vld [vmem:[#allocation5 + $0x9c8] sm:$0xff]
    %v407 = vld [vmem:[#allocation5 + $0x9d0] sm:$0xff]
    %v408 = vld [vmem:[#allocation5 + $0x9d8] sm:$0xff]
    %v409 = vld [vmem:[#allocation5 + $0x9e0] sm:$0xff]
    %v410 = vld [vmem:[#allocation5 + $0x9e8] sm:$0xff]
    %v411 = vld [vmem:[#allocation5 + $0x9f0] sm:$0xff]
    %v412 = vld [vmem:[#allocation5 + $0x9f8] sm:$0xff]
    %v413 = vld [vmem:[#allocation5 + $0xa00] sm:$0xff]
    %v414 = vld [vmem:[#allocation5 + $0xa08] sm:$0xff]
    %v415 = vld [vmem:[#allocation5 + $0xa10] sm:$0xff]
    %v416 = vld [vmem:[#allocation5 + $0xa18] sm:$0xff]
    %v417 = vld [vmem:[#allocation5 + $0xa20] sm:$0xff]
    %v418 = vld [vmem:[#allocation5 + $0xa28] sm:$0xff]
    %v419 = vld [vmem:[#allocation5 + $0xa30] sm:$0xff]
    %v420 = vld [vmem:[#allocation5 + $0xa38] sm:$0xff]
    %v421 = vld [vmem:[#allocation5 + $0xa40] sm:$0xff]
    %v422 = vld [vmem:[#allocation5 + $0xa48] sm:$0xff]
    %v423 = vld [vmem:[#allocation5 + $0xa50] sm:$0xff]
    %v424 = vld [vmem:[#allocation5 + $0xa58] sm:$0xff]
    %v425 = vld [vmem:[#allocation5 + $0xa60] sm:$0xff]
    %v426 = vld [vmem:[#allocation5 + $0xa68] sm:$0xff]
    %v427 = vld [vmem:[#allocation5 + $0xa70] sm:$0xff]
    %v428 = vld [vmem:[#allocation5 + $0xa78] sm:$0xff]
    %v429 = vld [vmem:[#allocation5 + $0xa80] sm:$0xff]
    %v430 = vld [vmem:[#allocation5 + $0xa88] sm:$0xff]
    %v431 = vld [vmem:[#allocation5 + $0xa90] sm:$0xff]
    %v432 = vld [vmem:[#allocation5 + $0xa98] sm:$0xff]
    %v433 = vld [vmem:[#allocation5 + $0xaa0] sm:$0xff]
    %v434 = vld [vmem:[#allocation5 + $0xaa8] sm:$0xff]
    %v435 = vld [vmem:[#allocation5 + $0xab0] sm:$0xff]
    %v436 = vld [vmem:[#allocation5 + $0xab8] sm:$0xff]
    %v437 = vld [vmem:[#allocation5 + $0xac0] sm:$0xff]
    %v438 = vld [vmem:[#allocation5 + $0xac8] sm:$0xff]
    %v439 = vld [vmem:[#allocation5 + $0xad0] sm:$0xff]
    %v440 = vld [vmem:[#allocation5 + $0xad8] sm:$0xff]
    %v441 = vld [vmem:[#allocation5 + $0xae0] sm:$0xff]
    %v442 = vld [vmem:[#allocation5 + $0xae8] sm:$0xff]
    %v443 = vld [vmem:[#allocation5 + $0xaf0] sm:$0xff]
    %v444 = vld [vmem:[#allocation5 + $0xaf8] sm:$0xff]
    %v445 = vld [vmem:[#allocation5 + $0xb00] sm:$0xff]
    %v446 = vld [vmem:[#allocation5 + $0xb08] sm:$0xff]
    %v447 = vld [vmem:[#allocation5 + $0xb10] sm:$0xff]
    %v448 = vld [vmem:[#allocation5 + $0xb18] sm:$0xff]
    %v449 = vld [vmem:[#allocation5 + $0xb20] sm:$0xff]
    %v450 = vld [vmem:[#allocation5 + $0xb28] sm:$0xff]
    %v451 = vld [vmem:[#allocation5 + $0xb30] sm:$0xff]
    %v452 = vld [vmem:[#allocation5 + $0xb38] sm:$0xff]
    %v453 = vld [vmem:[#allocation5 + $0xb40] sm:$0xff]
    %v454 = vld [vmem:[#allocation5 + $0xb48] sm:$0xff]
    %v455 = vld [vmem:[#allocation5 + $0xb50] sm:$0xff]
    %v456 = vld [vmem:[#allocation5 + $0xb58] sm:$0xff]
    %v457 = vld [vmem:[#allocation5 + $0xb60] sm:$0xff]
    %v458 = vld [vmem:[#allocation5 + $0xb68] sm:$0xff]
    %v459 = vld [vmem:[#allocation5 + $0xb70] sm:$0xff]
    %v460 = vld [vmem:[#allocation5 + $0xb78] sm:$0xff]
    %v461 = vld [vmem:[#allocation5 + $0xb80] sm:$0xff]
    %v462 = vld [vmem:[#allocation5 + $0xb88] sm:$0xff]
    %v463 = vld [vmem:[#allocation5 + $0xb90] sm:$0xff]
    %v464 = vld [vmem:[#allocation5 + $0xb98] sm:$0xff]
    %v465 = vld [vmem:[#allocation5 + $0xba0] sm:$0xff]
    %v466 = vld [vmem:[#allocation5 + $0xba8] sm:$0xff]
    %v467 = vld [vmem:[#allocation5 + $0xbb0] sm:$0xff]
    %v468 = vld [vmem:[#allocation5 + $0xbb8] sm:$0xff]
    %v469 = vld [vmem:[#allocation5 + $0xbc0] sm:$0xff]
    %v470 = vld [vmem:[#allocation5 + $0xbc8] sm:$0xff]
    %v471 = vld [vmem:[#allocation5 + $0xbd0] sm:$0xff]
    %v472 = vld [vmem:[#allocation5 + $0xbd8] sm:$0xff]
    %v473 = vld [vmem:[#allocation5 + $0xbe0] sm:$0xff]
    %v474 = vld [vmem:[#allocation5 + $0xbe8] sm:$0xff]
    %v475 = vld [vmem:[#allocation5 + $0xbf0] sm:$0xff]
    %v476 = vld [vmem:[#allocation5 + $0xbf8] sm:$0xff]
    %v477 = vld [vmem:[#allocation5 + $0xc00] sm:$0xff]
    %v478 = vld [vmem:[#allocation5 + $0xc08] sm:$0xff]
    %v479 = vld [vmem:[#allocation5 + $0xc10] sm:$0xff]
    %v480 = vld [vmem:[#allocation5 + $0xc18] sm:$0xff]
    %v481 = vld [vmem:[#allocation5 + $0xc20] sm:$0xff]
    %v482 = vld [vmem:[#allocation5 + $0xc28] sm:$0xff]
    %v483 = vld [vmem:[#allocation5 + $0xc30] sm:$0xff]
    %v484 = vld [vmem:[#allocation5 + $0xc38] sm:$0xff]
    %v485 = vld [vmem:[#allocation5 + $0xc40] sm:$0xff]
    %v486 = vld [vmem:[#allocation5 + $0xc48] sm:$0xff]
    %v487 = vld [vmem:[#allocation5 + $0xc50] sm:$0xff]
    %v488 = vld [vmem:[#allocation5 + $0xc58] sm:$0xff]
    %v489 = vld [vmem:[#allocation5 + $0xc60] sm:$0xff]
    %v490 = vld [vmem:[#allocation5 + $0xc68] sm:$0xff]
    %v491 = vld [vmem:[#allocation5 + $0xc70] sm:$0xff]
    %v492 = vld [vmem:[#allocation5 + $0xc78] sm:$0xff]
    %v493 = vld [vmem:[#allocation5 + $0xc80] sm:$0xff]
    %v494 = vld [vmem:[#allocation5 + $0xc88] sm:$0xff]
    %v495 = vld [vmem:[#allocation5 + $0xc90] sm:$0xff]
    %v496 = vld [vmem:[#allocation5 + $0xc98] sm:$0xff]
    %v497 = vld [vmem:[#allocation5 + $0xca0] sm:$0xff]
    %v498 = vld [vmem:[#allocation5 + $0xca8] sm:$0xff]
    %v499 = vld [vmem:[#allocation5 + $0xcb0] sm:$0xff]
    %v500 = vld [vmem:[#allocation5 + $0xcb8] sm:$0xff]
    %v501 = vld [vmem:[#allocation5 + $0xcc0] sm:$0xff]
    %v502 = vld [vmem:[#allocation5 + $0xcc8] sm:$0xff]
    %v503 = vld [vmem:[#allocation5 + $0xcd0] sm:$0xff]
    %v504 = vld [vmem:[#allocation5 + $0xcd8] sm:$0xff]
    %v505 = vld [vmem:[#allocation5 + $0xce0] sm:$0xff]
    %v506 = vld [vmem:[#allocation5 + $0xce8] sm:$0xff]
    %v507 = vld [vmem:[#allocation5 + $0xcf0] sm:$0xff]
    %v508 = vld [vmem:[#allocation5 + $0xcf8] sm:$0xff]
    %v509 = vld [vmem:[#allocation5 + $0xd00] sm:$0xff]
    %v510 = vld [vmem:[#allocation5 + $0xd08] sm:$0xff]
    %v511 = vld [vmem:[#allocation5 + $0xd10] sm:$0xff]
    %v512 = vld [vmem:[#allocation5 + $0xd18] sm:$0xff]
    %v513 = vld [vmem:[#allocation5 + $0xd20] sm:$0xff]
    %v514 = vld [vmem:[#allocation5 + $0xd28] sm:$0xff]
    %v515 = vld [vmem:[#allocation5 + $0xd30] sm:$0xff]
    %v516 = vld [vmem:[#allocation5 + $0xd38] sm:$0xff]
    %v517 = vld [vmem:[#allocation5 + $0xd40] sm:$0xff]
    %v518 = vld [vmem:[#allocation5 + $0xd48] sm:$0xff]
    %v519 = vld [vmem:[#allocation5 + $0xd50] sm:$0xff]
    %v520 = vld [vmem:[#allocation5 + $0xd58] sm:$0xff]
    %v521 = vld [vmem:[#allocation5 + $0xd60] sm:$0xff]
    %v522 = vld [vmem:[#allocation5 + $0xd68] sm:$0xff]
    %v523 = vld [vmem:[#allocation5 + $0xd70] sm:$0xff]
    %v524 = vld [vmem:[#allocation5 + $0xd78] sm:$0xff]
    %v525 = vld [vmem:[#allocation5 + $0xd80] sm:$0xff]
    %v526 = vld [vmem:[#allocation5 + $0xd88] sm:$0xff]
    %v527 = vld [vmem:[#allocation5 + $0xd90] sm:$0xff]
    %v528 = vld [vmem:[#allocation5 + $0xd98] sm:$0xff]
    %v529 = vld [vmem:[#allocation5 + $0xda0] sm:$0xff]
    %v530 = vld [vmem:[#allocation5 + $0xda8] sm:$0xff]
    %v531 = vld [vmem:[#allocation5 + $0xdb0] sm:$0xff]
    %v532 = vld [vmem:[#allocation5 + $0xdb8] sm:$0xff]
    %v533 = vld [vmem:[#allocation5 + $0xdc0] sm:$0xff]
    %v534 = vld [vmem:[#allocation5 + $0xdc8] sm:$0xff]
    %v535 = vld [vmem:[#allocation5 + $0xdd0] sm:$0xff]
    %v536 = vld [vmem:[#allocation5 + $0xdd8] sm:$0xff]
    %v537 = vld [vmem:[#allocation5 + $0xde0] sm:$0xff]
    %v538 = vld [vmem:[#allocation5 + $0xde8] sm:$0xff]
    %v539 = vld [vmem:[#allocation5 + $0xdf0] sm:$0xff]
    %v540 = vld [vmem:[#allocation5 + $0xdf8] sm:$0xff]
    %v541 = vld [vmem:[#allocation5 + $0xe00] sm:$0xff]
    %v542 = vld [vmem:[#allocation5 + $0xe08] sm:$0xff]
    %v543 = vld [vmem:[#allocation5 + $0xe10] sm:$0xff]
    %v544 = vld [vmem:[#allocation5 + $0xe18] sm:$0xff]
    %v545 = vld [vmem:[#allocation5 + $0xe20] sm:$0xff]
    %v546 = vld [vmem:[#allocation5 + $0xe28] sm:$0xff]
    %v547 = vld [vmem:[#allocation5 + $0xe30] sm:$0xff]
    %v548 = vld [vmem:[#allocation5 + $0xe38] sm:$0xff]
    %v549 = vld [vmem:[#allocation5 + $0xe40] sm:$0xff]
    %v550 = vld [vmem:[#allocation5 + $0xe48] sm:$0xff]
    %v551 = vld [vmem:[#allocation5 + $0xe50] sm:$0xff]
    %v552 = vld [vmem:[#allocation5 + $0xe58] sm:$0xff]
    %v553 = vld [vmem:[#allocation5 + $0xe60] sm:$0xff]
    %v554 = vld [vmem:[#allocation5 + $0xe68] sm:$0xff]
    %v555 = vld [vmem:[#allocation5 + $0xe70] sm:$0xff]
    %v556 = vld [vmem:[#allocation5 + $0xe78] sm:$0xff]
    %v557 = vld [vmem:[#allocation5 + $0xe80] sm:$0xff]
    %v558 = vld [vmem:[#allocation5 + $0xe88] sm:$0xff]
    %v559 = vld [vmem:[#allocation5 + $0xe90] sm:$0xff]
    %v560 = vld [vmem:[#allocation5 + $0xe98] sm:$0xff]
    %v561 = vld [vmem:[#allocation5 + $0xea0] sm:$0xff]
    %v562 = vld [vmem:[#allocation5 + $0xea8] sm:$0xff]
    %v563 = vld [vmem:[#allocation5 + $0xeb0] sm:$0xff]
    %v564 = vld [vmem:[#allocation5 + $0xeb8] sm:$0xff]
    %v565 = vld [vmem:[#allocation5 + $0xec0] sm:$0xff]
    %v566 = vld [vmem:[#allocation5 + $0xec8] sm:$0xff]
    %v567 = vld [vmem:[#allocation5 + $0xed0] sm:$0xff]
    %v568 = vld [vmem:[#allocation5 + $0xed8] sm:$0xff]
    %v569 = vld [vmem:[#allocation5 + $0xee0] sm:$0xff]
    %v570 = vld [vmem:[#allocation5 + $0xee8] sm:$0xff]
    %v571 = vld [vmem:[#allocation5 + $0xef0] sm:$0xff]
    %v572 = vld [vmem:[#allocation5 + $0xef8] sm:$0xff]
    %v573 = vld [vmem:[#allocation5 + $0xf00] sm:$0xff]
    %v574 = vld [vmem:[#allocation5 + $0xf08] sm:$0xff]
    %v575 = vld [vmem:[#allocation5 + $0xf10] sm:$0xff]
    %v576 = vld [vmem:[#allocation5 + $0xf18] sm:$0xff]
    %v577 = vld [vmem:[#allocation5 + $0xf20] sm:$0xff]
    %v578 = vld [vmem:[#allocation5 + $0xf28] sm:$0xff]
    %v579 = vld [vmem:[#allocation5 + $0xf30] sm:$0xff]
    %v580 = vld [vmem:[#allocation5 + $0xf38] sm:$0xff]
    %v581 = vld [vmem:[#allocation5 + $0xf40] sm:$0xff]
    %v582 = vld [vmem:[#allocation5 + $0xf48] sm:$0xff]
    %v583 = vld [vmem:[#allocation5 + $0xf50] sm:$0xff]
    %v584 = vld [vmem:[#allocation5 + $0xf58] sm:$0xff]
    %v585 = vld [vmem:[#allocation5 + $0xf60] sm:$0xff]
    %v586 = vld [vmem:[#allocation5 + $0xf68] sm:$0xff]
    %v587 = vld [vmem:[#allocation5 + $0xf70] sm:$0xff]
    %v588 = vld [vmem:[#allocation5 + $0xf78] sm:$0xff]
    %v589 = vld [vmem:[#allocation5 + $0xf80] sm:$0xff]
    %v590 = vld [vmem:[#allocation5 + $0xf88] sm:$0xff]
    %v591 = vld [vmem:[#allocation5 + $0xf90] sm:$0xff]
    %v592 = vld [vmem:[#allocation5 + $0xf98] sm:$0xff]
    %v593 = vld [vmem:[#allocation5 + $0xfa0] sm:$0xff]
    %v594 = vld [vmem:[#allocation5 + $0xfa8] sm:$0xff]
    %v595 = vld [vmem:[#allocation5 + $0xfb0] sm:$0xff]
    %v596 = vld [vmem:[#allocation5 + $0xfb8] sm:$0xff]
    %v597 = vld [vmem:[#allocation5 + $0xfc0] sm:$0xff]
    %v598 = vld [vmem:[#allocation5 + $0xfc8] sm:$0xff]
    %v599 = vld [vmem:[#allocation5 + $0xfd0] sm:$0xff]
    %v600 = vld [vmem:[#allocation5 + $0xfd8] sm:$0xff]
    %v601 = vld [vmem:[#allocation5 + $0xfe0] sm:$0xff]
    %v602 = vld [vmem:[#allocation5 + $0xfe8] sm:$0xff]
    %v603 = vld [vmem:[#allocation5 + $0xff0] sm:$0xff]
    %v604 = vld [vmem:[#allocation5 + $0xff8] sm:$0xff]
    %v605 = vld [vmem:[#allocation5 + $0x1000] sm:$0xff]
    %v606 = vld [vmem:[#allocation5 + $0x1008] sm:$0xff]
    %v607 = vld [vmem:[#allocation5 + $0x1010] sm:$0xff]
    %v608 = vld [vmem:[#allocation5 + $0x1018] sm:$0xff]
    %v609 = vld [vmem:[#allocation5 + $0x1020] sm:$0xff]
    %v610 = vld [vmem:[#allocation5 + $0x1028] sm:$0xff]
    %v611 = vld [vmem:[#allocation5 + $0x1030] sm:$0xff]
    %v612 = vld [vmem:[#allocation5 + $0x1038] sm:$0xff]
    %v613 = vld [vmem:[#allocation5 + $0x1040] sm:$0xff]
    %v614 = vld [vmem:[#allocation5 + $0x1048] sm:$0xff]
    %v615 = vld [vmem:[#allocation5 + $0x1050] sm:$0xff]
    %v616 = vld [vmem:[#allocation5 + $0x1058] sm:$0xff]
    %v617 = vld [vmem:[#allocation5 + $0x1060] sm:$0xff]
    %v618 = vld [vmem:[#allocation5 + $0x1068] sm:$0xff]
    %v619 = vld [vmem:[#allocation5 + $0x1070] sm:$0xff]
    %v620 = vld [vmem:[#allocation5 + $0x1078] sm:$0xff]
    %v621 = vld [vmem:[#allocation5 + $0x1080] sm:$0xff]
    %v622 = vld [vmem:[#allocation5 + $0x1088] sm:$0xff]
    %v623 = vld [vmem:[#allocation5 + $0x1090] sm:$0xff]
    %v624 = vld [vmem:[#allocation5 + $0x1098] sm:$0xff]
    %v625 = vld [vmem:[#allocation5 + $0x10a0] sm:$0xff]
    %v626 = vld [vmem:[#allocation5 + $0x10a8] sm:$0xff]
    %v627 = vld [vmem:[#allocation5 + $0x10b0] sm:$0xff]
    %v628 = vld [vmem:[#allocation5 + $0x10b8] sm:$0xff]
    %v629 = vld [vmem:[#allocation5 + $0x10c0] sm:$0xff]
    %v630 = vld [vmem:[#allocation5 + $0x10c8] sm:$0xff]
    %v631 = vld [vmem:[#allocation5 + $0x10d0] sm:$0xff]
    %v632 = vld [vmem:[#allocation5 + $0x10d8] sm:$0xff]
    %v633 = vld [vmem:[#allocation5 + $0x10e0] sm:$0xff]
    %v634 = vld [vmem:[#allocation5 + $0x10e8] sm:$0xff]
    %v635 = vld [vmem:[#allocation5 + $0x10f0] sm:$0xff]
    %v636 = vld [vmem:[#allocation5 + $0x10f8] sm:$0xff]
    %v637 = vld [vmem:[#allocation5 + $0x1100] sm:$0xff]
    %v638 = vld [vmem:[#allocation5 + $0x1108] sm:$0xff]
    %v639 = vld [vmem:[#allocation5 + $0x1110] sm:$0xff]
    %v640 = vld [vmem:[#allocation5 + $0x1118] sm:$0xff]
    %v641 = vld [vmem:[#allocation5 + $0x1120] sm:$0xff]
    %v642 = vld [vmem:[#allocation5 + $0x1128] sm:$0xff]
    %v643 = vld [vmem:[#allocation5 + $0x1130] sm:$0xff]
    %v644 = vld [vmem:[#allocation5 + $0x1138] sm:$0xff]
    %v645 = vld [vmem:[#allocation5 + $0x1140] sm:$0xff]
    %v646 = vld [vmem:[#allocation5 + $0x1148] sm:$0xff]
    %v647 = vld [vmem:[#allocation5 + $0x1150] sm:$0xff]
    %v648 = vld [vmem:[#allocation5 + $0x1158] sm:$0xff]
    %v649 = vld [vmem:[#allocation5 + $0x1160] sm:$0xff]
    %v650 = vld [vmem:[#allocation5 + $0x1168] sm:$0xff]
    %v651 = vld [vmem:[#allocation5 + $0x1170] sm:$0xff]
    %v652 = vld [vmem:[#allocation5 + $0x1178] sm:$0xff]
    %v653 = vld [vmem:[#allocation5 + $0x1180] sm:$0xff]
    %v654 = vld [vmem:[#allocation5 + $0x1188] sm:$0xff]
    %v655 = vld [vmem:[#allocation5 + $0x1190] sm:$0xff]
    %v656 = vld [vmem:[#allocation5 + $0x1198] sm:$0xff]
    %v657 = vld [vmem:[#allocation5 + $0x11a0] sm:$0xff]
    %v658 = vld [vmem:[#allocation5 + $0x11a8] sm:$0xff]
    %v659 = vld [vmem:[#allocation5 + $0x11b0] sm:$0xff]
    %v660 = vld [vmem:[#allocation5 + $0x11b8] sm:$0xff]
    %v661 = vld [vmem:[#allocation5 + $0x11c0] sm:$0xff]
    %v662 = vld [vmem:[#allocation5 + $0x11c8] sm:$0xff]
    %v663 = vld [vmem:[#allocation5 + $0x11d0] sm:$0xff]
    %v664 = vld [vmem:[#allocation5 + $0x11d8] sm:$0xff]
    %v665 = vld [vmem:[#allocation5 + $0x11e0] sm:$0xff]
    %v666 = vld [vmem:[#allocation5 + $0x11e8] sm:$0xff]
    %v667 = vld [vmem:[#allocation5 + $0x11f0] sm:$0xff]
    %v668 = vld [vmem:[#allocation5 + $0x11f8] sm:$0xff]
    %v669 = vld [vmem:[#allocation7] sm:$0x3f]
    %v671 = vlaneseq
    %v672 = vshrl.u32 %v671, 7
    %v673 = vsub.s32 0, %v672
    %v674 = vrot.slane %v669, %v673
    %v675 = vlaneseq
    %v676 = vshrl.u32 %v675, 7
    %v677 = vsub.s32 1, %v676
    %v678 = vrot.slane %v669, %v677
    %v679 = vlaneseq
    %v680 = vshrl.u32 %v679, 7
    %v681 = vsub.s32 2, %v680
    %v682 = vrot.slane %v669, %v681
    %v683 = vlaneseq
    %v684 = vshrl.u32 %v683, 7
    %v685 = vsub.s32 3, %v684
    %v686 = vrot.slane %v669, %v685
    %v687 = vlaneseq
    %v688 = vshrl.u32 %v687, 7
    %v689 = vsub.s32 4, %v688
    %v690 = vrot.slane %v669, %v689
    %v691 = vlaneseq
    %v692 = vshrl.u32 %v691, 7
    %v693 = vsub.s32 5, %v692
    %v694 = vrot.slane %v669, %v693
    %v707 = vunpack.c.l.b16 %v87
    %v708 = vunpack.c.h.b16 %v87
    %v709 = vunpack.c.l.b16 %v88
    %v710 = vunpack.c.h.b16 %v88
    %v711 = vunpack.c.l.b16 %v89
    %v712 = vunpack.c.h.b16 %v89
    %v713 = vunpack.c.l.b16 %v90
    %v714 = vunpack.c.h.b16 %v90
    %v715 = vunpack.c.l.b16 %v91
    %v716 = vunpack.c.h.b16 %v91
    %v717 = vunpack.c.l.b16 %v92
    %v718 = vunpack.c.h.b16 %v92
    %v719 = vpack.c.b16 %v707, %v707
    %v720 = vpack.c.b16 %v708, %v708
    %v721 = vpack.c.b16 %v709, %v709
    %v722 = vpack.c.b16 %v710, %v710
    %v723 = vpack.c.b16 %v711, %v711
    %v724 = vpack.c.b16 %v712, %v712
    %v725 = vpack.c.b16 %v713, %v713
    %v726 = vpack.c.b16 %v714, %v714
    %v727 = vpack.c.b16 %v715, %v715
    %v728 = vpack.c.b16 %v716, %v716
    %v729 = vpack.c.b16 %v717, %v717
    %v730 = vpack.c.b16 %v718, %v718
    %v1319 = vunpack.c.l.b16 %v93
    %v1320 = vunpack.c.h.b16 %v93
    %v1321 = vunpack.c.l.b16 %v94
    %v1322 = vunpack.c.h.b16 %v94
    %v1323 = vunpack.c.l.b16 %v95
    %v1324 = vunpack.c.h.b16 %v95
    %v1325 = vunpack.c.l.b16 %v96
    %v1326 = vunpack.c.h.b16 %v96
    %v1327 = vunpack.c.l.b16 %v97
    %v1328 = vunpack.c.h.b16 %v97
    %v1329 = vunpack.c.l.b16 %v98
    %v1330 = vunpack.c.h.b16 %v98
    %v1331 = vunpack.c.l.b16 %v99
    %v1332 = vunpack.c.h.b16 %v99
    %v1333 = vunpack.c.l.b16 %v100
    %v1334 = vunpack.c.h.b16 %v100
    %v1335 = vunpack.c.l.b16 %v101
    %v1336 = vunpack.c.h.b16 %v101
    %v1337 = vunpack.c.l.b16 %v102
    %v1338 = vunpack.c.h.b16 %v102
    %v1339 = vunpack.c.l.b16 %v103
    %v1340 = vunpack.c.h.b16 %v103
    %v1341 = vunpack.c.l.b16 %v104
    %v1342 = vunpack.c.h.b16 %v104
    %v1343 = vunpack.c.l.b16 %v105
    %v1344 = vunpack.c.h.b16 %v105
    %v1345 = vunpack.c.l.b16 %v106
    %v1346 = vunpack.c.h.b16 %v106
    %v1347 = vunpack.c.l.b16 %v107
    %v1348 = vunpack.c.h.b16 %v107
    %v1349 = vunpack.c.l.b16 %v108
    %v1350 = vunpack.c.h.b16 %v108
    %v1351 = vunpack.c.l.b16 %v109
    %v1352 = vunpack.c.h.b16 %v109
    %v1353 = vunpack.c.l.b16 %v110
    %v1354 = vunpack.c.h.b16 %v110
    %v1355 = vunpack.c.l.b16 %v111
    %v1356 = vunpack.c.h.b16 %v111
    %v1357 = vunpack.c.l.b16 %v112
    %v1358 = vunpack.c.h.b16 %v112
    %v1359 = vunpack.c.l.b16 %v113
    %v1360 = vunpack.c.h.b16 %v113
    %v1361 = vunpack.c.l.b16 %v114
    %v1362 = vunpack.c.h.b16 %v114
    %v1363 = vunpack.c.l.b16 %v115
    %v1364 = vunpack.c.h.b16 %v115
    %v1365 = vunpack.c.l.b16 %v116
    %v1366 = vunpack.c.h.b16 %v116
    %v1367 = vunpack.c.l.b16 %v117
    %v1368 = vunpack.c.h.b16 %v117
    %v1369 = vunpack.c.l.b16 %v118
    %v1370 = vunpack.c.h.b16 %v118
    %v1371 = vunpack.c.l.b16 %v119
    %v1372 = vunpack.c.h.b16 %v119
    %v1373 = vunpack.c.l.b16 %v120
    %v1374 = vunpack.c.h.b16 %v120
    %v1375 = vunpack.c.l.b16 %v121
    %v1376 = vunpack.c.h.b16 %v121
    %v1377 = vunpack.c.l.b16 %v122
    %v1378 = vunpack.c.h.b16 %v122
    %v1379 = vunpack.c.l.b16 %v123
    %v1380 = vunpack.c.h.b16 %v123
    %v1381 = vunpack.c.l.b16 %v124
    %v1382 = vunpack.c.h.b16 %v124
    %v1383 = vunpack.c.l.b16 %v125
    %v1384 = vunpack.c.h.b16 %v125
    %v1385 = vunpack.c.l.b16 %v126
    %v1386 = vunpack.c.h.b16 %v126
    %v1387 = vunpack.c.l.b16 %v127
    %v1388 = vunpack.c.h.b16 %v127
    %v1389 = vunpack.c.l.b16 %v128
    %v1390 = vunpack.c.h.b16 %v128
    %v1391 = vunpack.c.l.b16 %v129
    %v1392 = vunpack.c.h.b16 %v129
    %v1393 = vunpack.c.l.b16 %v130
    %v1394 = vunpack.c.h.b16 %v130
    %v1395 = vunpack.c.l.b16 %v131
    %v1396 = vunpack.c.h.b16 %v131
    %v1397 = vunpack.c.l.b16 %v132
    %v1398 = vunpack.c.h.b16 %v132
    %v1399 = vunpack.c.l.b16 %v133
    %v1400 = vunpack.c.h.b16 %v133
    %v1401 = vunpack.c.l.b16 %v134
    %v1402 = vunpack.c.h.b16 %v134
    %v1403 = vunpack.c.l.b16 %v135
    %v1404 = vunpack.c.h.b16 %v135
    %v1405 = vunpack.c.l.b16 %v136
    %v1406 = vunpack.c.h.b16 %v136
    %v1407 = vunpack.c.l.b16 %v137
    %v1408 = vunpack.c.h.b16 %v137
    %v1409 = vunpack.c.l.b16 %v138
    %v1410 = vunpack.c.h.b16 %v138
    %v1411 = vunpack.c.l.b16 %v139
    %v1412 = vunpack.c.h.b16 %v139
    %v1413 = vunpack.c.l.b16 %v140
    %v1414 = vunpack.c.h.b16 %v140
    %v1415 = vunpack.c.l.b16 %v141
    %v1416 = vunpack.c.h.b16 %v141
    %v1417 = vunpack.c.l.b16 %v142
    %v1418 = vunpack.c.h.b16 %v142
    %v1419 = vunpack.c.l.b16 %v143
    %v1420 = vunpack.c.h.b16 %v143
    %v1421 = vunpack.c.l.b16 %v144
    %v1422 = vunpack.c.h.b16 %v144
    %v1423 = vunpack.c.l.b16 %v145
    %v1424 = vunpack.c.h.b16 %v145
    %v1425 = vunpack.c.l.b16 %v146
    %v1426 = vunpack.c.h.b16 %v146
    %v1427 = vunpack.c.l.b16 %v147
    %v1428 = vunpack.c.h.b16 %v147
    %v1429 = vunpack.c.l.b16 %v148
    %v1430 = vunpack.c.h.b16 %v148
    %v1431 = vunpack.c.l.b16 %v149
    %v1432 = vunpack.c.h.b16 %v149
    %v1433 = vunpack.c.l.b16 %v150
    %v1434 = vunpack.c.h.b16 %v150
    %v1435 = vunpack.c.l.b16 %v151
    %v1436 = vunpack.c.h.b16 %v151
    %v1437 = vunpack.c.l.b16 %v152
    %v1438 = vunpack.c.h.b16 %v152
    %v1439 = vunpack.c.l.b16 %v153
    %v1440 = vunpack.c.h.b16 %v153
    %v1441 = vunpack.c.l.b16 %v154
    %v1442 = vunpack.c.h.b16 %v154
    %v1443 = vunpack.c.l.b16 %v155
    %v1444 = vunpack.c.h.b16 %v155
    %v1445 = vunpack.c.l.b16 %v156
    %v1446 = vunpack.c.h.b16 %v156
    %v1447 = vunpack.c.l.b16 %v157
    %v1448 = vunpack.c.h.b16 %v157
    %v1449 = vunpack.c.l.b16 %v158
    %v1450 = vunpack.c.h.b16 %v158
    %v1451 = vunpack.c.l.b16 %v159
    %v1452 = vunpack.c.h.b16 %v159
    %v1453 = vunpack.c.l.b16 %v160
    %v1454 = vunpack.c.h.b16 %v160
    %v1455 = vunpack.c.l.b16 %v161
    %v1456 = vunpack.c.h.b16 %v161
    %v1457 = vunpack.c.l.b16 %v162
    %v1458 = vunpack.c.h.b16 %v162
    %v1459 = vunpack.c.l.b16 %v163
    %v1460 = vunpack.c.h.b16 %v163
    %v1461 = vunpack.c.l.b16 %v164
    %v1462 = vunpack.c.h.b16 %v164
    %v1463 = vunpack.c.l.b16 %v165
    %v1464 = vunpack.c.h.b16 %v165
    %v1465 = vunpack.c.l.b16 %v166
    %v1466 = vunpack.c.h.b16 %v166
    %v1467 = vunpack.c.l.b16 %v167
    %v1468 = vunpack.c.h.b16 %v167
    %v1469 = vunpack.c.l.b16 %v168
    %v1470 = vunpack.c.h.b16 %v168
    %v1471 = vunpack.c.l.b16 %v169
    %v1472 = vunpack.c.h.b16 %v169
    %v1473 = vunpack.c.l.b16 %v170
    %v1474 = vunpack.c.h.b16 %v170
    %v1475 = vunpack.c.l.b16 %v171
    %v1476 = vunpack.c.h.b16 %v171
    %v1477 = vunpack.c.l.b16 %v172
    %v1478 = vunpack.c.h.b16 %v172
    %v1479 = vunpack.c.l.b16 %v173
    %v1480 = vunpack.c.h.b16 %v173
    %v1481 = vunpack.c.l.b16 %v174
    %v1482 = vunpack.c.h.b16 %v174
    %v1483 = vunpack.c.l.b16 %v175
    %v1484 = vunpack.c.h.b16 %v175
    %v1485 = vunpack.c.l.b16 %v176
    %v1486 = vunpack.c.h.b16 %v176
    %v1487 = vunpack.c.l.b16 %v177
    %v1488 = vunpack.c.h.b16 %v177
    %v1489 = vunpack.c.l.b16 %v178
    %v1490 = vunpack.c.h.b16 %v178
    %v1491 = vunpack.c.l.b16 %v179
    %v1492 = vunpack.c.h.b16 %v179
    %v1493 = vunpack.c.l.b16 %v180
    %v1494 = vunpack.c.h.b16 %v180
    %v1495 = vunpack.c.l.b16 %v181
    %v1496 = vunpack.c.h.b16 %v181
    %v1497 = vunpack.c.l.b16 %v182
    %v1498 = vunpack.c.h.b16 %v182
    %v1499 = vunpack.c.l.b16 %v183
    %v1500 = vunpack.c.h.b16 %v183
    %v1501 = vunpack.c.l.b16 %v184
    %v1502 = vunpack.c.h.b16 %v184
    %v1503 = vunpack.c.l.b16 %v185
    %v1504 = vunpack.c.h.b16 %v185
    %v1505 = vunpack.c.l.b16 %v186
    %v1506 = vunpack.c.h.b16 %v186
    %v1507 = vunpack.c.l.b16 %v187
    %v1508 = vunpack.c.h.b16 %v187
    %v1509 = vunpack.c.l.b16 %v188
    %v1510 = vunpack.c.h.b16 %v188
    %v1511 = vunpack.c.l.b16 %v189
    %v1512 = vunpack.c.h.b16 %v189
    %v1513 = vunpack.c.l.b16 %v190
    %v1514 = vunpack.c.h.b16 %v190
    %v1515 = vunpack.c.l.b16 %v191
    %v1516 = vunpack.c.h.b16 %v191
    %v1517 = vunpack.c.l.b16 %v192
    %v1518 = vunpack.c.h.b16 %v192
    %v1519 = vunpack.c.l.b16 %v193
    %v1520 = vunpack.c.h.b16 %v193
    %v1521 = vunpack.c.l.b16 %v194
    %v1522 = vunpack.c.h.b16 %v194
    %v1523 = vunpack.c.l.b16 %v195
    %v1524 = vunpack.c.h.b16 %v195
    %v1525 = vunpack.c.l.b16 %v196
    %v1526 = vunpack.c.h.b16 %v196
    %v1527 = vunpack.c.l.b16 %v197
    %v1528 = vunpack.c.h.b16 %v197
    %v1529 = vunpack.c.l.b16 %v198
    %v1530 = vunpack.c.h.b16 %v198
    %v1531 = vunpack.c.l.b16 %v199
    %v1532 = vunpack.c.h.b16 %v199
    %v1533 = vunpack.c.l.b16 %v200
    %v1534 = vunpack.c.h.b16 %v200
    %v1535 = vunpack.c.l.b16 %v201
    %v1536 = vunpack.c.h.b16 %v201
    %v1537 = vunpack.c.l.b16 %v202
    %v1538 = vunpack.c.h.b16 %v202
    %v1539 = vunpack.c.l.b16 %v203
    %v1540 = vunpack.c.h.b16 %v203
    %v1541 = vunpack.c.l.b16 %v204
    %v1542 = vunpack.c.h.b16 %v204
    %v1543 = vunpack.c.l.b16 %v205
    %v1544 = vunpack.c.h.b16 %v205
    %v1545 = vunpack.c.l.b16 %v206
    %v1546 = vunpack.c.h.b16 %v206
    %v1547 = vunpack.c.l.b16 %v207
    %v1548 = vunpack.c.h.b16 %v207
    %v1549 = vunpack.c.l.b16 %v208
    %v1550 = vunpack.c.h.b16 %v208
    %v1551 = vunpack.c.l.b16 %v209
    %v1552 = vunpack.c.h.b16 %v209
    %v1553 = vunpack.c.l.b16 %v210
    %v1554 = vunpack.c.h.b16 %v210
    %v1555 = vunpack.c.l.b16 %v211
    %v1556 = vunpack.c.h.b16 %v211
    %v1557 = vunpack.c.l.b16 %v212
    %v1558 = vunpack.c.h.b16 %v212
    %v1559 = vunpack.c.l.b16 %v213
    %v1560 = vunpack.c.h.b16 %v213
    %v1561 = vunpack.c.l.b16 %v214
    %v1562 = vunpack.c.h.b16 %v214
    %v1563 = vunpack.c.l.b16 %v215
    %v1564 = vunpack.c.h.b16 %v215
    %v1565 = vunpack.c.l.b16 %v216
    %v1566 = vunpack.c.h.b16 %v216
    %v1567 = vunpack.c.l.b16 %v217
    %v1568 = vunpack.c.h.b16 %v217
    %v1569 = vunpack.c.l.b16 %v218
    %v1570 = vunpack.c.h.b16 %v218
    %v1571 = vunpack.c.l.b16 %v219
    %v1572 = vunpack.c.h.b16 %v219
    %v1573 = vunpack.c.l.b16 %v220
    %v1574 = vunpack.c.h.b16 %v220
    %v1575 = vunpack.c.l.b16 %v221
    %v1576 = vunpack.c.h.b16 %v221
    %v1577 = vunpack.c.l.b16 %v222
    %v1578 = vunpack.c.h.b16 %v222
    %v1579 = vunpack.c.l.b16 %v223
    %v1580 = vunpack.c.h.b16 %v223
    %v1581 = vunpack.c.l.b16 %v224
    %v1582 = vunpack.c.h.b16 %v224
    %v1583 = vunpack.c.l.b16 %v225
    %v1584 = vunpack.c.h.b16 %v225
    %v1585 = vunpack.c.l.b16 %v226
    %v1586 = vunpack.c.h.b16 %v226
    %v1587 = vunpack.c.l.b16 %v227
    %v1588 = vunpack.c.h.b16 %v227
    %v1589 = vunpack.c.l.b16 %v228
    %v1590 = vunpack.c.h.b16 %v228
    %v1591 = vunpack.c.l.b16 %v229
    %v1592 = vunpack.c.h.b16 %v229
    %v1593 = vunpack.c.l.b16 %v230
    %v1594 = vunpack.c.h.b16 %v230
    %v1595 = vunpack.c.l.b16 %v231
    %v1596 = vunpack.c.h.b16 %v231
    %v1597 = vunpack.c.l.b16 %v232
    %v1598 = vunpack.c.h.b16 %v232
    %v1599 = vunpack.c.l.b16 %v233
    %v1600 = vunpack.c.h.b16 %v233
    %v1601 = vunpack.c.l.b16 %v234
    %v1602 = vunpack.c.h.b16 %v234
    %v1603 = vunpack.c.l.b16 %v235
    %v1604 = vunpack.c.h.b16 %v235
    %v1605 = vunpack.c.l.b16 %v236
    %v1606 = vunpack.c.h.b16 %v236
    %v1607 = vunpack.c.l.b16 %v237
    %v1608 = vunpack.c.h.b16 %v237
    %v1609 = vunpack.c.l.b16 %v238
    %v1610 = vunpack.c.h.b16 %v238
    %v1611 = vunpack.c.l.b16 %v239
    %v1612 = vunpack.c.h.b16 %v239
    %v1613 = vunpack.c.l.b16 %v240
    %v1614 = vunpack.c.h.b16 %v240
    %v1615 = vunpack.c.l.b16 %v241
    %v1616 = vunpack.c.h.b16 %v241
    %v1617 = vunpack.c.l.b16 %v242
    %v1618 = vunpack.c.h.b16 %v242
    %v1619 = vunpack.c.l.b16 %v243
    %v1620 = vunpack.c.h.b16 %v243
    %v1621 = vunpack.c.l.b16 %v244
    %v1622 = vunpack.c.h.b16 %v244
    %v1623 = vunpack.c.l.b16 %v245
    %v1624 = vunpack.c.h.b16 %v245
    %v1625 = vunpack.c.l.b16 %v246
    %v1626 = vunpack.c.h.b16 %v246
    %v1627 = vunpack.c.l.b16 %v247
    %v1628 = vunpack.c.h.b16 %v247
    %v1629 = vunpack.c.l.b16 %v248
    %v1630 = vunpack.c.h.b16 %v248
    %v1631 = vunpack.c.l.b16 %v249
    %v1632 = vunpack.c.h.b16 %v249
    %v1633 = vunpack.c.l.b16 %v250
    %v1634 = vunpack.c.h.b16 %v250
    %v1635 = vunpack.c.l.b16 %v251
    %v1636 = vunpack.c.h.b16 %v251
    %v1637 = vunpack.c.l.b16 %v252
    %v1638 = vunpack.c.h.b16 %v252
    %v1639 = vunpack.c.l.b16 %v253
    %v1640 = vunpack.c.h.b16 %v253
    %v1641 = vunpack.c.l.b16 %v254
    %v1642 = vunpack.c.h.b16 %v254
    %v1643 = vunpack.c.l.b16 %v255
    %v1644 = vunpack.c.h.b16 %v255
    %v1645 = vunpack.c.l.b16 %v256
    %v1646 = vunpack.c.h.b16 %v256
    %v1647 = vunpack.c.l.b16 %v257
    %v1648 = vunpack.c.h.b16 %v257
    %v1649 = vunpack.c.l.b16 %v258
    %v1650 = vunpack.c.h.b16 %v258
    %v1651 = vunpack.c.l.b16 %v259
    %v1652 = vunpack.c.h.b16 %v259
    %v1653 = vunpack.c.l.b16 %v260
    %v1654 = vunpack.c.h.b16 %v260
    %v1655 = vunpack.c.l.b16 %v261
    %v1656 = vunpack.c.h.b16 %v261
    %v1657 = vunpack.c.l.b16 %v262
    %v1658 = vunpack.c.h.b16 %v262
    %v1659 = vunpack.c.l.b16 %v263
    %v1660 = vunpack.c.h.b16 %v263
    %v1661 = vunpack.c.l.b16 %v264
    %v1662 = vunpack.c.h.b16 %v264
    %v1663 = vunpack.c.l.b16 %v265
    %v1664 = vunpack.c.h.b16 %v265
    %v1665 = vunpack.c.l.b16 %v266
    %v1666 = vunpack.c.h.b16 %v266
    %v1667 = vunpack.c.l.b16 %v267
    %v1668 = vunpack.c.h.b16 %v267
    %v1669 = vunpack.c.l.b16 %v268
    %v1670 = vunpack.c.h.b16 %v268
    %v1671 = vunpack.c.l.b16 %v269
    %v1672 = vunpack.c.h.b16 %v269
    %v1673 = vunpack.c.l.b16 %v270
    %v1674 = vunpack.c.h.b16 %v270
    %v1675 = vunpack.c.l.b16 %v271
    %v1676 = vunpack.c.h.b16 %v271
    %v1677 = vunpack.c.l.b16 %v272
    %v1678 = vunpack.c.h.b16 %v272
    %v1679 = vunpack.c.l.b16 %v273
    %v1680 = vunpack.c.h.b16 %v273
    %v1681 = vunpack.c.l.b16 %v274
    %v1682 = vunpack.c.h.b16 %v274
    %v1683 = vunpack.c.l.b16 %v275
    %v1684 = vunpack.c.h.b16 %v275
    %v1685 = vunpack.c.l.b16 %v276
    %v1686 = vunpack.c.h.b16 %v276
    %v1687 = vunpack.c.l.b16 %v277
    %v1688 = vunpack.c.h.b16 %v277
    %v1689 = vunpack.c.l.b16 %v278
    %v1690 = vunpack.c.h.b16 %v278
    %v1691 = vunpack.c.l.b16 %v279
    %v1692 = vunpack.c.h.b16 %v279
    %v1693 = vunpack.c.l.b16 %v280
    %v1694 = vunpack.c.h.b16 %v280
    %v1695 = vunpack.c.l.b16 %v281
    %v1696 = vunpack.c.h.b16 %v281
    %v1697 = vunpack.c.l.b16 %v282
    %v1698 = vunpack.c.h.b16 %v282
    %v1699 = vunpack.c.l.b16 %v283
    %v1700 = vunpack.c.h.b16 %v283
    %v1701 = vunpack.c.l.b16 %v284
    %v1702 = vunpack.c.h.b16 %v284
    %v1703 = vunpack.c.l.b16 %v285
    %v1704 = vunpack.c.h.b16 %v285
    %v1705 = vunpack.c.l.b16 %v286
    %v1706 = vunpack.c.h.b16 %v286
    %v1707 = vunpack.c.l.b16 %v287
    %v1708 = vunpack.c.h.b16 %v287
    %v1709 = vunpack.c.l.b16 %v288
    %v1710 = vunpack.c.h.b16 %v288
    %v1711 = vunpack.c.l.b16 %v289
    %v1712 = vunpack.c.h.b16 %v289
    %v1713 = vunpack.c.l.b16 %v290
    %v1714 = vunpack.c.h.b16 %v290
    %v1715 = vunpack.c.l.b16 %v291
    %v1716 = vunpack.c.h.b16 %v291
    %v1717 = vunpack.c.l.b16 %v292
    %v1718 = vunpack.c.h.b16 %v292
    %v1719 = vunpack.c.l.b16 %v293
    %v1720 = vunpack.c.h.b16 %v293
    %v1721 = vunpack.c.l.b16 %v294
    %v1722 = vunpack.c.h.b16 %v294
    %v1723 = vunpack.c.l.b16 %v295
    %v1724 = vunpack.c.h.b16 %v295
    %v1725 = vunpack.c.l.b16 %v296
    %v1726 = vunpack.c.h.b16 %v296
    %v1727 = vunpack.c.l.b16 %v297
    %v1728 = vunpack.c.h.b16 %v297
    %v1729 = vunpack.c.l.b16 %v298
    %v1730 = vunpack.c.h.b16 %v298
    %v1731 = vunpack.c.l.b16 %v299
    %v1732 = vunpack.c.h.b16 %v299
    %v1733 = vunpack.c.l.b16 %v300
    %v1734 = vunpack.c.h.b16 %v300
    %v1735 = vunpack.c.l.b16 %v301
    %v1736 = vunpack.c.h.b16 %v301
    %v1737 = vunpack.c.l.b16 %v302
    %v1738 = vunpack.c.h.b16 %v302
    %v1739 = vunpack.c.l.b16 %v303
    %v1740 = vunpack.c.h.b16 %v303
    %v1741 = vunpack.c.l.b16 %v304
    %v1742 = vunpack.c.h.b16 %v304
    %v1743 = vunpack.c.l.b16 %v305
    %v1744 = vunpack.c.h.b16 %v305
    %v1745 = vunpack.c.l.b16 %v306
    %v1746 = vunpack.c.h.b16 %v306
    %v1747 = vunpack.c.l.b16 %v307
    %v1748 = vunpack.c.h.b16 %v307
    %v1749 = vunpack.c.l.b16 %v308
    %v1750 = vunpack.c.h.b16 %v308
    %v1751 = vunpack.c.l.b16 %v309
    %v1752 = vunpack.c.h.b16 %v309
    %v1753 = vunpack.c.l.b16 %v310
    %v1754 = vunpack.c.h.b16 %v310
    %v1755 = vunpack.c.l.b16 %v311
    %v1756 = vunpack.c.h.b16 %v311
    %v1757 = vunpack.c.l.b16 %v312
    %v1758 = vunpack.c.h.b16 %v312
    %v1759 = vunpack.c.l.b16 %v313
    %v1760 = vunpack.c.h.b16 %v313
    %v1761 = vunpack.c.l.b16 %v314
    %v1762 = vunpack.c.h.b16 %v314
    %v1763 = vunpack.c.l.b16 %v315
    %v1764 = vunpack.c.h.b16 %v315
    %v1765 = vunpack.c.l.b16 %v316
    %v1766 = vunpack.c.h.b16 %v316
    %v1767 = vunpack.c.l.b16 %v317
    %v1768 = vunpack.c.h.b16 %v317
    %v1769 = vunpack.c.l.b16 %v318
    %v1770 = vunpack.c.h.b16 %v318
    %v1771 = vunpack.c.l.b16 %v319
    %v1772 = vunpack.c.h.b16 %v319
    %v1773 = vunpack.c.l.b16 %v320
    %v1774 = vunpack.c.h.b16 %v320
    %v1775 = vunpack.c.l.b16 %v321
    %v1776 = vunpack.c.h.b16 %v321
    %v1777 = vunpack.c.l.b16 %v322
    %v1778 = vunpack.c.h.b16 %v322
    %v1779 = vunpack.c.l.b16 %v323
    %v1780 = vunpack.c.h.b16 %v323
    %v1781 = vunpack.c.l.b16 %v324
    %v1782 = vunpack.c.h.b16 %v324
    %v1783 = vunpack.c.l.b16 %v325
    %v1784 = vunpack.c.h.b16 %v325
    %v1785 = vunpack.c.l.b16 %v326
    %v1786 = vunpack.c.h.b16 %v326
    %v1787 = vunpack.c.l.b16 %v327
    %v1788 = vunpack.c.h.b16 %v327
    %v1789 = vunpack.c.l.b16 %v328
    %v1790 = vunpack.c.h.b16 %v328
    %v1791 = vunpack.c.l.b16 %v329
    %v1792 = vunpack.c.h.b16 %v329
    %v1793 = vunpack.c.l.b16 %v330
    %v1794 = vunpack.c.h.b16 %v330
    %v1795 = vunpack.c.l.b16 %v331
    %v1796 = vunpack.c.h.b16 %v331
    %v1797 = vunpack.c.l.b16 %v332
    %v1798 = vunpack.c.h.b16 %v332
    %v1799 = vunpack.c.l.b16 %v333
    %v1800 = vunpack.c.h.b16 %v333
    %v1801 = vunpack.c.l.b16 %v334
    %v1802 = vunpack.c.h.b16 %v334
    %v1803 = vunpack.c.l.b16 %v335
    %v1804 = vunpack.c.h.b16 %v335
    %v1805 = vunpack.c.l.b16 %v336
    %v1806 = vunpack.c.h.b16 %v336
    %v1807 = vunpack.c.l.b16 %v337
    %v1808 = vunpack.c.h.b16 %v337
    %v1809 = vunpack.c.l.b16 %v338
    %v1810 = vunpack.c.h.b16 %v338
    %v1811 = vunpack.c.l.b16 %v339
    %v1812 = vunpack.c.h.b16 %v339
    %v1813 = vunpack.c.l.b16 %v340
    %v1814 = vunpack.c.h.b16 %v340
    %v1815 = vunpack.c.l.b16 %v341
    %v1816 = vunpack.c.h.b16 %v341
    %v1817 = vunpack.c.l.b16 %v342
    %v1818 = vunpack.c.h.b16 %v342
    %v1819 = vunpack.c.l.b16 %v343
    %v1820 = vunpack.c.h.b16 %v343
    %v1821 = vunpack.c.l.b16 %v344
    %v1822 = vunpack.c.h.b16 %v344
    %v1823 = vunpack.c.l.b16 %v345
    %v1824 = vunpack.c.h.b16 %v345
    %v1825 = vunpack.c.l.b16 %v346
    %v1826 = vunpack.c.h.b16 %v346
    %v1827 = vunpack.c.l.b16 %v347
    %v1828 = vunpack.c.h.b16 %v347
    %v1829 = vunpack.c.l.b16 %v348
    %v1830 = vunpack.c.h.b16 %v348
    %v1831 = vunpack.c.l.b16 %v349
    %v1832 = vunpack.c.h.b16 %v349
    %v1833 = vunpack.c.l.b16 %v350
    %v1834 = vunpack.c.h.b16 %v350
    %v1835 = vunpack.c.l.b16 %v351
    %v1836 = vunpack.c.h.b16 %v351
    %v1837 = vunpack.c.l.b16 %v352
    %v1838 = vunpack.c.h.b16 %v352
    %v1839 = vunpack.c.l.b16 %v353
    %v1840 = vunpack.c.h.b16 %v353
    %v1841 = vunpack.c.l.b16 %v354
    %v1842 = vunpack.c.h.b16 %v354
    %v1843 = vunpack.c.l.b16 %v355
    %v1844 = vunpack.c.h.b16 %v355
    %v1845 = vunpack.c.l.b16 %v356
    %v1846 = vunpack.c.h.b16 %v356
    %v1847 = vunpack.c.l.b16 %v357
    %v1848 = vunpack.c.h.b16 %v357
    %v1849 = vunpack.c.l.b16 %v358
    %v1850 = vunpack.c.h.b16 %v358
    %v1851 = vunpack.c.l.b16 %v359
    %v1852 = vunpack.c.h.b16 %v359
    %v1853 = vunpack.c.l.b16 %v360
    %v1854 = vunpack.c.h.b16 %v360
    %v1855 = vunpack.c.l.b16 %v361
    %v1856 = vunpack.c.h.b16 %v361
    %v1857 = vunpack.c.l.b16 %v362
    %v1858 = vunpack.c.h.b16 %v362
    %v1859 = vunpack.c.l.b16 %v363
    %v1860 = vunpack.c.h.b16 %v363
    %v1861 = vunpack.c.l.b16 %v364
    %v1862 = vunpack.c.h.b16 %v364
    %v1863 = vunpack.c.l.b16 %v365
    %v1864 = vunpack.c.h.b16 %v365
    %v1865 = vunpack.c.l.b16 %v366
    %v1866 = vunpack.c.h.b16 %v366
    %v1867 = vunpack.c.l.b16 %v367
    %v1868 = vunpack.c.h.b16 %v367
    %v1869 = vunpack.c.l.b16 %v368
    %v1870 = vunpack.c.h.b16 %v368
    %v1871 = vunpack.c.l.b16 %v369
    %v1872 = vunpack.c.h.b16 %v369
    %v1873 = vunpack.c.l.b16 %v370
    %v1874 = vunpack.c.h.b16 %v370
    %v1875 = vunpack.c.l.b16 %v371
    %v1876 = vunpack.c.h.b16 %v371
    %v1877 = vunpack.c.l.b16 %v372
    %v1878 = vunpack.c.h.b16 %v372
    %v1879 = vunpack.c.l.b16 %v373
    %v1880 = vunpack.c.h.b16 %v373
    %v1881 = vunpack.c.l.b16 %v374
    %v1882 = vunpack.c.h.b16 %v374
    %v1883 = vunpack.c.l.b16 %v375
    %v1884 = vunpack.c.h.b16 %v375
    %v1885 = vunpack.c.l.b16 %v376
    %v1886 = vunpack.c.h.b16 %v376
    %v1887 = vunpack.c.l.b16 %v377
    %v1888 = vunpack.c.h.b16 %v377
    %v1889 = vunpack.c.l.b16 %v378
    %v1890 = vunpack.c.h.b16 %v378
    %v1891 = vunpack.c.l.b16 %v379
    %v1892 = vunpack.c.h.b16 %v379
    %v1893 = vunpack.c.l.b16 %v380
    %v1894 = vunpack.c.h.b16 %v380
    %v1895 = vunpack.c.l.b16 %v381
    %v1896 = vunpack.c.h.b16 %v381
    %v1897 = vunpack.c.l.b16 %v382
    %v1898 = vunpack.c.h.b16 %v382
    %v1899 = vunpack.c.l.b16 %v383
    %v1900 = vunpack.c.h.b16 %v383
    %v1901 = vunpack.c.l.b16 %v384
    %v1902 = vunpack.c.h.b16 %v384
    %v1903 = vunpack.c.l.b16 %v385
    %v1904 = vunpack.c.h.b16 %v385
    %v1905 = vunpack.c.l.b16 %v386
    %v1906 = vunpack.c.h.b16 %v386
    %v1907 = vunpack.c.l.b16 %v387
    %v1908 = vunpack.c.h.b16 %v387
    %v1909 = vunpack.c.l.b16 %v388
    %v1910 = vunpack.c.h.b16 %v388
    %v1911 = vunpack.c.l.b16 %v389
    %v1912 = vunpack.c.h.b16 %v389
    %v1913 = vunpack.c.l.b16 %v390
    %v1914 = vunpack.c.h.b16 %v390
    %v1915 = vunpack.c.l.b16 %v391
    %v1916 = vunpack.c.h.b16 %v391
    %v1917 = vunpack.c.l.b16 %v392
    %v1918 = vunpack.c.h.b16 %v392
    %v1919 = vunpack.c.l.b16 %v393
    %v1920 = vunpack.c.h.b16 %v393
    %v1921 = vunpack.c.l.b16 %v394
    %v1922 = vunpack.c.h.b16 %v394
    %v1923 = vunpack.c.l.b16 %v395
    %v1924 = vunpack.c.h.b16 %v395
    %v1925 = vunpack.c.l.b16 %v396
    %v1926 = vunpack.c.h.b16 %v396
    %v1927 = vunpack.c.l.b16 %v397
    %v1928 = vunpack.c.h.b16 %v397
    %v1929 = vunpack.c.l.b16 %v398
    %v1930 = vunpack.c.h.b16 %v398
    %v1931 = vunpack.c.l.b16 %v399
    %v1932 = vunpack.c.h.b16 %v399
    %v1933 = vunpack.c.l.b16 %v400
    %v1934 = vunpack.c.h.b16 %v400
    %v1935 = vunpack.c.l.b16 %v401
    %v1936 = vunpack.c.h.b16 %v401
    %v1937 = vunpack.c.l.b16 %v402
    %v1938 = vunpack.c.h.b16 %v402
    %v1939 = vunpack.c.l.b16 %v403
    %v1940 = vunpack.c.h.b16 %v403
    %v1941 = vunpack.c.l.b16 %v404
    %v1942 = vunpack.c.h.b16 %v404
    %v1943 = vunpack.c.l.b16 %v405
    %v1944 = vunpack.c.h.b16 %v405
    %v1945 = vunpack.c.l.b16 %v406
    %v1946 = vunpack.c.h.b16 %v406
    %v1947 = vunpack.c.l.b16 %v407
    %v1948 = vunpack.c.h.b16 %v407
    %v1949 = vunpack.c.l.b16 %v408
    %v1950 = vunpack.c.h.b16 %v408
    %v1951 = vunpack.c.l.b16 %v409
    %v1952 = vunpack.c.h.b16 %v409
    %v1953 = vunpack.c.l.b16 %v410
    %v1954 = vunpack.c.h.b16 %v410
    %v1955 = vunpack.c.l.b16 %v411
    %v1956 = vunpack.c.h.b16 %v411
    %v1957 = vunpack.c.l.b16 %v412
    %v1958 = vunpack.c.h.b16 %v412
    %v1959 = vunpack.c.l.b16 %v413
    %v1960 = vunpack.c.h.b16 %v413
    %v1961 = vunpack.c.l.b16 %v414
    %v1962 = vunpack.c.h.b16 %v414
    %v1963 = vunpack.c.l.b16 %v415
    %v1964 = vunpack.c.h.b16 %v415
    %v1965 = vunpack.c.l.b16 %v416
    %v1966 = vunpack.c.h.b16 %v416
    %v1967 = vunpack.c.l.b16 %v417
    %v1968 = vunpack.c.h.b16 %v417
    %v1969 = vunpack.c.l.b16 %v418
    %v1970 = vunpack.c.h.b16 %v418
    %v1971 = vunpack.c.l.b16 %v419
    %v1972 = vunpack.c.h.b16 %v419
    %v1973 = vunpack.c.l.b16 %v420
    %v1974 = vunpack.c.h.b16 %v420
    %v1975 = vunpack.c.l.b16 %v421
    %v1976 = vunpack.c.h.b16 %v421
    %v1977 = vunpack.c.l.b16 %v422
    %v1978 = vunpack.c.h.b16 %v422
    %v1979 = vunpack.c.l.b16 %v423
    %v1980 = vunpack.c.h.b16 %v423
    %v1981 = vunpack.c.l.b16 %v424
    %v1982 = vunpack.c.h.b16 %v424
    %v1983 = vunpack.c.l.b16 %v425
    %v1984 = vunpack.c.h.b16 %v425
    %v1985 = vunpack.c.l.b16 %v426
    %v1986 = vunpack.c.h.b16 %v426
    %v1987 = vunpack.c.l.b16 %v427
    %v1988 = vunpack.c.h.b16 %v427
    %v1989 = vunpack.c.l.b16 %v428
    %v1990 = vunpack.c.h.b16 %v428
    %v1991 = vunpack.c.l.b16 %v429
    %v1992 = vunpack.c.h.b16 %v429
    %v1993 = vunpack.c.l.b16 %v430
    %v1994 = vunpack.c.h.b16 %v430
    %v1995 = vunpack.c.l.b16 %v431
    %v1996 = vunpack.c.h.b16 %v431
    %v1997 = vunpack.c.l.b16 %v432
    %v1998 = vunpack.c.h.b16 %v432
    %v1999 = vunpack.c.l.b16 %v433
    %v2000 = vunpack.c.h.b16 %v433
    %v2001 = vunpack.c.l.b16 %v434
    %v2002 = vunpack.c.h.b16 %v434
    %v2003 = vunpack.c.l.b16 %v435
    %v2004 = vunpack.c.h.b16 %v435
    %v2005 = vunpack.c.l.b16 %v436
    %v2006 = vunpack.c.h.b16 %v436
    %v2007 = vunpack.c.l.b16 %v437
    %v2008 = vunpack.c.h.b16 %v437
    %v2009 = vunpack.c.l.b16 %v438
    %v2010 = vunpack.c.h.b16 %v438
    %v2011 = vunpack.c.l.b16 %v439
    %v2012 = vunpack.c.h.b16 %v439
    %v2013 = vunpack.c.l.b16 %v440
    %v2014 = vunpack.c.h.b16 %v440
    %v2015 = vunpack.c.l.b16 %v441
    %v2016 = vunpack.c.h.b16 %v441
    %v2017 = vunpack.c.l.b16 %v442
    %v2018 = vunpack.c.h.b16 %v442
    %v2019 = vunpack.c.l.b16 %v443
    %v2020 = vunpack.c.h.b16 %v443
    %v2021 = vunpack.c.l.b16 %v444
    %v2022 = vunpack.c.h.b16 %v444
    %v2023 = vunpack.c.l.b16 %v445
    %v2024 = vunpack.c.h.b16 %v445
    %v2025 = vunpack.c.l.b16 %v446
    %v2026 = vunpack.c.h.b16 %v446
    %v2027 = vunpack.c.l.b16 %v447
    %v2028 = vunpack.c.h.b16 %v447
    %v2029 = vunpack.c.l.b16 %v448
    %v2030 = vunpack.c.h.b16 %v448
    %v2031 = vunpack.c.l.b16 %v449
    %v2032 = vunpack.c.h.b16 %v449
    %v2033 = vunpack.c.l.b16 %v450
    %v2034 = vunpack.c.h.b16 %v450
    %v2035 = vunpack.c.l.b16 %v451
    %v2036 = vunpack.c.h.b16 %v451
    %v2037 = vunpack.c.l.b16 %v452
    %v2038 = vunpack.c.h.b16 %v452
    %v2039 = vunpack.c.l.b16 %v453
    %v2040 = vunpack.c.h.b16 %v453
    %v2041 = vunpack.c.l.b16 %v454
    %v2042 = vunpack.c.h.b16 %v454
    %v2043 = vunpack.c.l.b16 %v455
    %v2044 = vunpack.c.h.b16 %v455
    %v2045 = vunpack.c.l.b16 %v456
    %v2046 = vunpack.c.h.b16 %v456
    %v2047 = vunpack.c.l.b16 %v457
    %v2048 = vunpack.c.h.b16 %v457
    %v2049 = vunpack.c.l.b16 %v458
    %v2050 = vunpack.c.h.b16 %v458
    %v2051 = vunpack.c.l.b16 %v459
    %v2052 = vunpack.c.h.b16 %v459
    %v2053 = vunpack.c.l.b16 %v460
    %v2054 = vunpack.c.h.b16 %v460
    %v2055 = vunpack.c.l.b16 %v461
    %v2056 = vunpack.c.h.b16 %v461
    %v2057 = vunpack.c.l.b16 %v462
    %v2058 = vunpack.c.h.b16 %v462
    %v2059 = vunpack.c.l.b16 %v463
    %v2060 = vunpack.c.h.b16 %v463
    %v2061 = vunpack.c.l.b16 %v464
    %v2062 = vunpack.c.h.b16 %v464
    %v2063 = vunpack.c.l.b16 %v465
    %v2064 = vunpack.c.h.b16 %v465
    %v2065 = vunpack.c.l.b16 %v466
    %v2066 = vunpack.c.h.b16 %v466
    %v2067 = vunpack.c.l.b16 %v467
    %v2068 = vunpack.c.h.b16 %v467
    %v2069 = vunpack.c.l.b16 %v468
    %v2070 = vunpack.c.h.b16 %v468
    %v2071 = vunpack.c.l.b16 %v469
    %v2072 = vunpack.c.h.b16 %v469
    %v2073 = vunpack.c.l.b16 %v470
    %v2074 = vunpack.c.h.b16 %v470
    %v2075 = vunpack.c.l.b16 %v471
    %v2076 = vunpack.c.h.b16 %v471
    %v2077 = vunpack.c.l.b16 %v472
    %v2078 = vunpack.c.h.b16 %v472
    %v2079 = vunpack.c.l.b16 %v473
    %v2080 = vunpack.c.h.b16 %v473
    %v2081 = vunpack.c.l.b16 %v474
    %v2082 = vunpack.c.h.b16 %v474
    %v2083 = vunpack.c.l.b16 %v475
    %v2084 = vunpack.c.h.b16 %v475
    %v2085 = vunpack.c.l.b16 %v476
    %v2086 = vunpack.c.h.b16 %v476
    %v2087 = vunpack.c.l.b16 %v477
    %v2088 = vunpack.c.h.b16 %v477
    %v2089 = vunpack.c.l.b16 %v478
    %v2090 = vunpack.c.h.b16 %v478
    %v2091 = vunpack.c.l.b16 %v479
    %v2092 = vunpack.c.h.b16 %v479
    %v2093 = vunpack.c.l.b16 %v480
    %v2094 = vunpack.c.h.b16 %v480
    %v2095 = vunpack.c.l.b16 %v481
    %v2096 = vunpack.c.h.b16 %v481
    %v2097 = vunpack.c.l.b16 %v482
    %v2098 = vunpack.c.h.b16 %v482
    %v2099 = vunpack.c.l.b16 %v483
    %v2100 = vunpack.c.h.b16 %v483
    %v2101 = vunpack.c.l.b16 %v484
    %v2102 = vunpack.c.h.b16 %v484
    %v2103 = vunpack.c.l.b16 %v485
    %v2104 = vunpack.c.h.b16 %v485
    %v2105 = vunpack.c.l.b16 %v486
    %v2106 = vunpack.c.h.b16 %v486
    %v2107 = vunpack.c.l.b16 %v487
    %v2108 = vunpack.c.h.b16 %v487
    %v2109 = vunpack.c.l.b16 %v488
    %v2110 = vunpack.c.h.b16 %v488
    %v2111 = vunpack.c.l.b16 %v489
    %v2112 = vunpack.c.h.b16 %v489
    %v2113 = vunpack.c.l.b16 %v490
    %v2114 = vunpack.c.h.b16 %v490
    %v2115 = vunpack.c.l.b16 %v491
    %v2116 = vunpack.c.h.b16 %v491
    %v2117 = vunpack.c.l.b16 %v492
    %v2118 = vunpack.c.h.b16 %v492
    %v2119 = vunpack.c.l.b16 %v493
    %v2120 = vunpack.c.h.b16 %v493
    %v2121 = vunpack.c.l.b16 %v494
    %v2122 = vunpack.c.h.b16 %v494
    %v2123 = vunpack.c.l.b16 %v495
    %v2124 = vunpack.c.h.b16 %v495
    %v2125 = vunpack.c.l.b16 %v496
    %v2126 = vunpack.c.h.b16 %v496
    %v2127 = vunpack.c.l.b16 %v497
    %v2128 = vunpack.c.h.b16 %v497
    %v2129 = vunpack.c.l.b16 %v498
    %v2130 = vunpack.c.h.b16 %v498
    %v2131 = vunpack.c.l.b16 %v499
    %v2132 = vunpack.c.h.b16 %v499
    %v2133 = vunpack.c.l.b16 %v500
    %v2134 = vunpack.c.h.b16 %v500
    %v2135 = vunpack.c.l.b16 %v501
    %v2136 = vunpack.c.h.b16 %v501
    %v2137 = vunpack.c.l.b16 %v502
    %v2138 = vunpack.c.h.b16 %v502
    %v2139 = vunpack.c.l.b16 %v503
    %v2140 = vunpack.c.h.b16 %v503
    %v2141 = vunpack.c.l.b16 %v504
    %v2142 = vunpack.c.h.b16 %v504
    %v2143 = vunpack.c.l.b16 %v505
    %v2144 = vunpack.c.h.b16 %v505
    %v2145 = vunpack.c.l.b16 %v506
    %v2146 = vunpack.c.h.b16 %v506
    %v2147 = vunpack.c.l.b16 %v507
    %v2148 = vunpack.c.h.b16 %v507
    %v2149 = vunpack.c.l.b16 %v508
    %v2150 = vunpack.c.h.b16 %v508
    %v2151 = vunpack.c.l.b16 %v509
    %v2152 = vunpack.c.h.b16 %v509
    %v2153 = vunpack.c.l.b16 %v510
    %v2154 = vunpack.c.h.b16 %v510
    %v2155 = vunpack.c.l.b16 %v511
    %v2156 = vunpack.c.h.b16 %v511
    %v2157 = vunpack.c.l.b16 %v512
    %v2158 = vunpack.c.h.b16 %v512
    %v2159 = vunpack.c.l.b16 %v513
    %v2160 = vunpack.c.h.b16 %v513
    %v2161 = vunpack.c.l.b16 %v514
    %v2162 = vunpack.c.h.b16 %v514
    %v2163 = vunpack.c.l.b16 %v515
    %v2164 = vunpack.c.h.b16 %v515
    %v2165 = vunpack.c.l.b16 %v516
    %v2166 = vunpack.c.h.b16 %v516
    %v2167 = vunpack.c.l.b16 %v517
    %v2168 = vunpack.c.h.b16 %v517
    %v2169 = vunpack.c.l.b16 %v518
    %v2170 = vunpack.c.h.b16 %v518
    %v2171 = vunpack.c.l.b16 %v519
    %v2172 = vunpack.c.h.b16 %v519
    %v2173 = vunpack.c.l.b16 %v520
    %v2174 = vunpack.c.h.b16 %v520
    %v2175 = vunpack.c.l.b16 %v521
    %v2176 = vunpack.c.h.b16 %v521
    %v2177 = vunpack.c.l.b16 %v522
    %v2178 = vunpack.c.h.b16 %v522
    %v2179 = vunpack.c.l.b16 %v523
    %v2180 = vunpack.c.h.b16 %v523
    %v2181 = vunpack.c.l.b16 %v524
    %v2182 = vunpack.c.h.b16 %v524
    %v2183 = vunpack.c.l.b16 %v525
    %v2184 = vunpack.c.h.b16 %v525
    %v2185 = vunpack.c.l.b16 %v526
    %v2186 = vunpack.c.h.b16 %v526
    %v2187 = vunpack.c.l.b16 %v527
    %v2188 = vunpack.c.h.b16 %v527
    %v2189 = vunpack.c.l.b16 %v528
    %v2190 = vunpack.c.h.b16 %v528
    %v2191 = vunpack.c.l.b16 %v529
    %v2192 = vunpack.c.h.b16 %v529
    %v2193 = vunpack.c.l.b16 %v530
    %v2194 = vunpack.c.h.b16 %v530
    %v2195 = vunpack.c.l.b16 %v531
    %v2196 = vunpack.c.h.b16 %v531
    %v2197 = vunpack.c.l.b16 %v532
    %v2198 = vunpack.c.h.b16 %v532
    %v2199 = vunpack.c.l.b16 %v533
    %v2200 = vunpack.c.h.b16 %v533
    %v2201 = vunpack.c.l.b16 %v534
    %v2202 = vunpack.c.h.b16 %v534
    %v2203 = vunpack.c.l.b16 %v535
    %v2204 = vunpack.c.h.b16 %v535
    %v2205 = vunpack.c.l.b16 %v536
    %v2206 = vunpack.c.h.b16 %v536
    %v2207 = vunpack.c.l.b16 %v537
    %v2208 = vunpack.c.h.b16 %v537
    %v2209 = vunpack.c.l.b16 %v538
    %v2210 = vunpack.c.h.b16 %v538
    %v2211 = vunpack.c.l.b16 %v539
    %v2212 = vunpack.c.h.b16 %v539
    %v2213 = vunpack.c.l.b16 %v540
    %v2214 = vunpack.c.h.b16 %v540
    %v2215 = vunpack.c.l.b16 %v541
    %v2216 = vunpack.c.h.b16 %v541
    %v2217 = vunpack.c.l.b16 %v542
    %v2218 = vunpack.c.h.b16 %v542
    %v2219 = vunpack.c.l.b16 %v543
    %v2220 = vunpack.c.h.b16 %v543
    %v2221 = vunpack.c.l.b16 %v544
    %v2222 = vunpack.c.h.b16 %v544
    %v2223 = vunpack.c.l.b16 %v545
    %v2224 = vunpack.c.h.b16 %v545
    %v2225 = vunpack.c.l.b16 %v546
    %v2226 = vunpack.c.h.b16 %v546
    %v2227 = vunpack.c.l.b16 %v547
    %v2228 = vunpack.c.h.b16 %v547
    %v2229 = vunpack.c.l.b16 %v548
    %v2230 = vunpack.c.h.b16 %v548
    %v2231 = vunpack.c.l.b16 %v549
    %v2232 = vunpack.c.h.b16 %v549
    %v2233 = vunpack.c.l.b16 %v550
    %v2234 = vunpack.c.h.b16 %v550
    %v2235 = vunpack.c.l.b16 %v551
    %v2236 = vunpack.c.h.b16 %v551
    %v2237 = vunpack.c.l.b16 %v552
    %v2238 = vunpack.c.h.b16 %v552
    %v2239 = vunpack.c.l.b16 %v553
    %v2240 = vunpack.c.h.b16 %v553
    %v2241 = vunpack.c.l.b16 %v554
    %v2242 = vunpack.c.h.b16 %v554
    %v2243 = vunpack.c.l.b16 %v555
    %v2244 = vunpack.c.h.b16 %v555
    %v2245 = vunpack.c.l.b16 %v556
    %v2246 = vunpack.c.h.b16 %v556
    %v2247 = vunpack.c.l.b16 %v557
    %v2248 = vunpack.c.h.b16 %v557
    %v2249 = vunpack.c.l.b16 %v558
    %v2250 = vunpack.c.h.b16 %v558
    %v2251 = vunpack.c.l.b16 %v559
    %v2252 = vunpack.c.h.b16 %v559
    %v2253 = vunpack.c.l.b16 %v560
    %v2254 = vunpack.c.h.b16 %v560
    %v2255 = vunpack.c.l.b16 %v561
    %v2256 = vunpack.c.h.b16 %v561
    %v2257 = vunpack.c.l.b16 %v562
    %v2258 = vunpack.c.h.b16 %v562
    %v2259 = vunpack.c.l.b16 %v563
    %v2260 = vunpack.c.h.b16 %v563
    %v2261 = vunpack.c.l.b16 %v564
    %v2262 = vunpack.c.h.b16 %v564
    %v2263 = vunpack.c.l.b16 %v565
    %v2264 = vunpack.c.h.b16 %v565
    %v2265 = vunpack.c.l.b16 %v566
    %v2266 = vunpack.c.h.b16 %v566
    %v2267 = vunpack.c.l.b16 %v567
    %v2268 = vunpack.c.h.b16 %v567
    %v2269 = vunpack.c.l.b16 %v568
    %v2270 = vunpack.c.h.b16 %v568
    %v2271 = vunpack.c.l.b16 %v569
    %v2272 = vunpack.c.h.b16 %v569
    %v2273 = vunpack.c.l.b16 %v570
    %v2274 = vunpack.c.h.b16 %v570
    %v2275 = vunpack.c.l.b16 %v571
    %v2276 = vunpack.c.h.b16 %v571
    %v2277 = vunpack.c.l.b16 %v572
    %v2278 = vunpack.c.h.b16 %v572
    %v2279 = vunpack.c.l.b16 %v573
    %v2280 = vunpack.c.h.b16 %v573
    %v2281 = vunpack.c.l.b16 %v574
    %v2282 = vunpack.c.h.b16 %v574
    %v2283 = vunpack.c.l.b16 %v575
    %v2284 = vunpack.c.h.b16 %v575
    %v2285 = vunpack.c.l.b16 %v576
    %v2286 = vunpack.c.h.b16 %v576
    %v2287 = vunpack.c.l.b16 %v577
    %v2288 = vunpack.c.h.b16 %v577
    %v2289 = vunpack.c.l.b16 %v578
    %v2290 = vunpack.c.h.b16 %v578
    %v2291 = vunpack.c.l.b16 %v579
    %v2292 = vunpack.c.h.b16 %v579
    %v2293 = vunpack.c.l.b16 %v580
    %v2294 = vunpack.c.h.b16 %v580
    %v2295 = vunpack.c.l.b16 %v581
    %v2296 = vunpack.c.h.b16 %v581
    %v2297 = vunpack.c.l.b16 %v582
    %v2298 = vunpack.c.h.b16 %v582
    %v2299 = vunpack.c.l.b16 %v583
    %v2300 = vunpack.c.h.b16 %v583
    %v2301 = vunpack.c.l.b16 %v584
    %v2302 = vunpack.c.h.b16 %v584
    %v2303 = vunpack.c.l.b16 %v585
    %v2304 = vunpack.c.h.b16 %v585
    %v2305 = vunpack.c.l.b16 %v586
    %v2306 = vunpack.c.h.b16 %v586
    %v2307 = vunpack.c.l.b16 %v587
    %v2308 = vunpack.c.h.b16 %v587
    %v2309 = vunpack.c.l.b16 %v588
    %v2310 = vunpack.c.h.b16 %v588
    %v2311 = vunpack.c.l.b16 %v589
    %v2312 = vunpack.c.h.b16 %v589
    %v2313 = vunpack.c.l.b16 %v590
    %v2314 = vunpack.c.h.b16 %v590
    %v2315 = vunpack.c.l.b16 %v591
    %v2316 = vunpack.c.h.b16 %v591
    %v2317 = vunpack.c.l.b16 %v592
    %v2318 = vunpack.c.h.b16 %v592
    %v2319 = vunpack.c.l.b16 %v593
    %v2320 = vunpack.c.h.b16 %v593
    %v2321 = vunpack.c.l.b16 %v594
    %v2322 = vunpack.c.h.b16 %v594
    %v2323 = vunpack.c.l.b16 %v595
    %v2324 = vunpack.c.h.b16 %v595
    %v2325 = vunpack.c.l.b16 %v596
    %v2326 = vunpack.c.h.b16 %v596
    %v2327 = vunpack.c.l.b16 %v597
    %v2328 = vunpack.c.h.b16 %v597
    %v2329 = vunpack.c.l.b16 %v598
    %v2330 = vunpack.c.h.b16 %v598
    %v2331 = vunpack.c.l.b16 %v599
    %v2332 = vunpack.c.h.b16 %v599
    %v2333 = vunpack.c.l.b16 %v600
    %v2334 = vunpack.c.h.b16 %v600
    %v2335 = vunpack.c.l.b16 %v601
    %v2336 = vunpack.c.h.b16 %v601
    %v2337 = vunpack.c.l.b16 %v602
    %v2338 = vunpack.c.h.b16 %v602
    %v2339 = vunpack.c.l.b16 %v603
    %v2340 = vunpack.c.h.b16 %v603
    %v2341 = vunpack.c.l.b16 %v604
    %v2342 = vunpack.c.h.b16 %v604
    %v2343 = vunpack.c.l.b16 %v605
    %v2344 = vunpack.c.h.b16 %v605
    %v2345 = vunpack.c.l.b16 %v606
    %v2346 = vunpack.c.h.b16 %v606
    %v2347 = vunpack.c.l.b16 %v607
    %v2348 = vunpack.c.h.b16 %v607
    %v2349 = vunpack.c.l.b16 %v608
    %v2350 = vunpack.c.h.b16 %v608
    %v2351 = vunpack.c.l.b16 %v609
    %v2352 = vunpack.c.h.b16 %v609
    %v2353 = vunpack.c.l.b16 %v610
    %v2354 = vunpack.c.h.b16 %v610
    %v2355 = vunpack.c.l.b16 %v611
    %v2356 = vunpack.c.h.b16 %v611
    %v2357 = vunpack.c.l.b16 %v612
    %v2358 = vunpack.c.h.b16 %v612
    %v2359 = vunpack.c.l.b16 %v613
    %v2360 = vunpack.c.h.b16 %v613
    %v2361 = vunpack.c.l.b16 %v614
    %v2362 = vunpack.c.h.b16 %v614
    %v2363 = vunpack.c.l.b16 %v615
    %v2364 = vunpack.c.h.b16 %v615
    %v2365 = vunpack.c.l.b16 %v616
    %v2366 = vunpack.c.h.b16 %v616
    %v2367 = vunpack.c.l.b16 %v617
    %v2368 = vunpack.c.h.b16 %v617
    %v2369 = vunpack.c.l.b16 %v618
    %v2370 = vunpack.c.h.b16 %v618
    %v2371 = vunpack.c.l.b16 %v619
    %v2372 = vunpack.c.h.b16 %v619
    %v2373 = vunpack.c.l.b16 %v620
    %v2374 = vunpack.c.h.b16 %v620
    %v2375 = vunpack.c.l.b16 %v621
    %v2376 = vunpack.c.h.b16 %v621
    %v2377 = vunpack.c.l.b16 %v622
    %v2378 = vunpack.c.h.b16 %v622
    %v2379 = vunpack.c.l.b16 %v623
    %v2380 = vunpack.c.h.b16 %v623
    %v2381 = vunpack.c.l.b16 %v624
    %v2382 = vunpack.c.h.b16 %v624
    %v2383 = vunpack.c.l.b16 %v625
    %v2384 = vunpack.c.h.b16 %v625
    %v2385 = vunpack.c.l.b16 %v626
    %v2386 = vunpack.c.h.b16 %v626
    %v2387 = vunpack.c.l.b16 %v627
    %v2388 = vunpack.c.h.b16 %v627
    %v2389 = vunpack.c.l.b16 %v628
    %v2390 = vunpack.c.h.b16 %v628
    %v2391 = vunpack.c.l.b16 %v629
    %v2392 = vunpack.c.h.b16 %v629
    %v2393 = vunpack.c.l.b16 %v630
    %v2394 = vunpack.c.h.b16 %v630
    %v2395 = vunpack.c.l.b16 %v631
    %v2396 = vunpack.c.h.b16 %v631
    %v2397 = vunpack.c.l.b16 %v632
    %v2398 = vunpack.c.h.b16 %v632
    %v2399 = vunpack.c.l.b16 %v633
    %v2400 = vunpack.c.h.b16 %v633
    %v2401 = vunpack.c.l.b16 %v634
    %v2402 = vunpack.c.h.b16 %v634
    %v2403 = vunpack.c.l.b16 %v635
    %v2404 = vunpack.c.h.b16 %v635
    %v2405 = vunpack.c.l.b16 %v636
    %v2406 = vunpack.c.h.b16 %v636
    %v2407 = vunpack.c.l.b16 %v637
    %v2408 = vunpack.c.h.b16 %v637
    %v2409 = vunpack.c.l.b16 %v638
    %v2410 = vunpack.c.h.b16 %v638
    %v2411 = vunpack.c.l.b16 %v639
    %v2412 = vunpack.c.h.b16 %v639
    %v2413 = vunpack.c.l.b16 %v640
    %v2414 = vunpack.c.h.b16 %v640
    %v2415 = vunpack.c.l.b16 %v641
    %v2416 = vunpack.c.h.b16 %v641
    %v2417 = vunpack.c.l.b16 %v642
    %v2418 = vunpack.c.h.b16 %v642
    %v2419 = vunpack.c.l.b16 %v643
    %v2420 = vunpack.c.h.b16 %v643
    %v2421 = vunpack.c.l.b16 %v644
    %v2422 = vunpack.c.h.b16 %v644
    %v2423 = vunpack.c.l.b16 %v645
    %v2424 = vunpack.c.h.b16 %v645
    %v2425 = vunpack.c.l.b16 %v646
    %v2426 = vunpack.c.h.b16 %v646
    %v2427 = vunpack.c.l.b16 %v647
    %v2428 = vunpack.c.h.b16 %v647
    %v2429 = vunpack.c.l.b16 %v648
    %v2430 = vunpack.c.h.b16 %v648
    %v2431 = vunpack.c.l.b16 %v649
    %v2432 = vunpack.c.h.b16 %v649
    %v2433 = vunpack.c.l.b16 %v650
    %v2434 = vunpack.c.h.b16 %v650
    %v2435 = vunpack.c.l.b16 %v651
    %v2436 = vunpack.c.h.b16 %v651
    %v2437 = vunpack.c.l.b16 %v652
    %v2438 = vunpack.c.h.b16 %v652
    %v2439 = vunpack.c.l.b16 %v653
    %v2440 = vunpack.c.h.b16 %v653
    %v2441 = vunpack.c.l.b16 %v654
    %v2442 = vunpack.c.h.b16 %v654
    %v2443 = vunpack.c.l.b16 %v655
    %v2444 = vunpack.c.h.b16 %v655
    %v2445 = vunpack.c.l.b16 %v656
    %v2446 = vunpack.c.h.b16 %v656
    %v2447 = vunpack.c.l.b16 %v657
    %v2448 = vunpack.c.h.b16 %v657
    %v2449 = vunpack.c.l.b16 %v658
    %v2450 = vunpack.c.h.b16 %v658
    %v2451 = vunpack.c.l.b16 %v659
    %v2452 = vunpack.c.h.b16 %v659
    %v2453 = vunpack.c.l.b16 %v660
    %v2454 = vunpack.c.h.b16 %v660
    %v2455 = vunpack.c.l.b16 %v661
    %v2456 = vunpack.c.h.b16 %v661
    %v2457 = vunpack.c.l.b16 %v662
    %v2458 = vunpack.c.h.b16 %v662
    %v2459 = vunpack.c.l.b16 %v663
    %v2460 = vunpack.c.h.b16 %v663
    %v2461 = vunpack.c.l.b16 %v664
    %v2462 = vunpack.c.h.b16 %v664
    %v2463 = vunpack.c.l.b16 %v665
    %v2464 = vunpack.c.h.b16 %v665
    %v2465 = vunpack.c.l.b16 %v666
    %v2466 = vunpack.c.h.b16 %v666
    %v2467 = vunpack.c.l.b16 %v667
    %v2468 = vunpack.c.h.b16 %v667
    %v2469 = vunpack.c.l.b16 %v668
    %v2470 = vunpack.c.h.b16 %v668
    %v2471 = vpack.c.b16 %v1325, %v1319
    %v2472 = vpack.c.b16 %v1326, %v1320
    %v2473 = vpack.c.b16 %v1327, %v1321
    %v2474 = vpack.c.b16 %v1328, %v1322
    %v2475 = vpack.c.b16 %v1329, %v1323
    %v2476 = vpack.c.b16 %v1330, %v1324
    %v2477 = vpack.c.b16 %v1337, %v1331
    %v2478 = vpack.c.b16 %v1338, %v1332
    %v2479 = vpack.c.b16 %v1339, %v1333
    %v2480 = vpack.c.b16 %v1340, %v1334
    %v2481 = vpack.c.b16 %v1341, %v1335
    %v2482 = vpack.c.b16 %v1342, %v1336
    %v2483 = vpack.c.b16 %v1349, %v1343
    %v2484 = vpack.c.b16 %v1350, %v1344
    %v2485 = vpack.c.b16 %v1351, %v1345
    %v2486 = vpack.c.b16 %v1352, %v1346
    %v2487 = vpack.c.b16 %v1353, %v1347
    %v2488 = vpack.c.b16 %v1354, %v1348
    %v2489 = vpack.c.b16 %v1361, %v1355
    %v2490 = vpack.c.b16 %v1362, %v1356
    %v2491 = vpack.c.b16 %v1363, %v1357
    %v2492 = vpack.c.b16 %v1364, %v1358
    %v2493 = vpack.c.b16 %v1365, %v1359
    %v2494 = vpack.c.b16 %v1366, %v1360
    %v2495 = vpack.c.b16 %v1373, %v1367
    %v2496 = vpack.c.b16 %v1374, %v1368
    %v2497 = vpack.c.b16 %v1375, %v1369
    %v2498 = vpack.c.b16 %v1376, %v1370
    %v2499 = vpack.c.b16 %v1377, %v1371
    %v2500 = vpack.c.b16 %v1378, %v1372
    %v2501 = vpack.c.b16 %v1385, %v1379
    %v2502 = vpack.c.b16 %v1386, %v1380
    %v2503 = vpack.c.b16 %v1387, %v1381
    %v2504 = vpack.c.b16 %v1388, %v1382
    %v2505 = vpack.c.b16 %v1389, %v1383
    %v2506 = vpack.c.b16 %v1390, %v1384
    %v2507 = vpack.c.b16 %v1397, %v1391
    %v2508 = vpack.c.b16 %v1398, %v1392
    %v2509 = vpack.c.b16 %v1399, %v1393
    %v2510 = vpack.c.b16 %v1400, %v1394
    %v2511 = vpack.c.b16 %v1401, %v1395
    %v2512 = vpack.c.b16 %v1402, %v1396
    %v2513 = vpack.c.b16 %v1409, %v1403
    %v2514 = vpack.c.b16 %v1410, %v1404
    %v2515 = vpack.c.b16 %v1411, %v1405
    %v2516 = vpack.c.b16 %v1412, %v1406
    %v2517 = vpack.c.b16 %v1413, %v1407
    %v2518 = vpack.c.b16 %v1414, %v1408
    %v2519 = vpack.c.b16 %v1421, %v1415
    %v2520 = vpack.c.b16 %v1422, %v1416
    %v2521 = vpack.c.b16 %v1423, %v1417
    %v2522 = vpack.c.b16 %v1424, %v1418
    %v2523 = vpack.c.b16 %v1425, %v1419
    %v2524 = vpack.c.b16 %v1426, %v1420
    %v2525 = vpack.c.b16 %v1433, %v1427
    %v2526 = vpack.c.b16 %v1434, %v1428
    %v2527 = vpack.c.b16 %v1435, %v1429
    %v2528 = vpack.c.b16 %v1436, %v1430
    %v2529 = vpack.c.b16 %v1437, %v1431
    %v2530 = vpack.c.b16 %v1438, %v1432
    %v2531 = vpack.c.b16 %v1445, %v1439
    %v2532 = vpack.c.b16 %v1446, %v1440
    %v2533 = vpack.c.b16 %v1447, %v1441
    %v2534 = vpack.c.b16 %v1448, %v1442
    %v2535 = vpack.c.b16 %v1449, %v1443
    %v2536 = vpack.c.b16 %v1450, %v1444
    %v2537 = vpack.c.b16 %v1457, %v1451
    %v2538 = vpack.c.b16 %v1458, %v1452
    %v2539 = vpack.c.b16 %v1459, %v1453
    %v2540 = vpack.c.b16 %v1460, %v1454
    %v2541 = vpack.c.b16 %v1461, %v1455
    %v2542 = vpack.c.b16 %v1462, %v1456
    %v2543 = vpack.c.b16 %v1469, %v1463
    %v2544 = vpack.c.b16 %v1470, %v1464
    %v2545 = vpack.c.b16 %v1471, %v1465
    %v2546 = vpack.c.b16 %v1472, %v1466
    %v2547 = vpack.c.b16 %v1473, %v1467
    %v2548 = vpack.c.b16 %v1474, %v1468
    %v2549 = vpack.c.b16 %v1481, %v1475
    %v2550 = vpack.c.b16 %v1482, %v1476
    %v2551 = vpack.c.b16 %v1483, %v1477
    %v2552 = vpack.c.b16 %v1484, %v1478
    %v2553 = vpack.c.b16 %v1485, %v1479
    %v2554 = vpack.c.b16 %v1486, %v1480
    %v2555 = vpack.c.b16 %v1493, %v1487
    %v2556 = vpack.c.b16 %v1494, %v1488
    %v2557 = vpack.c.b16 %v1495, %v1489
    %v2558 = vpack.c.b16 %v1496, %v1490
    %v2559 = vpack.c.b16 %v1497, %v1491
    %v2560 = vpack.c.b16 %v1498, %v1492
    %v2561 = vpack.c.b16 %v1505, %v1499
    %v2562 = vpack.c.b16 %v1506, %v1500
    %v2563 = vpack.c.b16 %v1507, %v1501
    %v2564 = vpack.c.b16 %v1508, %v1502
    %v2565 = vpack.c.b16 %v1509, %v1503
    %v2566 = vpack.c.b16 %v1510, %v1504
    %v2567 = vpack.c.b16 %v1517, %v1511
    %v2568 = vpack.c.b16 %v1518, %v1512
    %v2569 = vpack.c.b16 %v1519, %v1513
    %v2570 = vpack.c.b16 %v1520, %v1514
    %v2571 = vpack.c.b16 %v1521, %v1515
    %v2572 = vpack.c.b16 %v1522, %v1516
    %v2573 = vpack.c.b16 %v1529, %v1523
    %v2574 = vpack.c.b16 %v1530, %v1524
    %v2575 = vpack.c.b16 %v1531, %v1525
    %v2576 = vpack.c.b16 %v1532, %v1526
    %v2577 = vpack.c.b16 %v1533, %v1527
    %v2578 = vpack.c.b16 %v1534, %v1528
    %v2579 = vpack.c.b16 %v1541, %v1535
    %v2580 = vpack.c.b16 %v1542, %v1536
    %v2581 = vpack.c.b16 %v1543, %v1537
    %v2582 = vpack.c.b16 %v1544, %v1538
    %v2583 = vpack.c.b16 %v1545, %v1539
    %v2584 = vpack.c.b16 %v1546, %v1540
    %v2585 = vpack.c.b16 %v1553, %v1547
    %v2586 = vpack.c.b16 %v1554, %v1548
    %v2587 = vpack.c.b16 %v1555, %v1549
    %v2588 = vpack.c.b16 %v1556, %v1550
    %v2589 = vpack.c.b16 %v1557, %v1551
    %v2590 = vpack.c.b16 %v1558, %v1552
    %v2591 = vpack.c.b16 %v1565, %v1559
    %v2592 = vpack.c.b16 %v1566, %v1560
    %v2593 = vpack.c.b16 %v1567, %v1561
    %v2594 = vpack.c.b16 %v1568, %v1562
    %v2595 = vpack.c.b16 %v1569, %v1563
    %v2596 = vpack.c.b16 %v1570, %v1564
    %v2597 = vpack.c.b16 %v1577, %v1571
    %v2598 = vpack.c.b16 %v1578, %v1572
    %v2599 = vpack.c.b16 %v1579, %v1573
    %v2600 = vpack.c.b16 %v1580, %v1574
    %v2601 = vpack.c.b16 %v1581, %v1575
    %v2602 = vpack.c.b16 %v1582, %v1576
    %v2603 = vpack.c.b16 %v1589, %v1583
    %v2604 = vpack.c.b16 %v1590, %v1584
    %v2605 = vpack.c.b16 %v1591, %v1585
    %v2606 = vpack.c.b16 %v1592, %v1586
    %v2607 = vpack.c.b16 %v1593, %v1587
    %v2608 = vpack.c.b16 %v1594, %v1588
    %v2609 = vpack.c.b16 %v1601, %v1595
    %v2610 = vpack.c.b16 %v1602, %v1596
    %v2611 = vpack.c.b16 %v1603, %v1597
    %v2612 = vpack.c.b16 %v1604, %v1598
    %v2613 = vpack.c.b16 %v1605, %v1599
    %v2614 = vpack.c.b16 %v1606, %v1600
    %v2615 = vpack.c.b16 %v1613, %v1607
    %v2616 = vpack.c.b16 %v1614, %v1608
    %v2617 = vpack.c.b16 %v1615, %v1609
    %v2618 = vpack.c.b16 %v1616, %v1610
    %v2619 = vpack.c.b16 %v1617, %v1611
    %v2620 = vpack.c.b16 %v1618, %v1612
    %v2621 = vpack.c.b16 %v1625, %v1619
    %v2622 = vpack.c.b16 %v1626, %v1620
    %v2623 = vpack.c.b16 %v1627, %v1621
    %v2624 = vpack.c.b16 %v1628, %v1622
    %v2625 = vpack.c.b16 %v1629, %v1623
    %v2626 = vpack.c.b16 %v1630, %v1624
    %v2627 = vpack.c.b16 %v1637, %v1631
    %v2628 = vpack.c.b16 %v1638, %v1632
    %v2629 = vpack.c.b16 %v1639, %v1633
    %v2630 = vpack.c.b16 %v1640, %v1634
    %v2631 = vpack.c.b16 %v1641, %v1635
    %v2632 = vpack.c.b16 %v1642, %v1636
    %v2633 = vpack.c.b16 %v1649, %v1643
    %v2634 = vpack.c.b16 %v1650, %v1644
    %v2635 = vpack.c.b16 %v1651, %v1645
    %v2636 = vpack.c.b16 %v1652, %v1646
    %v2637 = vpack.c.b16 %v1653, %v1647
    %v2638 = vpack.c.b16 %v1654, %v1648
    %v2639 = vpack.c.b16 %v1661, %v1655
    %v2640 = vpack.c.b16 %v1662, %v1656
    %v2641 = vpack.c.b16 %v1663, %v1657
    %v2642 = vpack.c.b16 %v1664, %v1658
    %v2643 = vpack.c.b16 %v1665, %v1659
    %v2644 = vpack.c.b16 %v1666, %v1660
    %v2645 = vpack.c.b16 %v1673, %v1667
    %v2646 = vpack.c.b16 %v1674, %v1668
    %v2647 = vpack.c.b16 %v1675, %v1669
    %v2648 = vpack.c.b16 %v1676, %v1670
    %v2649 = vpack.c.b16 %v1677, %v1671
    %v2650 = vpack.c.b16 %v1678, %v1672
    %v2651 = vpack.c.b16 %v1685, %v1679
    %v2652 = vpack.c.b16 %v1686, %v1680
    %v2653 = vpack.c.b16 %v1687, %v1681
    %v2654 = vpack.c.b16 %v1688, %v1682
    %v2655 = vpack.c.b16 %v1689, %v1683
    %v2656 = vpack.c.b16 %v1690, %v1684
    %v2657 = vpack.c.b16 %v1697, %v1691
    %v2658 = vpack.c.b16 %v1698, %v1692
    %v2659 = vpack.c.b16 %v1699, %v1693
    %v2660 = vpack.c.b16 %v1700, %v1694
    %v2661 = vpack.c.b16 %v1701, %v1695
    %v2662 = vpack.c.b16 %v1702, %v1696
    %v2663 = vpack.c.b16 %v1709, %v1703
    %v2664 = vpack.c.b16 %v1710, %v1704
    %v2665 = vpack.c.b16 %v1711, %v1705
    %v2666 = vpack.c.b16 %v1712, %v1706
    %v2667 = vpack.c.b16 %v1713, %v1707
    %v2668 = vpack.c.b16 %v1714, %v1708
    %v2669 = vpack.c.b16 %v1721, %v1715
    %v2670 = vpack.c.b16 %v1722, %v1716
    %v2671 = vpack.c.b16 %v1723, %v1717
    %v2672 = vpack.c.b16 %v1724, %v1718
    %v2673 = vpack.c.b16 %v1725, %v1719
    %v2674 = vpack.c.b16 %v1726, %v1720
    %v2675 = vpack.c.b16 %v1733, %v1727
    %v2676 = vpack.c.b16 %v1734, %v1728
    %v2677 = vpack.c.b16 %v1735, %v1729
    %v2678 = vpack.c.b16 %v1736, %v1730
    %v2679 = vpack.c.b16 %v1737, %v1731
    %v2680 = vpack.c.b16 %v1738, %v1732
    %v2681 = vpack.c.b16 %v1745, %v1739
    %v2682 = vpack.c.b16 %v1746, %v1740
    %v2683 = vpack.c.b16 %v1747, %v1741
    %v2684 = vpack.c.b16 %v1748, %v1742
    %v2685 = vpack.c.b16 %v1749, %v1743
    %v2686 = vpack.c.b16 %v1750, %v1744
    %v2687 = vpack.c.b16 %v1757, %v1751
    %v2688 = vpack.c.b16 %v1758, %v1752
    %v2689 = vpack.c.b16 %v1759, %v1753
    %v2690 = vpack.c.b16 %v1760, %v1754
    %v2691 = vpack.c.b16 %v1761, %v1755
    %v2692 = vpack.c.b16 %v1762, %v1756
    %v2693 = vpack.c.b16 %v1769, %v1763
    %v2694 = vpack.c.b16 %v1770, %v1764
    %v2695 = vpack.c.b16 %v1771, %v1765
    %v2696 = vpack.c.b16 %v1772, %v1766
    %v2697 = vpack.c.b16 %v1773, %v1767
    %v2698 = vpack.c.b16 %v1774, %v1768
    %v2699 = vpack.c.b16 %v1781, %v1775
    %v2700 = vpack.c.b16 %v1782, %v1776
    %v2701 = vpack.c.b16 %v1783, %v1777
    %v2702 = vpack.c.b16 %v1784, %v1778
    %v2703 = vpack.c.b16 %v1785, %v1779
    %v2704 = vpack.c.b16 %v1786, %v1780
    %v2705 = vpack.c.b16 %v1793, %v1787
    %v2706 = vpack.c.b16 %v1794, %v1788
    %v2707 = vpack.c.b16 %v1795, %v1789
    %v2708 = vpack.c.b16 %v1796, %v1790
    %v2709 = vpack.c.b16 %v1797, %v1791
    %v2710 = vpack.c.b16 %v1798, %v1792
    %v2711 = vpack.c.b16 %v1805, %v1799
    %v2712 = vpack.c.b16 %v1806, %v1800
    %v2713 = vpack.c.b16 %v1807, %v1801
    %v2714 = vpack.c.b16 %v1808, %v1802
    %v2715 = vpack.c.b16 %v1809, %v1803
    %v2716 = vpack.c.b16 %v1810, %v1804
    %v2717 = vpack.c.b16 %v1817, %v1811
    %v2718 = vpack.c.b16 %v1818, %v1812
    %v2719 = vpack.c.b16 %v1819, %v1813
    %v2720 = vpack.c.b16 %v1820, %v1814
    %v2721 = vpack.c.b16 %v1821, %v1815
    %v2722 = vpack.c.b16 %v1822, %v1816
    %v2723 = vpack.c.b16 %v1829, %v1823
    %v2724 = vpack.c.b16 %v1830, %v1824
    %v2725 = vpack.c.b16 %v1831, %v1825
    %v2726 = vpack.c.b16 %v1832, %v1826
    %v2727 = vpack.c.b16 %v1833, %v1827
    %v2728 = vpack.c.b16 %v1834, %v1828
    %v2729 = vpack.c.b16 %v1841, %v1835
    %v2730 = vpack.c.b16 %v1842, %v1836
    %v2731 = vpack.c.b16 %v1843, %v1837
    %v2732 = vpack.c.b16 %v1844, %v1838
    %v2733 = vpack.c.b16 %v1845, %v1839
    %v2734 = vpack.c.b16 %v1846, %v1840
    %v2735 = vpack.c.b16 %v1853, %v1847
    %v2736 = vpack.c.b16 %v1854, %v1848
    %v2737 = vpack.c.b16 %v1855, %v1849
    %v2738 = vpack.c.b16 %v1856, %v1850
    %v2739 = vpack.c.b16 %v1857, %v1851
    %v2740 = vpack.c.b16 %v1858, %v1852
    %v2741 = vpack.c.b16 %v1865, %v1859
    %v2742 = vpack.c.b16 %v1866, %v1860
    %v2743 = vpack.c.b16 %v1867, %v1861
    %v2744 = vpack.c.b16 %v1868, %v1862
    %v2745 = vpack.c.b16 %v1869, %v1863
    %v2746 = vpack.c.b16 %v1870, %v1864
    %v2747 = vpack.c.b16 %v1877, %v1871
    %v2748 = vpack.c.b16 %v1878, %v1872
    %v2749 = vpack.c.b16 %v1879, %v1873
    %v2750 = vpack.c.b16 %v1880, %v1874
    %v2751 = vpack.c.b16 %v1881, %v1875
    %v2752 = vpack.c.b16 %v1882, %v1876
    %v2753 = vpack.c.b16 %v1889, %v1883
    %v2754 = vpack.c.b16 %v1890, %v1884
    %v2755 = vpack.c.b16 %v1891, %v1885
    %v2756 = vpack.c.b16 %v1892, %v1886
    %v2757 = vpack.c.b16 %v1893, %v1887
    %v2758 = vpack.c.b16 %v1894, %v1888
    %v2759 = vpack.c.b16 %v1901, %v1895
    %v2760 = vpack.c.b16 %v1902, %v1896
    %v2761 = vpack.c.b16 %v1903, %v1897
    %v2762 = vpack.c.b16 %v1904, %v1898
    %v2763 = vpack.c.b16 %v1905, %v1899
    %v2764 = vpack.c.b16 %v1906, %v1900
    %v2765 = vpack.c.b16 %v1913, %v1907
    %v2766 = vpack.c.b16 %v1914, %v1908
    %v2767 = vpack.c.b16 %v1915, %v1909
    %v2768 = vpack.c.b16 %v1916, %v1910
    %v2769 = vpack.c.b16 %v1917, %v1911
    %v2770 = vpack.c.b16 %v1918, %v1912
    %v2771 = vpack.c.b16 %v1925, %v1919
    %v2772 = vpack.c.b16 %v1926, %v1920
    %v2773 = vpack.c.b16 %v1927, %v1921
    %v2774 = vpack.c.b16 %v1928, %v1922
    %v2775 = vpack.c.b16 %v1929, %v1923
    %v2776 = vpack.c.b16 %v1930, %v1924
    %v2777 = vpack.c.b16 %v1937, %v1931
    %v2778 = vpack.c.b16 %v1938, %v1932
    %v2779 = vpack.c.b16 %v1939, %v1933
    %v2780 = vpack.c.b16 %v1940, %v1934
    %v2781 = vpack.c.b16 %v1941, %v1935
    %v2782 = vpack.c.b16 %v1942, %v1936
    %v2783 = vpack.c.b16 %v1949, %v1943
    %v2784 = vpack.c.b16 %v1950, %v1944
    %v2785 = vpack.c.b16 %v1951, %v1945
    %v2786 = vpack.c.b16 %v1952, %v1946
    %v2787 = vpack.c.b16 %v1953, %v1947
    %v2788 = vpack.c.b16 %v1954, %v1948
    %v2789 = vpack.c.b16 %v1961, %v1955
    %v2790 = vpack.c.b16 %v1962, %v1956
    %v2791 = vpack.c.b16 %v1963, %v1957
    %v2792 = vpack.c.b16 %v1964, %v1958
    %v2793 = vpack.c.b16 %v1965, %v1959
    %v2794 = vpack.c.b16 %v1966, %v1960
    %v2795 = vpack.c.b16 %v1973, %v1967
    %v2796 = vpack.c.b16 %v1974, %v1968
    %v2797 = vpack.c.b16 %v1975, %v1969
    %v2798 = vpack.c.b16 %v1976, %v1970
    %v2799 = vpack.c.b16 %v1977, %v1971
    %v2800 = vpack.c.b16 %v1978, %v1972
    %v2801 = vpack.c.b16 %v1985, %v1979
    %v2802 = vpack.c.b16 %v1986, %v1980
    %v2803 = vpack.c.b16 %v1987, %v1981
    %v2804 = vpack.c.b16 %v1988, %v1982
    %v2805 = vpack.c.b16 %v1989, %v1983
    %v2806 = vpack.c.b16 %v1990, %v1984
    %v2807 = vpack.c.b16 %v1997, %v1991
    %v2808 = vpack.c.b16 %v1998, %v1992
    %v2809 = vpack.c.b16 %v1999, %v1993
    %v2810 = vpack.c.b16 %v2000, %v1994
    %v2811 = vpack.c.b16 %v2001, %v1995
    %v2812 = vpack.c.b16 %v2002, %v1996
    %v2813 = vpack.c.b16 %v2009, %v2003
    %v2814 = vpack.c.b16 %v2010, %v2004
    %v2815 = vpack.c.b16 %v2011, %v2005
    %v2816 = vpack.c.b16 %v2012, %v2006
    %v2817 = vpack.c.b16 %v2013, %v2007
    %v2818 = vpack.c.b16 %v2014, %v2008
    %v2819 = vpack.c.b16 %v2021, %v2015
    %v2820 = vpack.c.b16 %v2022, %v2016
    %v2821 = vpack.c.b16 %v2023, %v2017
    %v2822 = vpack.c.b16 %v2024, %v2018
    %v2823 = vpack.c.b16 %v2025, %v2019
    %v2824 = vpack.c.b16 %v2026, %v2020
    %v2825 = vpack.c.b16 %v2033, %v2027
    %v2826 = vpack.c.b16 %v2034, %v2028
    %v2827 = vpack.c.b16 %v2035, %v2029
    %v2828 = vpack.c.b16 %v2036, %v2030
    %v2829 = vpack.c.b16 %v2037, %v2031
    %v2830 = vpack.c.b16 %v2038, %v2032
    %v2831 = vpack.c.b16 %v2045, %v2039
    %v2832 = vpack.c.b16 %v2046, %v2040
    %v2833 = vpack.c.b16 %v2047, %v2041
    %v2834 = vpack.c.b16 %v2048, %v2042
    %v2835 = vpack.c.b16 %v2049, %v2043
    %v2836 = vpack.c.b16 %v2050, %v2044
    %v2837 = vpack.c.b16 %v2057, %v2051
    %v2838 = vpack.c.b16 %v2058, %v2052
    %v2839 = vpack.c.b16 %v2059, %v2053
    %v2840 = vpack.c.b16 %v2060, %v2054
    %v2841 = vpack.c.b16 %v2061, %v2055
    %v2842 = vpack.c.b16 %v2062, %v2056
    %v2843 = vpack.c.b16 %v2069, %v2063
    %v2844 = vpack.c.b16 %v2070, %v2064
    %v2845 = vpack.c.b16 %v2071, %v2065
    %v2846 = vpack.c.b16 %v2072, %v2066
    %v2847 = vpack.c.b16 %v2073, %v2067
    %v2848 = vpack.c.b16 %v2074, %v2068
    %v2849 = vpack.c.b16 %v2081, %v2075
    %v2850 = vpack.c.b16 %v2082, %v2076
    %v2851 = vpack.c.b16 %v2083, %v2077
    %v2852 = vpack.c.b16 %v2084, %v2078
    %v2853 = vpack.c.b16 %v2085, %v2079
    %v2854 = vpack.c.b16 %v2086, %v2080
    %v2855 = vpack.c.b16 %v2093, %v2087
    %v2856 = vpack.c.b16 %v2094, %v2088
    %v2857 = vpack.c.b16 %v2095, %v2089
    %v2858 = vpack.c.b16 %v2096, %v2090
    %v2859 = vpack.c.b16 %v2097, %v2091
    %v2860 = vpack.c.b16 %v2098, %v2092
    %v2861 = vpack.c.b16 %v2105, %v2099
    %v2862 = vpack.c.b16 %v2106, %v2100
    %v2863 = vpack.c.b16 %v2107, %v2101
    %v2864 = vpack.c.b16 %v2108, %v2102
    %v2865 = vpack.c.b16 %v2109, %v2103
    %v2866 = vpack.c.b16 %v2110, %v2104
    %v2867 = vpack.c.b16 %v2117, %v2111
    %v2868 = vpack.c.b16 %v2118, %v2112
    %v2869 = vpack.c.b16 %v2119, %v2113
    %v2870 = vpack.c.b16 %v2120, %v2114
    %v2871 = vpack.c.b16 %v2121, %v2115
    %v2872 = vpack.c.b16 %v2122, %v2116
    %v2873 = vpack.c.b16 %v2129, %v2123
    %v2874 = vpack.c.b16 %v2130, %v2124
    %v2875 = vpack.c.b16 %v2131, %v2125
    %v2876 = vpack.c.b16 %v2132, %v2126
    %v2877 = vpack.c.b16 %v2133, %v2127
    %v2878 = vpack.c.b16 %v2134, %v2128
    %v2879 = vpack.c.b16 %v2141, %v2135
    %v2880 = vpack.c.b16 %v2142, %v2136
    %v2881 = vpack.c.b16 %v2143, %v2137
    %v2882 = vpack.c.b16 %v2144, %v2138
    %v2883 = vpack.c.b16 %v2145, %v2139
    %v2884 = vpack.c.b16 %v2146, %v2140
    %v2885 = vpack.c.b16 %v2153, %v2147
    %v2886 = vpack.c.b16 %v2154, %v2148
    %v2887 = vpack.c.b16 %v2155, %v2149
    %v2888 = vpack.c.b16 %v2156, %v2150
    %v2889 = vpack.c.b16 %v2157, %v2151
    %v2890 = vpack.c.b16 %v2158, %v2152
    %v2891 = vpack.c.b16 %v2165, %v2159
    %v2892 = vpack.c.b16 %v2166, %v2160
    %v2893 = vpack.c.b16 %v2167, %v2161
    %v2894 = vpack.c.b16 %v2168, %v2162
    %v2895 = vpack.c.b16 %v2169, %v2163
    %v2896 = vpack.c.b16 %v2170, %v2164
    %v2897 = vpack.c.b16 %v2177, %v2171
    %v2898 = vpack.c.b16 %v2178, %v2172
    %v2899 = vpack.c.b16 %v2179, %v2173
    %v2900 = vpack.c.b16 %v2180, %v2174
    %v2901 = vpack.c.b16 %v2181, %v2175
    %v2902 = vpack.c.b16 %v2182, %v2176
    %v2903 = vpack.c.b16 %v2189, %v2183
    %v2904 = vpack.c.b16 %v2190, %v2184
    %v2905 = vpack.c.b16 %v2191, %v2185
    %v2906 = vpack.c.b16 %v2192, %v2186
    %v2907 = vpack.c.b16 %v2193, %v2187
    %v2908 = vpack.c.b16 %v2194, %v2188
    %v2909 = vpack.c.b16 %v2201, %v2195
    %v2910 = vpack.c.b16 %v2202, %v2196
    %v2911 = vpack.c.b16 %v2203, %v2197
    %v2912 = vpack.c.b16 %v2204, %v2198
    %v2913 = vpack.c.b16 %v2205, %v2199
    %v2914 = vpack.c.b16 %v2206, %v2200
    %v2915 = vpack.c.b16 %v2213, %v2207
    %v2916 = vpack.c.b16 %v2214, %v2208
    %v2917 = vpack.c.b16 %v2215, %v2209
    %v2918 = vpack.c.b16 %v2216, %v2210
    %v2919 = vpack.c.b16 %v2217, %v2211
    %v2920 = vpack.c.b16 %v2218, %v2212
    %v2921 = vpack.c.b16 %v2225, %v2219
    %v2922 = vpack.c.b16 %v2226, %v2220
    %v2923 = vpack.c.b16 %v2227, %v2221
    %v2924 = vpack.c.b16 %v2228, %v2222
    %v2925 = vpack.c.b16 %v2229, %v2223
    %v2926 = vpack.c.b16 %v2230, %v2224
    %v2927 = vpack.c.b16 %v2237, %v2231
    %v2928 = vpack.c.b16 %v2238, %v2232
    %v2929 = vpack.c.b16 %v2239, %v2233
    %v2930 = vpack.c.b16 %v2240, %v2234
    %v2931 = vpack.c.b16 %v2241, %v2235
    %v2932 = vpack.c.b16 %v2242, %v2236
    %v2933 = vpack.c.b16 %v2249, %v2243
    %v2934 = vpack.c.b16 %v2250, %v2244
    %v2935 = vpack.c.b16 %v2251, %v2245
    %v2936 = vpack.c.b16 %v2252, %v2246
    %v2937 = vpack.c.b16 %v2253, %v2247
    %v2938 = vpack.c.b16 %v2254, %v2248
    %v2939 = vpack.c.b16 %v2261, %v2255
    %v2940 = vpack.c.b16 %v2262, %v2256
    %v2941 = vpack.c.b16 %v2263, %v2257
    %v2942 = vpack.c.b16 %v2264, %v2258
    %v2943 = vpack.c.b16 %v2265, %v2259
    %v2944 = vpack.c.b16 %v2266, %v2260
    %v2945 = vpack.c.b16 %v2273, %v2267
    %v2946 = vpack.c.b16 %v2274, %v2268
    %v2947 = vpack.c.b16 %v2275, %v2269
    %v2948 = vpack.c.b16 %v2276, %v2270
    %v2949 = vpack.c.b16 %v2277, %v2271
    %v2950 = vpack.c.b16 %v2278, %v2272
    %v2951 = vpack.c.b16 %v2285, %v2279
    %v2952 = vpack.c.b16 %v2286, %v2280
    %v2953 = vpack.c.b16 %v2287, %v2281
    %v2954 = vpack.c.b16 %v2288, %v2282
    %v2955 = vpack.c.b16 %v2289, %v2283
    %v2956 = vpack.c.b16 %v2290, %v2284
    %v2957 = vpack.c.b16 %v2297, %v2291
    %v2958 = vpack.c.b16 %v2298, %v2292
    %v2959 = vpack.c.b16 %v2299, %v2293
    %v2960 = vpack.c.b16 %v2300, %v2294
    %v2961 = vpack.c.b16 %v2301, %v2295
    %v2962 = vpack.c.b16 %v2302, %v2296
    %v2963 = vpack.c.b16 %v2309, %v2303
    %v2964 = vpack.c.b16 %v2310, %v2304
    %v2965 = vpack.c.b16 %v2311, %v2305
    %v2966 = vpack.c.b16 %v2312, %v2306
    %v2967 = vpack.c.b16 %v2313, %v2307
    %v2968 = vpack.c.b16 %v2314, %v2308
    %v2969 = vpack.c.b16 %v2321, %v2315
    %v2970 = vpack.c.b16 %v2322, %v2316
    %v2971 = vpack.c.b16 %v2323, %v2317
    %v2972 = vpack.c.b16 %v2324, %v2318
    %v2973 = vpack.c.b16 %v2325, %v2319
    %v2974 = vpack.c.b16 %v2326, %v2320
    %v2975 = vpack.c.b16 %v2333, %v2327
    %v2976 = vpack.c.b16 %v2334, %v2328
    %v2977 = vpack.c.b16 %v2335, %v2329
    %v2978 = vpack.c.b16 %v2336, %v2330
    %v2979 = vpack.c.b16 %v2337, %v2331
    %v2980 = vpack.c.b16 %v2338, %v2332
    %v2981 = vpack.c.b16 %v2345, %v2339
    %v2982 = vpack.c.b16 %v2346, %v2340
    %v2983 = vpack.c.b16 %v2347, %v2341
    %v2984 = vpack.c.b16 %v2348, %v2342
    %v2985 = vpack.c.b16 %v2349, %v2343
    %v2986 = vpack.c.b16 %v2350, %v2344
    %v2987 = vpack.c.b16 %v2357, %v2351
    %v2988 = vpack.c.b16 %v2358, %v2352
    %v2989 = vpack.c.b16 %v2359, %v2353
    %v2990 = vpack.c.b16 %v2360, %v2354
    %v2991 = vpack.c.b16 %v2361, %v2355
    %v2992 = vpack.c.b16 %v2362, %v2356
    %v2993 = vpack.c.b16 %v2369, %v2363
    %v2994 = vpack.c.b16 %v2370, %v2364
    %v2995 = vpack.c.b16 %v2371, %v2365
    %v2996 = vpack.c.b16 %v2372, %v2366
    %v2997 = vpack.c.b16 %v2373, %v2367
    %v2998 = vpack.c.b16 %v2374, %v2368
    %v2999 = vpack.c.b16 %v2381, %v2375
    %v3000 = vpack.c.b16 %v2382, %v2376
    %v3001 = vpack.c.b16 %v2383, %v2377
    %v3002 = vpack.c.b16 %v2384, %v2378
    %v3003 = vpack.c.b16 %v2385, %v2379
    %v3004 = vpack.c.b16 %v2386, %v2380
    %v3005 = vpack.c.b16 %v2393, %v2387
    %v3006 = vpack.c.b16 %v2394, %v2388
    %v3007 = vpack.c.b16 %v2395, %v2389
    %v3008 = vpack.c.b16 %v2396, %v2390
    %v3009 = vpack.c.b16 %v2397, %v2391
    %v3010 = vpack.c.b16 %v2398, %v2392
    %v3011 = vpack.c.b16 %v2405, %v2399
    %v3012 = vpack.c.b16 %v2406, %v2400
    %v3013 = vpack.c.b16 %v2407, %v2401
    %v3014 = vpack.c.b16 %v2408, %v2402
    %v3015 = vpack.c.b16 %v2409, %v2403
    %v3016 = vpack.c.b16 %v2410, %v2404
    %v3017 = vpack.c.b16 %v2417, %v2411
    %v3018 = vpack.c.b16 %v2418, %v2412
    %v3019 = vpack.c.b16 %v2419, %v2413
    %v3020 = vpack.c.b16 %v2420, %v2414
    %v3021 = vpack.c.b16 %v2421, %v2415
    %v3022 = vpack.c.b16 %v2422, %v2416
    %v3023 = vpack.c.b16 %v2429, %v2423
    %v3024 = vpack.c.b16 %v2430, %v2424
    %v3025 = vpack.c.b16 %v2431, %v2425
    %v3026 = vpack.c.b16 %v2432, %v2426
    %v3027 = vpack.c.b16 %v2433, %v2427
    %v3028 = vpack.c.b16 %v2434, %v2428
    %v3029 = vpack.c.b16 %v2441, %v2435
    %v3030 = vpack.c.b16 %v2442, %v2436
    %v3031 = vpack.c.b16 %v2443, %v2437
    %v3032 = vpack.c.b16 %v2444, %v2438
    %v3033 = vpack.c.b16 %v2445, %v2439
    %v3034 = vpack.c.b16 %v2446, %v2440
    %v3035 = vpack.c.b16 %v2453, %v2447
    %v3036 = vpack.c.b16 %v2454, %v2448
    %v3037 = vpack.c.b16 %v2455, %v2449
    %v3038 = vpack.c.b16 %v2456, %v2450
    %v3039 = vpack.c.b16 %v2457, %v2451
    %v3040 = vpack.c.b16 %v2458, %v2452
    %v3041 = vpack.c.b16 %v2465, %v2459
    %v3042 = vpack.c.b16 %v2466, %v2460
    %v3043 = vpack.c.b16 %v2467, %v2461
    %v3044 = vpack.c.b16 %v2468, %v2462
    %v3045 = vpack.c.b16 %v2469, %v2463
    %v3046 = vpack.c.b16 %v2470, %v2464
    %3623 = vmatprep.subr.bf16.mxu0 %v2472
    %3624 = vmatpush1.bf16.msra.mxu0 %v2471
    %3625 = vmatprep.subr.bf16.mxu0 %v2478
    %3626 = vmatpush1.bf16.msra.mxu0 %v2477
    %3627 = vmatprep.subr.bf16.mxu0 %v2484
    %3628 = vmatpush1.bf16.msra.mxu0 %v2483
    %3629 = vmatprep.subr.bf16.mxu0 %v2490
    %3630 = vmatpush1.bf16.msra.mxu0 %v2489
    %3631 = vmatprep.subr.bf16.mxu0 %v2496
    %3632 = vmatpush1.bf16.msra.mxu0 %v2495
    %3633 = vmatprep.subr.bf16.mxu0 %v2502
    %3634 = vmatpush1.bf16.msra.mxu0 %v2501
    %3635 = vmatprep.subr.bf16.mxu0 %v2508
    %3636 = vmatpush1.bf16.msra.mxu0 %v2507
    %3637 = vmatprep.subr.bf16.mxu0 %v2514
    %3638 = vmatpush1.bf16.msra.mxu0 %v2513
    %3639 = vmatprep.subr.bf16.mxu0 %v2520
    %3640 = vmatpush1.bf16.msra.mxu0 %v2519
    %3641 = vmatprep.subr.bf16.mxu0 %v2526
    %3642 = vmatpush1.bf16.msra.mxu0 %v2525
    %3643 = vmatprep.subr.bf16.mxu0 %v2532
    %3644 = vmatpush1.bf16.msra.mxu0 %v2531
    %3645 = vmatprep.subr.bf16.mxu0 %v2538
    %3646 = vmatpush1.bf16.msra.mxu0 %v2537
    %3647 = vmatprep.subr.bf16.mxu0 %v2544
    %3648 = vmatpush1.bf16.msra.mxu0 %v2543
    %3649 = vmatprep.subr.bf16.mxu0 %v2550
    %3650 = vmatpush1.bf16.msra.mxu0 %v2549
    %3651 = vmatprep.subr.bf16.mxu0 %v2556
    %3652 = vmatpush1.bf16.msra.mxu0 %v2555
    %3653 = vmatprep.subr.bf16.mxu0 %v2562
    %3654 = vmatpush1.bf16.msra.mxu0 %v2561
    %3655 = vmatprep.mubr.bf16.mxu0 %v720
    %3656 = vmatmul.mubr.bf16.gmra.mrb[0].mxu0 %v719
    %v3657 = vpop.f32.mrb[0].mxu0
    %v3658 = vadd.f32 %v674, %v3657
    %v3659 = vpop.f32.mrb[0].mxu0
    %v3660 = vadd.f32 %v678, %v3659
    %v3661 = vpop.f32.mrb[0].mxu0
    %v3662 = vpop.f32.mrb[0].mxu0
    %3663 = vdwg.mxu0
    %3664 = vmatprep.subr.bf16.mxu0 %v2568
    %3665 = vmatpush1.bf16.msra.mxu0 %v2567
    %3666 = vmatprep.subr.bf16.mxu0 %v2574
    %3667 = vmatpush1.bf16.msra.mxu0 %v2573
    %3668 = vmatprep.subr.bf16.mxu0 %v2580
    %3669 = vmatpush1.bf16.msra.mxu0 %v2579
    %3670 = vmatprep.subr.bf16.mxu0 %v2586
    %3671 = vmatpush1.bf16.msra.mxu0 %v2585
    %3672 = vmatprep.subr.bf16.mxu0 %v2592
    %3673 = vmatpush1.bf16.msra.mxu0 %v2591
    %3674 = vmatprep.subr.bf16.mxu0 %v2598
    %3675 = vmatpush1.bf16.msra.mxu0 %v2597
    %3676 = vmatprep.subr.bf16.mxu0 %v2604
    %3677 = vmatpush1.bf16.msra.mxu0 %v2603
    %3678 = vmatprep.subr.bf16.mxu0 %v2610
    %3679 = vmatpush1.bf16.msra.mxu0 %v2609
    %3680 = vmatprep.subr.bf16.mxu0 %v2616
    %3681 = vmatpush1.bf16.msra.mxu0 %v2615
    %3682 = vmatprep.subr.bf16.mxu0 %v2622
    %3683 = vmatpush1.bf16.msra.mxu0 %v2621
    %3684 = vmatprep.subr.bf16.mxu0 %v2628
    %3685 = vmatpush1.bf16.msra.mxu0 %v2627
    %3686 = vmatprep.subr.bf16.mxu0 %v2634
    %3687 = vmatpush1.bf16.msra.mxu0 %v2633
    %3688 = vmatprep.subr.bf16.mxu0 %v2640
    %3689 = vmatpush1.bf16.msra.mxu0 %v2639
    %3690 = vmatprep.subr.bf16.mxu0 %v2646
    %3691 = vmatpush1.bf16.msra.mxu0 %v2645
    %3692 = vmatprep.subr.bf16.mxu0 %v2652
    %3693 = vmatpush1.bf16.msra.mxu0 %v2651
    %3694 = vmatprep.subr.bf16.mxu0 %v2658
    %3695 = vmatpush1.bf16.msra.mxu0 %v2657
    %3696 = vmatprep.mubr.bf16.mxu0 %v722
    %3697 = vmatmul.mubr.bf16.gmra.mrb[0].mxu0 %v721
    %v3698 = vpop.f32.mrb[0].mxu0
    %v3699 = vadd.f32 %v3658, %v3698
    %v3700 = vpop.f32.mrb[0].mxu0
    %v3701 = vadd.f32 %v3660, %v3700
    %v3702 = vpop.f32.mrb[0].mxu0
    %v3703 = vpop.f32.mrb[0].mxu0
    %3704 = vdwg.mxu0
    %3705 = vmatprep.subr.bf16.mxu0 %v2664
    %3706 = vmatpush1.bf16.msra.mxu0 %v2663
    %3707 = vmatprep.subr.bf16.mxu0 %v2670
    %3708 = vmatpush1.bf16.msra.mxu0 %v2669
    %3709 = vmatprep.subr.bf16.mxu0 %v2676
    %3710 = vmatpush1.bf16.msra.mxu0 %v2675
    %3711 = vmatprep.subr.bf16.mxu0 %v2682
    %3712 = vmatpush1.bf16.msra.mxu0 %v2681
    %3713 = vmatprep.subr.bf16.mxu0 %v2688
    %3714 = vmatpush1.bf16.msra.mxu0 %v2687
    %3715 = vmatprep.subr.bf16.mxu0 %v2694
    %3716 = vmatpush1.bf16.msra.mxu0 %v2693
    %3717 = vmatprep.subr.bf16.mxu0 %v2700
    %3718 = vmatpush1.bf16.msra.mxu0 %v2699
    %3719 = vmatprep.subr.bf16.mxu0 %v2706
    %3720 = vmatpush1.bf16.msra.mxu0 %v2705
    %3721 = vmatprep.subr.bf16.mxu0 %v2712
    %3722 = vmatpush1.bf16.msra.mxu0 %v2711
    %3723 = vmatprep.subr.bf16.mxu0 %v2718
    %3724 = vmatpush1.bf16.msra.mxu0 %v2717
    %3725 = vmatprep.subr.bf16.mxu0 %v2724
    %3726 = vmatpush1.bf16.msra.mxu0 %v2723
    %3727 = vmatprep.subr.bf16.mxu0 %v2730
    %3728 = vmatpush1.bf16.msra.mxu0 %v2729
    %3729 = vmatprep.subr.bf16.mxu0 %v2736
    %3730 = vmatpush1.bf16.msra.mxu0 %v2735
    %3731 = vmatprep.subr.bf16.mxu0 %v2742
    %3732 = vmatpush1.bf16.msra.mxu0 %v2741
    %3733 = vmatprep.subr.bf16.mxu0 %v2748
    %3734 = vmatpush1.bf16.msra.mxu0 %v2747
    %3735 = vmatprep.subr.bf16.mxu0 %v2754
    %3736 = vmatpush1.bf16.msra.mxu0 %v2753
    %3737 = vmatprep.mubr.bf16.mxu0 %v724
    %3738 = vmatmul.mubr.bf16.gmra.mrb[0].mxu0 %v723
    %v3739 = vpop.f32.mrb[0].mxu0
    %v3740 = vadd.f32 %v3699, %v3739
    %v3741 = vpop.f32.mrb[0].mxu0
    %v3742 = vadd.f32 %v3701, %v3741
    %v3743 = vpop.f32.mrb[0].mxu0
    %v3744 = vpop.f32.mrb[0].mxu0
    %3745 = vdwg.mxu0
    %3746 = vmatprep.subr.bf16.mxu0 %v2760
    %3747 = vmatpush1.bf16.msra.mxu0 %v2759
    %3748 = vmatprep.subr.bf16.mxu0 %v2766
    %3749 = vmatpush1.bf16.msra.mxu0 %v2765
    %3750 = vmatprep.subr.bf16.mxu0 %v2772
    %3751 = vmatpush1.bf16.msra.mxu0 %v2771
    %3752 = vmatprep.subr.bf16.mxu0 %v2778
    %3753 = vmatpush1.bf16.msra.mxu0 %v2777
    %3754 = vmatprep.subr.bf16.mxu0 %v2784
    %3755 = vmatpush1.bf16.msra.mxu0 %v2783
    %3756 = vmatprep.subr.bf16.mxu0 %v2790
    %3757 = vmatpush1.bf16.msra.mxu0 %v2789
    %3758 = vmatprep.subr.bf16.mxu0 %v2796
    %3759 = vmatpush1.bf16.msra.mxu0 %v2795
    %3760 = vmatprep.subr.bf16.mxu0 %v2802
    %3761 = vmatpush1.bf16.msra.mxu0 %v2801
    %3762 = vmatprep.subr.bf16.mxu0 %v2808
    %3763 = vmatpush1.bf16.msra.mxu0 %v2807
    %3764 = vmatprep.subr.bf16.mxu0 %v2814
    %3765 = vmatpush1.bf16.msra.mxu0 %v2813
    %3766 = vmatprep.subr.bf16.mxu0 %v2820
    %3767 = vmatpush1.bf16.msra.mxu0 %v2819
    %3768 = vmatprep.subr.bf16.mxu0 %v2826
    %3769 = vmatpush1.bf16.msra.mxu0 %v2825
    %3770 = vmatprep.subr.bf16.mxu0 %v2832
    %3771 = vmatpush1.bf16.msra.mxu0 %v2831
    %3772 = vmatprep.subr.bf16.mxu0 %v2838
    %3773 = vmatpush1.bf16.msra.mxu0 %v2837
    %3774 = vmatprep.subr.bf16.mxu0 %v2844
    %3775 = vmatpush1.bf16.msra.mxu0 %v2843
    %3776 = vmatprep.subr.bf16.mxu0 %v2850
    %3777 = vmatpush1.bf16.msra.mxu0 %v2849
    %3778 = vmatprep.mubr.bf16.mxu0 %v726
    %3779 = vmatmul.mubr.bf16.gmra.mrb[0].mxu0 %v725
    %v3780 = vpop.f32.mrb[0].mxu0
    %v3781 = vadd.f32 %v3740, %v3780
    %v3782 = vpop.f32.mrb[0].mxu0
    %v3783 = vadd.f32 %v3742, %v3782
    %v3784 = vpop.f32.mrb[0].mxu0
    %v3785 = vpop.f32.mrb[0].mxu0
    %3786 = vdwg.mxu0
    %3787 = vmatprep.subr.bf16.mxu0 %v2856
    %3788 = vmatpush1.bf16.msra.mxu0 %v2855
    %3789 = vmatprep.subr.bf16.mxu0 %v2862
    %3790 = vmatpush1.bf16.msra.mxu0 %v2861
    %3791 = vmatprep.subr.bf16.mxu0 %v2868
    %3792 = vmatpush1.bf16.msra.mxu0 %v2867
    %3793 = vmatprep.subr.bf16.mxu0 %v2874
    %3794 = vmatpush1.bf16.msra.mxu0 %v2873
    %3795 = vmatprep.subr.bf16.mxu0 %v2880
    %3796 = vmatpush1.bf16.msra.mxu0 %v2879
    %3797 = vmatprep.subr.bf16.mxu0 %v2886
    %3798 = vmatpush1.bf16.msra.mxu0 %v2885
    %3799 = vmatprep.subr.bf16.mxu0 %v2892
    %3800 = vmatpush1.bf16.msra.mxu0 %v2891
    %3801 = vmatprep.subr.bf16.mxu0 %v2898
    %3802 = vmatpush1.bf16.msra.mxu0 %v2897
    %3803 = vmatprep.subr.bf16.mxu0 %v2904
    %3804 = vmatpush1.bf16.msra.mxu0 %v2903
    %3805 = vmatprep.subr.bf16.mxu0 %v2910
    %3806 = vmatpush1.bf16.msra.mxu0 %v2909
    %3807 = vmatprep.subr.bf16.mxu0 %v2916
    %3808 = vmatpush1.bf16.msra.mxu0 %v2915
    %3809 = vmatprep.subr.bf16.mxu0 %v2922
    %3810 = vmatpush1.bf16.msra.mxu0 %v2921
    %3811 = vmatprep.subr.bf16.mxu0 %v2928
    %3812 = vmatpush1.bf16.msra.mxu0 %v2927
    %3813 = vmatprep.subr.bf16.mxu0 %v2934
    %3814 = vmatpush1.bf16.msra.mxu0 %v2933
    %3815 = vmatprep.subr.bf16.mxu0 %v2940
    %3816 = vmatpush1.bf16.msra.mxu0 %v2939
    %3817 = vmatprep.subr.bf16.mxu0 %v2946
    %3818 = vmatpush1.bf16.msra.mxu0 %v2945
    %3819 = vmatprep.mubr.bf16.mxu0 %v728
    %3820 = vmatmul.mubr.bf16.gmra.mrb[0].mxu0 %v727
    %v3821 = vpop.f32.mrb[0].mxu0
    %v3822 = vadd.f32 %v3781, %v3821
    %v3823 = vpop.f32.mrb[0].mxu0
    %v3824 = vadd.f32 %v3783, %v3823
    %v3825 = vpop.f32.mrb[0].mxu0
    %v3826 = vpop.f32.mrb[0].mxu0
    %3827 = vdwg.mxu0
    %3828 = vmatprep.subr.bf16.mxu0 %v2952
    %3829 = vmatpush1.bf16.msra.mxu0 %v2951
    %3830 = vmatprep.subr.bf16.mxu0 %v2958
    %3831 = vmatpush1.bf16.msra.mxu0 %v2957
    %3832 = vmatprep.subr.bf16.mxu0 %v2964
    %3833 = vmatpush1.bf16.msra.mxu0 %v2963
    %3834 = vmatprep.subr.bf16.mxu0 %v2970
    %3835 = vmatpush1.bf16.msra.mxu0 %v2969
    %3836 = vmatprep.subr.bf16.mxu0 %v2976
    %3837 = vmatpush1.bf16.msra.mxu0 %v2975
    %3838 = vmatprep.subr.bf16.mxu0 %v2982
    %3839 = vmatpush1.bf16.msra.mxu0 %v2981
    %3840 = vmatprep.subr.bf16.mxu0 %v2988
    %3841 = vmatpush1.bf16.msra.mxu0 %v2987
    %3842 = vmatprep.subr.bf16.mxu0 %v2994
    %3843 = vmatpush1.bf16.msra.mxu0 %v2993
    %3844 = vmatprep.subr.bf16.mxu0 %v3000
    %3845 = vmatpush1.bf16.msra.mxu0 %v2999
    %3846 = vmatprep.subr.bf16.mxu0 %v3006
    %3847 = vmatpush1.bf16.msra.mxu0 %v3005
    %3848 = vmatprep.subr.bf16.mxu0 %v3012
    %3849 = vmatpush1.bf16.msra.mxu0 %v3011
    %3850 = vmatprep.subr.bf16.mxu0 %v3018
    %3851 = vmatpush1.bf16.msra.mxu0 %v3017
    %3852 = vmatprep.subr.bf16.mxu0 %v3024
    %3853 = vmatpush1.bf16.msra.mxu0 %v3023
    %3854 = vmatprep.subr.bf16.mxu0 %v3030
    %3855 = vmatpush1.bf16.msra.mxu0 %v3029
    %3856 = vmatprep.subr.bf16.mxu0 %v3036
    %3857 = vmatpush1.bf16.msra.mxu0 %v3035
    %3858 = vmatprep.subr.bf16.mxu0 %v3042
    %3859 = vmatpush1.bf16.msra.mxu0 %v3041
    %3860 = vmatprep.mubr.bf16.mxu0 %v730
    %3861 = vmatmul.mubr.bf16.gmra.mrb[0].mxu0 %v729
    %v3862 = vpop.f32.mrb[0].mxu0
    %v3863 = vadd.f32 %v3822, %v3862
    %v3864 = vpop.f32.mrb[0].mxu0
    %v3865 = vadd.f32 %v3824, %v3864
    %v3866 = vpop.f32.mrb[0].mxu0
    %v3867 = vpop.f32.mrb[0].mxu0
    %3868 = vdwg.mxu0
    %3869 = vmatprep.subr.bf16.mxu0 %v2474
    %3870 = vmatpush1.bf16.msra.mxu0 %v2473
    %3871 = vmatprep.subr.bf16.mxu0 %v2480
    %3872 = vmatpush1.bf16.msra.mxu0 %v2479
    %3873 = vmatprep.subr.bf16.mxu0 %v2486
    %3874 = vmatpush1.bf16.msra.mxu0 %v2485
    %3875 = vmatprep.subr.bf16.mxu0 %v2492
    %3876 = vmatpush1.bf16.msra.mxu0 %v2491
    %3877 = vmatprep.subr.bf16.mxu0 %v2498
    %3878 = vmatpush1.bf16.msra.mxu0 %v2497
    %3879 = vmatprep.subr.bf16.mxu0 %v2504
    %3880 = vmatpush1.bf16.msra.mxu0 %v2503
    %3881 = vmatprep.subr.bf16.mxu0 %v2510
    %3882 = vmatpush1.bf16.msra.mxu0 %v2509
    %3883 = vmatprep.subr.bf16.mxu0 %v2516
    %3884 = vmatpush1.bf16.msra.mxu0 %v2515
    %3885 = vmatprep.subr.bf16.mxu0 %v2522
    %3886 = vmatpush1.bf16.msra.mxu0 %v2521
    %3887 = vmatprep.subr.bf16.mxu0 %v2528
    %3888 = vmatpush1.bf16.msra.mxu0 %v2527
    %3889 = vmatprep.subr.bf16.mxu0 %v2534
    %3890 = vmatpush1.bf16.msra.mxu0 %v2533
    %3891 = vmatprep.subr.bf16.mxu0 %v2540
    %3892 = vmatpush1.bf16.msra.mxu0 %v2539
    %3893 = vmatprep.subr.bf16.mxu0 %v2546
    %3894 = vmatpush1.bf16.msra.mxu0 %v2545
    %3895 = vmatprep.subr.bf16.mxu0 %v2552
    %3896 = vmatpush1.bf16.msra.mxu0 %v2551
    %3897 = vmatprep.subr.bf16.mxu0 %v2558
    %3898 = vmatpush1.bf16.msra.mxu0 %v2557
    %3899 = vmatprep.subr.bf16.mxu0 %v2564
    %3900 = vmatpush1.bf16.msra.mxu0 %v2563
    %3901 = vmatprep.mubr.bf16.mxu0 %v720
    %3902 = vmatmul.mubr.bf16.gmra.mrb[0].mxu0 %v719
    %v3903 = vpop.f32.mrb[0].mxu0
    %v3904 = vadd.f32 %v682, %v3903
    %v3905 = vpop.f32.mrb[0].mxu0
    %v3906 = vadd.f32 %v686, %v3905
    %v3907 = vpop.f32.mrb[0].mxu0
    %v3908 = vpop.f32.mrb[0].mxu0
    %3909 = vdwg.mxu0
    %3910 = vmatprep.subr.bf16.mxu0 %v2570
    %3911 = vmatpush1.bf16.msra.mxu0 %v2569
    %3912 = vmatprep.subr.bf16.mxu0 %v2576
    %3913 = vmatpush1.bf16.msra.mxu0 %v2575
    %3914 = vmatprep.subr.bf16.mxu0 %v2582
    %3915 = vmatpush1.bf16.msra.mxu0 %v2581
    %3916 = vmatprep.subr.bf16.mxu0 %v2588
    %3917 = vmatpush1.bf16.msra.mxu0 %v2587
    %3918 = vmatprep.subr.bf16.mxu0 %v2594
    %3919 = vmatpush1.bf16.msra.mxu0 %v2593
    %3920 = vmatprep.subr.bf16.mxu0 %v2600
    %3921 = vmatpush1.bf16.msra.mxu0 %v2599
    %3922 = vmatprep.subr.bf16.mxu0 %v2606
    %3923 = vmatpush1.bf16.msra.mxu0 %v2605
    %3924 = vmatprep.subr.bf16.mxu0 %v2612
    %3925 = vmatpush1.bf16.msra.mxu0 %v2611
    %3926 = vmatprep.subr.bf16.mxu0 %v2618
    %3927 = vmatpush1.bf16.msra.mxu0 %v2617
    %3928 = vmatprep.subr.bf16.mxu0 %v2624
    %3929 = vmatpush1.bf16.msra.mxu0 %v2623
    %3930 = vmatprep.subr.bf16.mxu0 %v2630
    %3931 = vmatpush1.bf16.msra.mxu0 %v2629
    %3932 = vmatprep.subr.bf16.mxu0 %v2636
    %3933 = vmatpush1.bf16.msra.mxu0 %v2635
    %3934 = vmatprep.subr.bf16.mxu0 %v2642
    %3935 = vmatpush1.bf16.msra.mxu0 %v2641
    %3936 = vmatprep.subr.bf16.mxu0 %v2648
    %3937 = vmatpush1.bf16.msra.mxu0 %v2647
    %3938 = vmatprep.subr.bf16.mxu0 %v2654
    %3939 = vmatpush1.bf16.msra.mxu0 %v2653
    %3940 = vmatprep.subr.bf16.mxu0 %v2660
    %3941 = vmatpush1.bf16.msra.mxu0 %v2659
    %3942 = vmatprep.mubr.bf16.mxu0 %v722
    %3943 = vmatmul.mubr.bf16.gmra.mrb[0].mxu0 %v721
    %v3944 = vpop.f32.mrb[0].mxu0
    %v3945 = vadd.f32 %v3904, %v3944
    %v3946 = vpop.f32.mrb[0].mxu0
    %v3947 = vadd.f32 %v3906, %v3946
    %v3948 = vpop.f32.mrb[0].mxu0
    %v3949 = vpop.f32.mrb[0].mxu0
    %3950 = vdwg.mxu0
    %3951 = vmatprep.subr.bf16.mxu0 %v2666
    %3952 = vmatpush1.bf16.msra.mxu0 %v2665
    %3953 = vmatprep.subr.bf16.mxu0 %v2672
    %3954 = vmatpush1.bf16.msra.mxu0 %v2671
    %3955 = vmatprep.subr.bf16.mxu0 %v2678
    %3956 = vmatpush1.bf16.msra.mxu0 %v2677
    %3957 = vmatprep.subr.bf16.mxu0 %v2684
    %3958 = vmatpush1.bf16.msra.mxu0 %v2683
    %3959 = vmatprep.subr.bf16.mxu0 %v2690
    %3960 = vmatpush1.bf16.msra.mxu0 %v2689
    %3961 = vmatprep.subr.bf16.mxu0 %v2696
    %3962 = vmatpush1.bf16.msra.mxu0 %v2695
    %3963 = vmatprep.subr.bf16.mxu0 %v2702
    %3964 = vmatpush1.bf16.msra.mxu0 %v2701
    %3965 = vmatprep.subr.bf16.mxu0 %v2708
    %3966 = vmatpush1.bf16.msra.mxu0 %v2707
    %3967 = vmatprep.subr.bf16.mxu0 %v2714
    %3968 = vmatpush1.bf16.msra.mxu0 %v2713
    %3969 = vmatprep.subr.bf16.mxu0 %v2720
    %3970 = vmatpush1.bf16.msra.mxu0 %v2719
    %3971 = vmatprep.subr.bf16.mxu0 %v2726
    %3972 = vmatpush1.bf16.msra.mxu0 %v2725
    %3973 = vmatprep.subr.bf16.mxu0 %v2732
    %3974 = vmatpush1.bf16.msra.mxu0 %v2731
    %3975 = vmatprep.subr.bf16.mxu0 %v2738
    %3976 = vmatpush1.bf16.msra.mxu0 %v2737
    %3977 = vmatprep.subr.bf16.mxu0 %v2744
    %3978 = vmatpush1.bf16.msra.mxu0 %v2743
    %3979 = vmatprep.subr.bf16.mxu0 %v2750
    %3980 = vmatpush1.bf16.msra.mxu0 %v2749
    %3981 = vmatprep.subr.bf16.mxu0 %v2756
    %3982 = vmatpush1.bf16.msra.mxu0 %v2755
    %3983 = vmatprep.mubr.bf16.mxu0 %v724
    %3984 = vmatmul.mubr.bf16.gmra.mrb[0].mxu0 %v723
    %v3985 = vpop.f32.mrb[0].mxu0
    %v3986 = vadd.f32 %v3945, %v3985
    %v3987 = vpop.f32.mrb[0].mxu0
    %v3988 = vadd.f32 %v3947, %v3987
    %v3989 = vpop.f32.mrb[0].mxu0
    %v3990 = vpop.f32.mrb[0].mxu0
    %3991 = vdwg.mxu0
    %3992 = vmatprep.subr.bf16.mxu0 %v2762
    %3993 = vmatpush1.bf16.msra.mxu0 %v2761
    %3994 = vmatprep.subr.bf16.mxu0 %v2768
    %3995 = vmatpush1.bf16.msra.mxu0 %v2767
    %3996 = vmatprep.subr.bf16.mxu0 %v2774
    %3997 = vmatpush1.bf16.msra.mxu0 %v2773
    %3998 = vmatprep.subr.bf16.mxu0 %v2780
    %3999 = vmatpush1.bf16.msra.mxu0 %v2779
    %4000 = vmatprep.subr.bf16.mxu0 %v2786
    %4001 = vmatpush1.bf16.msra.mxu0 %v2785
    %4002 = vmatprep.subr.bf16.mxu0 %v2792
    %4003 = vmatpush1.bf16.msra.mxu0 %v2791
    %4004 = vmatprep.subr.bf16.mxu0 %v2798
    %4005 = vmatpush1.bf16.msra.mxu0 %v2797
    %4006 = vmatprep.subr.bf16.mxu0 %v2804
    %4007 = vmatpush1.bf16.msra.mxu0 %v2803
    %4008 = vmatprep.subr.bf16.mxu0 %v2810
    %4009 = vmatpush1.bf16.msra.mxu0 %v2809
    %4010 = vmatprep.subr.bf16.mxu0 %v2816
    %4011 = vmatpush1.bf16.msra.mxu0 %v2815
    %4012 = vmatprep.subr.bf16.mxu0 %v2822
    %4013 = vmatpush1.bf16.msra.mxu0 %v2821
    %4014 = vmatprep.subr.bf16.mxu0 %v2828
    %4015 = vmatpush1.bf16.msra.mxu0 %v2827
    %4016 = vmatprep.subr.bf16.mxu0 %v2834
    %4017 = vmatpush1.bf16.msra.mxu0 %v2833
    %4018 = vmatprep.subr.bf16.mxu0 %v2840
    %4019 = vmatpush1.bf16.msra.mxu0 %v2839
    %4020 = vmatprep.subr.bf16.mxu0 %v2846
    %4021 = vmatpush1.bf16.msra.mxu0 %v2845
    %4022 = vmatprep.subr.bf16.mxu0 %v2852
    %4023 = vmatpush1.bf16.msra.mxu0 %v2851
    %4024 = vmatprep.mubr.bf16.mxu0 %v726
    %4025 = vmatmul.mubr.bf16.gmra.mrb[0].mxu0 %v725
    %v4026 = vpop.f32.mrb[0].mxu0
    %v4027 = vadd.f32 %v3986, %v4026
    %v4028 = vpop.f32.mrb[0].mxu0
    %v4029 = vadd.f32 %v3988, %v4028
    %v4030 = vpop.f32.mrb[0].mxu0
    %v4031 = vpop.f32.mrb[0].mxu0
    %4032 = vdwg.mxu0
    %4033 = vmatprep.subr.bf16.mxu0 %v2858
    %4034 = vmatpush1.bf16.msra.mxu0 %v2857
    %4035 = vmatprep.subr.bf16.mxu0 %v2864
    %4036 = vmatpush1.bf16.msra.mxu0 %v2863
    %4037 = vmatprep.subr.bf16.mxu0 %v2870
    %4038 = vmatpush1.bf16.msra.mxu0 %v2869
    %4039 = vmatprep.subr.bf16.mxu0 %v2876
    %4040 = vmatpush1.bf16.msra.mxu0 %v2875
    %4041 = vmatprep.subr.bf16.mxu0 %v2882
    %4042 = vmatpush1.bf16.msra.mxu0 %v2881
    %4043 = vmatprep.subr.bf16.mxu0 %v2888
    %4044 = vmatpush1.bf16.msra.mxu0 %v2887
    %4045 = vmatprep.subr.bf16.mxu0 %v2894
    %4046 = vmatpush1.bf16.msra.mxu0 %v2893
    %4047 = vmatprep.subr.bf16.mxu0 %v2900
    %4048 = vmatpush1.bf16.msra.mxu0 %v2899
    %4049 = vmatprep.subr.bf16.mxu0 %v2906
    %4050 = vmatpush1.bf16.msra.mxu0 %v2905
    %4051 = vmatprep.subr.bf16.mxu0 %v2912
    %4052 = vmatpush1.bf16.msra.mxu0 %v2911
    %4053 = vmatprep.subr.bf16.mxu0 %v2918
    %4054 = vmatpush1.bf16.msra.mxu0 %v2917
    %4055 = vmatprep.subr.bf16.mxu0 %v2924
    %4056 = vmatpush1.bf16.msra.mxu0 %v2923
    %4057 = vmatprep.subr.bf16.mxu0 %v2930
    %4058 = vmatpush1.bf16.msra.mxu0 %v2929
    %4059 = vmatprep.subr.bf16.mxu0 %v2936
    %4060 = vmatpush1.bf16.msra.mxu0 %v2935
    %4061 = vmatprep.subr.bf16.mxu0 %v2942
    %4062 = vmatpush1.bf16.msra.mxu0 %v2941
    %4063 = vmatprep.subr.bf16.mxu0 %v2948
    %4064 = vmatpush1.bf16.msra.mxu0 %v2947
    %4065 = vmatprep.mubr.bf16.mxu0 %v728
    %4066 = vmatmul.mubr.bf16.gmra.mrb[0].mxu0 %v727
    %v4067 = vpop.f32.mrb[0].mxu0
    %v4068 = vadd.f32 %v4027, %v4067
    %v4069 = vpop.f32.mrb[0].mxu0
    %v4070 = vadd.f32 %v4029, %v4069
    %v4071 = vpop.f32.mrb[0].mxu0
    %v4072 = vpop.f32.mrb[0].mxu0
    %4073 = vdwg.mxu0
    %4074 = vmatprep.subr.bf16.mxu0 %v2954
    %4075 = vmatpush1.bf16.msra.mxu0 %v2953
    %4076 = vmatprep.subr.bf16.mxu0 %v2960
    %4077 = vmatpush1.bf16.msra.mxu0 %v2959
    %4078 = vmatprep.subr.bf16.mxu0 %v2966
    %4079 = vmatpush1.bf16.msra.mxu0 %v2965
    %4080 = vmatprep.subr.bf16.mxu0 %v2972
    %4081 = vmatpush1.bf16.msra.mxu0 %v2971
    %4082 = vmatprep.subr.bf16.mxu0 %v2978
    %4083 = vmatpush1.bf16.msra.mxu0 %v2977
    %4084 = vmatprep.subr.bf16.mxu0 %v2984
    %4085 = vmatpush1.bf16.msra.mxu0 %v2983
    %4086 = vmatprep.subr.bf16.mxu0 %v2990
    %4087 = vmatpush1.bf16.msra.mxu0 %v2989
    %4088 = vmatprep.subr.bf16.mxu0 %v2996
    %4089 = vmatpush1.bf16.msra.mxu0 %v2995
    %4090 = vmatprep.subr.bf16.mxu0 %v3002
    %4091 = vmatpush1.bf16.msra.mxu0 %v3001
    %4092 = vmatprep.subr.bf16.mxu0 %v3008
    %4093 = vmatpush1.bf16.msra.mxu0 %v3007
    %4094 = vmatprep.subr.bf16.mxu0 %v3014
    %4095 = vmatpush1.bf16.msra.mxu0 %v3013
    %4096 = vmatprep.subr.bf16.mxu0 %v3020
    %4097 = vmatpush1.bf16.msra.mxu0 %v3019
    %4098 = vmatprep.subr.bf16.mxu0 %v3026
    %4099 = vmatpush1.bf16.msra.mxu0 %v3025
    %4100 = vmatprep.subr.bf16.mxu0 %v3032
    %4101 = vmatpush1.bf16.msra.mxu0 %v3031
    %4102 = vmatprep.subr.bf16.mxu0 %v3038
    %4103 = vmatpush1.bf16.msra.mxu0 %v3037
    %4104 = vmatprep.subr.bf16.mxu0 %v3044
    %4105 = vmatpush1.bf16.msra.mxu0 %v3043
    %4106 = vmatprep.mubr.bf16.mxu0 %v730
    %4107 = vmatmul.mubr.bf16.gmra.mrb[0].mxu0 %v729
    %v4108 = vpop.f32.mrb[0].mxu0
    %v4109 = vadd.f32 %v4068, %v4108
    %v4110 = vpop.f32.mrb[0].mxu0
    %v4111 = vadd.f32 %v4070, %v4110
    %v4112 = vpop.f32.mrb[0].mxu0
    %v4113 = vpop.f32.mrb[0].mxu0
    %4114 = vdwg.mxu0
    %4115 = vmatprep.subr.bf16.mxu0 %v2476
    %4116 = vmatpush1.bf16.msra.mxu0 %v2475
    %4117 = vmatprep.subr.bf16.mxu0 %v2482
    %4118 = vmatpush1.bf16.msra.mxu0 %v2481
    %4119 = vmatprep.subr.bf16.mxu0 %v2488
    %4120 = vmatpush1.bf16.msra.mxu0 %v2487
    %4121 = vmatprep.subr.bf16.mxu0 %v2494
    %4122 = vmatpush1.bf16.msra.mxu0 %v2493
    %4123 = vmatprep.subr.bf16.mxu0 %v2500
    %4124 = vmatpush1.bf16.msra.mxu0 %v2499
    %4125 = vmatprep.subr.bf16.mxu0 %v2506
    %4126 = vmatpush1.bf16.msra.mxu0 %v2505
    %4127 = vmatprep.subr.bf16.mxu0 %v2512
    %4128 = vmatpush1.bf16.msra.mxu0 %v2511
    %4129 = vmatprep.subr.bf16.mxu0 %v2518
    %4130 = vmatpush1.bf16.msra.mxu0 %v2517
    %4131 = vmatprep.subr.bf16.mxu0 %v2524
    %4132 = vmatpush1.bf16.msra.mxu0 %v2523
    %4133 = vmatprep.subr.bf16.mxu0 %v2530
    %4134 = vmatpush1.bf16.msra.mxu0 %v2529
    %4135 = vmatprep.subr.bf16.mxu0 %v2536
    %4136 = vmatpush1.bf16.msra.mxu0 %v2535
    %4137 = vmatprep.subr.bf16.mxu0 %v2542
    %4138 = vmatpush1.bf16.msra.mxu0 %v2541
    %4139 = vmatprep.subr.bf16.mxu0 %v2548
    %4140 = vmatpush1.bf16.msra.mxu0 %v2547
    %4141 = vmatprep.subr.bf16.mxu0 %v2554
    %4142 = vmatpush1.bf16.msra.mxu0 %v2553
    %4143 = vmatprep.subr.bf16.mxu0 %v2560
    %4144 = vmatpush1.bf16.msra.mxu0 %v2559
    %4145 = vmatprep.subr.bf16.mxu0 %v2566
    %4146 = vmatpush1.bf16.msra.mxu0 %v2565
    %4147 = vmatprep.mubr.bf16.mxu0 %v720
    %4148 = vmatmul.mubr.bf16.gmra.mrb[0].mxu0 %v719
    %v4149 = vpop.f32.mrb[0].mxu0
    %v4150 = vadd.f32 %v690, %v4149
    %v4151 = vpop.f32.mrb[0].mxu0
    %v4152 = vadd.f32 %v694, %v4151
    %v4153 = vpop.f32.mrb[0].mxu0
    %v4154 = vpop.f32.mrb[0].mxu0
    %4155 = vdwg.mxu0
    %4156 = vmatprep.subr.bf16.mxu0 %v2572
    %4157 = vmatpush1.bf16.msra.mxu0 %v2571
    %4158 = vmatprep.subr.bf16.mxu0 %v2578
    %4159 = vmatpush1.bf16.msra.mxu0 %v2577
    %4160 = vmatprep.subr.bf16.mxu0 %v2584
    %4161 = vmatpush1.bf16.msra.mxu0 %v2583
    %4162 = vmatprep.subr.bf16.mxu0 %v2590
    %4163 = vmatpush1.bf16.msra.mxu0 %v2589
    %4164 = vmatprep.subr.bf16.mxu0 %v2596
    %4165 = vmatpush1.bf16.msra.mxu0 %v2595
    %4166 = vmatprep.subr.bf16.mxu0 %v2602
    %4167 = vmatpush1.bf16.msra.mxu0 %v2601
    %4168 = vmatprep.subr.bf16.mxu0 %v2608
    %4169 = vmatpush1.bf16.msra.mxu0 %v2607
    %4170 = vmatprep.subr.bf16.mxu0 %v2614
    %4171 = vmatpush1.bf16.msra.mxu0 %v2613
    %4172 = vmatprep.subr.bf16.mxu0 %v2620
    %4173 = vmatpush1.bf16.msra.mxu0 %v2619
    %4174 = vmatprep.subr.bf16.mxu0 %v2626
    %4175 = vmatpush1.bf16.msra.mxu0 %v2625
    %4176 = vmatprep.subr.bf16.mxu0 %v2632
    %4177 = vmatpush1.bf16.msra.mxu0 %v2631
    %4178 = vmatprep.subr.bf16.mxu0 %v2638
    %4179 = vmatpush1.bf16.msra.mxu0 %v2637
    %4180 = vmatprep.subr.bf16.mxu0 %v2644
    %4181 = vmatpush1.bf16.msra.mxu0 %v2643
    %4182 = vmatprep.subr.bf16.mxu0 %v2650
    %4183 = vmatpush1.bf16.msra.mxu0 %v2649
    %4184 = vmatprep.subr.bf16.mxu0 %v2656
    %4185 = vmatpush1.bf16.msra.mxu0 %v2655
    %4186 = vmatprep.subr.bf16.mxu0 %v2662
    %4187 = vmatpush1.bf16.msra.mxu0 %v2661
    %4188 = vmatprep.mubr.bf16.mxu0 %v722
    %4189 = vmatmul.mubr.bf16.gmra.mrb[0].mxu0 %v721
    %v4190 = vpop.f32.mrb[0].mxu0
    %v4191 = vadd.f32 %v4150, %v4190
    %v4192 = vpop.f32.mrb[0].mxu0
    %v4193 = vadd.f32 %v4152, %v4192
    %v4194 = vpop.f32.mrb[0].mxu0
    %v4195 = vpop.f32.mrb[0].mxu0
    %4196 = vdwg.mxu0
    %4197 = vmatprep.subr.bf16.mxu0 %v2668
    %4198 = vmatpush1.bf16.msra.mxu0 %v2667
    %4199 = vmatprep.subr.bf16.mxu0 %v2674
    %4200 = vmatpush1.bf16.msra.mxu0 %v2673
    %4201 = vmatprep.subr.bf16.mxu0 %v2680
    %4202 = vmatpush1.bf16.msra.mxu0 %v2679
    %4203 = vmatprep.subr.bf16.mxu0 %v2686
    %4204 = vmatpush1.bf16.msra.mxu0 %v2685
    %4205 = vmatprep.subr.bf16.mxu0 %v2692
    %4206 = vmatpush1.bf16.msra.mxu0 %v2691
    %4207 = vmatprep.subr.bf16.mxu0 %v2698
    %4208 = vmatpush1.bf16.msra.mxu0 %v2697
    %4209 = vmatprep.subr.bf16.mxu0 %v2704
    %4210 = vmatpush1.bf16.msra.mxu0 %v2703
    %4211 = vmatprep.subr.bf16.mxu0 %v2710
    %4212 = vmatpush1.bf16.msra.mxu0 %v2709
    %4213 = vmatprep.subr.bf16.mxu0 %v2716
    %4214 = vmatpush1.bf16.msra.mxu0 %v2715
    %4215 = vmatprep.subr.bf16.mxu0 %v2722
    %4216 = vmatpush1.bf16.msra.mxu0 %v2721
    %4217 = vmatprep.subr.bf16.mxu0 %v2728
    %4218 = vmatpush1.bf16.msra.mxu0 %v2727
    %4219 = vmatprep.subr.bf16.mxu0 %v2734
    %4220 = vmatpush1.bf16.msra.mxu0 %v2733
    %4221 = vmatprep.subr.bf16.mxu0 %v2740
    %4222 = vmatpush1.bf16.msra.mxu0 %v2739
    %4223 = vmatprep.subr.bf16.mxu0 %v2746
    %4224 = vmatpush1.bf16.msra.mxu0 %v2745
    %4225 = vmatprep.subr.bf16.mxu0 %v2752
    %4226 = vmatpush1.bf16.msra.mxu0 %v2751
    %4227 = vmatprep.subr.bf16.mxu0 %v2758
    %4228 = vmatpush1.bf16.msra.mxu0 %v2757
    %4229 = vmatprep.mubr.bf16.mxu0 %v724
    %4230 = vmatmul.mubr.bf16.gmra.mrb[0].mxu0 %v723
    %v4231 = vpop.f32.mrb[0].mxu0
    %v4232 = vadd.f32 %v4191, %v4231
    %v4233 = vpop.f32.mrb[0].mxu0
    %v4234 = vadd.f32 %v4193, %v4233
    %v4235 = vpop.f32.mrb[0].mxu0
    %v4236 = vpop.f32.mrb[0].mxu0
    %4237 = vdwg.mxu0
    %4238 = vmatprep.subr.bf16.mxu0 %v2764
    %4239 = vmatpush1.bf16.msra.mxu0 %v2763
    %4240 = vmatprep.subr.bf16.mxu0 %v2770
    %4241 = vmatpush1.bf16.msra.mxu0 %v2769
    %4242 = vmatprep.subr.bf16.mxu0 %v2776
    %4243 = vmatpush1.bf16.msra.mxu0 %v2775
    %4244 = vmatprep.subr.bf16.mxu0 %v2782
    %4245 = vmatpush1.bf16.msra.mxu0 %v2781
    %4246 = vmatprep.subr.bf16.mxu0 %v2788
    %4247 = vmatpush1.bf16.msra.mxu0 %v2787
    %4248 = vmatprep.subr.bf16.mxu0 %v2794
    %4249 = vmatpush1.bf16.msra.mxu0 %v2793
    %4250 = vmatprep.subr.bf16.mxu0 %v2800
    %4251 = vmatpush1.bf16.msra.mxu0 %v2799
    %4252 = vmatprep.subr.bf16.mxu0 %v2806
    %4253 = vmatpush1.bf16.msra.mxu0 %v2805
    %4254 = vmatprep.subr.bf16.mxu0 %v2812
    %4255 = vmatpush1.bf16.msra.mxu0 %v2811
    %4256 = vmatprep.subr.bf16.mxu0 %v2818
    %4257 = vmatpush1.bf16.msra.mxu0 %v2817
    %4258 = vmatprep.subr.bf16.mxu0 %v2824
    %4259 = vmatpush1.bf16.msra.mxu0 %v2823
    %4260 = vmatprep.subr.bf16.mxu0 %v2830
    %4261 = vmatpush1.bf16.msra.mxu0 %v2829
    %4262 = vmatprep.subr.bf16.mxu0 %v2836
    %4263 = vmatpush1.bf16.msra.mxu0 %v2835
    %4264 = vmatprep.subr.bf16.mxu0 %v2842
    %4265 = vmatpush1.bf16.msra.mxu0 %v2841
    %4266 = vmatprep.subr.bf16.mxu0 %v2848
    %4267 = vmatpush1.bf16.msra.mxu0 %v2847
    %4268 = vmatprep.subr.bf16.mxu0 %v2854
    %4269 = vmatpush1.bf16.msra.mxu0 %v2853
    %4270 = vmatprep.mubr.bf16.mxu0 %v726
    %4271 = vmatmul.mubr.bf16.gmra.mrb[0].mxu0 %v725
    %v4272 = vpop.f32.mrb[0].mxu0
    %v4273 = vadd.f32 %v4232, %v4272
    %v4274 = vpop.f32.mrb[0].mxu0
    %v4275 = vadd.f32 %v4234, %v4274
    %v4276 = vpop.f32.mrb[0].mxu0
    %v4277 = vpop.f32.mrb[0].mxu0
    %4278 = vdwg.mxu0
    %4279 = vmatprep.subr.bf16.mxu0 %v2860
    %4280 = vmatpush1.bf16.msra.mxu0 %v2859
    %4281 = vmatprep.subr.bf16.mxu0 %v2866
    %4282 = vmatpush1.bf16.msra.mxu0 %v2865
    %4283 = vmatprep.subr.bf16.mxu0 %v2872
    %4284 = vmatpush1.bf16.msra.mxu0 %v2871
    %4285 = vmatprep.subr.bf16.mxu0 %v2878
    %4286 = vmatpush1.bf16.msra.mxu0 %v2877
    %4287 = vmatprep.subr.bf16.mxu0 %v2884
    %4288 = vmatpush1.bf16.msra.mxu0 %v2883
    %4289 = vmatprep.subr.bf16.mxu0 %v2890
    %4290 = vmatpush1.bf16.msra.mxu0 %v2889
    %4291 = vmatprep.subr.bf16.mxu0 %v2896
    %4292 = vmatpush1.bf16.msra.mxu0 %v2895
    %4293 = vmatprep.subr.bf16.mxu0 %v2902
    %4294 = vmatpush1.bf16.msra.mxu0 %v2901
    %4295 = vmatprep.subr.bf16.mxu0 %v2908
    %4296 = vmatpush1.bf16.msra.mxu0 %v2907
    %4297 = vmatprep.subr.bf16.mxu0 %v2914
    %4298 = vmatpush1.bf16.msra.mxu0 %v2913
    %4299 = vmatprep.subr.bf16.mxu0 %v2920
    %4300 = vmatpush1.bf16.msra.mxu0 %v2919
    %4301 = vmatprep.subr.bf16.mxu0 %v2926
    %4302 = vmatpush1.bf16.msra.mxu0 %v2925
    %4303 = vmatprep.subr.bf16.mxu0 %v2932
    %4304 = vmatpush1.bf16.msra.mxu0 %v2931
    %4305 = vmatprep.subr.bf16.mxu0 %v2938
    %4306 = vmatpush1.bf16.msra.mxu0 %v2937
    %4307 = vmatprep.subr.bf16.mxu0 %v2944
    %4308 = vmatpush1.bf16.msra.mxu0 %v2943
    %4309 = vmatprep.subr.bf16.mxu0 %v2950
    %4310 = vmatpush1.bf16.msra.mxu0 %v2949
    %4311 = vmatprep.mubr.bf16.mxu0 %v728
    %4312 = vmatmul.mubr.bf16.gmra.mrb[0].mxu0 %v727
    %v4313 = vpop.f32.mrb[0].mxu0
    %v4314 = vadd.f32 %v4273, %v4313
    %v4315 = vpop.f32.mrb[0].mxu0
    %v4316 = vadd.f32 %v4275, %v4315
    %v4317 = vpop.f32.mrb[0].mxu0
    %v4318 = vpop.f32.mrb[0].mxu0
    %4319 = vdwg.mxu0
    %4320 = vmatprep.subr.bf16.mxu0 %v2956
    %4321 = vmatpush1.bf16.msra.mxu0 %v2955
    %4322 = vmatprep.subr.bf16.mxu0 %v2962
    %4323 = vmatpush1.bf16.msra.mxu0 %v2961
    %4324 = vmatprep.subr.bf16.mxu0 %v2968
    %4325 = vmatpush1.bf16.msra.mxu0 %v2967
    %4326 = vmatprep.subr.bf16.mxu0 %v2974
    %4327 = vmatpush1.bf16.msra.mxu0 %v2973
    %4328 = vmatprep.subr.bf16.mxu0 %v2980
    %4329 = vmatpush1.bf16.msra.mxu0 %v2979
    %4330 = vmatprep.subr.bf16.mxu0 %v2986
    %4331 = vmatpush1.bf16.msra.mxu0 %v2985
    %4332 = vmatprep.subr.bf16.mxu0 %v2992
    %4333 = vmatpush1.bf16.msra.mxu0 %v2991
    %4334 = vmatprep.subr.bf16.mxu0 %v2998
    %4335 = vmatpush1.bf16.msra.mxu0 %v2997
    %4336 = vmatprep.subr.bf16.mxu0 %v3004
    %4337 = vmatpush1.bf16.msra.mxu0 %v3003
    %4338 = vmatprep.subr.bf16.mxu0 %v3010
    %4339 = vmatpush1.bf16.msra.mxu0 %v3009
    %4340 = vmatprep.subr.bf16.mxu0 %v3016
    %4341 = vmatpush1.bf16.msra.mxu0 %v3015
    %4342 = vmatprep.subr.bf16.mxu0 %v3022
    %4343 = vmatpush1.bf16.msra.mxu0 %v3021
    %4344 = vmatprep.subr.bf16.mxu0 %v3028
    %4345 = vmatpush1.bf16.msra.mxu0 %v3027
    %4346 = vmatprep.subr.bf16.mxu0 %v3034
    %4347 = vmatpush1.bf16.msra.mxu0 %v3033
    %4348 = vmatprep.subr.bf16.mxu0 %v3040
    %4349 = vmatpush1.bf16.msra.mxu0 %v3039
    %4350 = vmatprep.subr.bf16.mxu0 %v3046
    %4351 = vmatpush1.bf16.msra.mxu0 %v3045
    %4352 = vmatprep.mubr.bf16.mxu0 %v730
    %4353 = vmatmul.mubr.bf16.gmra.mrb[0].mxu0 %v729
    %v4354 = vpop.f32.mrb[0].mxu0
    %v4355 = vadd.f32 %v4314, %v4354
    %v4356 = vpop.f32.mrb[0].mxu0
    %v4357 = vadd.f32 %v4316, %v4356
    %v4358 = vpop.f32.mrb[0].mxu0
    %v4359 = vpop.f32.mrb[0].mxu0
    %4360 = vdwg.mxu0
    %v4361 = vtanh.pop %v3863
    %v4362 = vtanh.pop %v3865
    %v4363 = vtanh.pop %v4109
    %v4364 = vtanh.pop %v4111
    %v4365 = vtanh.pop %v4355
    %v4366 = vtanh.pop %v4357
    %v4367 = vpack.c.bf16 %v4361, %v4361
    %v4368 = vpack.c.bf16 %v4362, %v4362
    %v4369 = vpack.c.bf16 %v4363, %v4363
    %v4370 = vpack.c.bf16 %v4364, %v4364
    %v4371 = vpack.c.bf16 %v4365, %v4365
    %v4372 = vpack.c.bf16 %v4366, %v4366
    %v4373 = vld [vmem:[#allocation8] sm:$0xf]
    %v4374 = vld [vmem:[#allocation8 + $0x4] sm:$0xf]
    %v4375 = vld [vmem:[#allocation8 + $0x8] sm:$0xf]
    %v4376 = vld [vmem:[#allocation8 + $0xc] sm:$0xf]
    %v4377 = vld [vmem:[#allocation8 + $0x10] sm:$0xf]
    %v4378 = vld [vmem:[#allocation8 + $0x14] sm:$0xf]
    %v4379 = vld [vmem:[#allocation8 + $0x18] sm:$0xf]
    %v4380 = vld [vmem:[#allocation8 + $0x1c] sm:$0xf]
    %v4381 = vld [vmem:[#allocation8 + $0x20] sm:$0xf]
    %v4382 = vld [vmem:[#allocation8 + $0x24] sm:$0xf]
    %v4383 = vld [vmem:[#allocation8 + $0x28] sm:$0xf]
    %v4384 = vld [vmem:[#allocation8 + $0x2c] sm:$0xf]
    %v4385 = vld [vmem:[#allocation8 + $0x30] sm:$0xf]
    %v4386 = vld [vmem:[#allocation8 + $0x34] sm:$0xf]
    %v4387 = vld [vmem:[#allocation8 + $0x38] sm:$0xf]
    %v4388 = vld [vmem:[#allocation8 + $0x3c] sm:$0xf]
    %v4389 = vld [vmem:[#allocation8 + $0x40] sm:$0xf]
    %v4390 = vld [vmem:[#allocation8 + $0x44] sm:$0xf]
    %v4391 = vld [vmem:[#allocation8 + $0x48] sm:$0xf]
    %v4392 = vld [vmem:[#allocation8 + $0x4c] sm:$0xf]
    %v4393 = vld [vmem:[#allocation8 + $0x50] sm:$0xf]
    %v4394 = vld [vmem:[#allocation8 + $0x54] sm:$0xf]
    %v4395 = vld [vmem:[#allocation8 + $0x58] sm:$0xf]
    %v4396 = vld [vmem:[#allocation8 + $0x5c] sm:$0xf]
    %v4397 = vld [vmem:[#allocation8 + $0x60] sm:$0xf]
    %v4398 = vld [vmem:[#allocation8 + $0x64] sm:$0xf]
    %v4399 = vld [vmem:[#allocation8 + $0x68] sm:$0xf]
    %v4400 = vld [vmem:[#allocation8 + $0x6c] sm:$0xf]
    %v4401 = vld [vmem:[#allocation8 + $0x70] sm:$0xf]
    %v4402 = vld [vmem:[#allocation8 + $0x74] sm:$0xf]
    %v4403 = vld [vmem:[#allocation8 + $0x78] sm:$0xf]
    %v4404 = vld [vmem:[#allocation8 + $0x7c] sm:$0xf]
    %v4405 = vld [vmem:[#allocation8 + $0x80] sm:$0xf]
    %v4406 = vld [vmem:[#allocation8 + $0x84] sm:$0xf]
    %v4407 = vld [vmem:[#allocation8 + $0x88] sm:$0xf]
    %v4408 = vld [vmem:[#allocation8 + $0x8c] sm:$0xf]
    %v4409 = vld [vmem:[#allocation8 + $0x90] sm:$0xf]
    %v4410 = vld [vmem:[#allocation8 + $0x94] sm:$0xf]
    %v4411 = vld [vmem:[#allocation8 + $0x98] sm:$0xf]
    %v4412 = vld [vmem:[#allocation8 + $0x9c] sm:$0xf]
    %v4413 = vld [vmem:[#allocation8 + $0xa0] sm:$0xf]
    %v4414 = vld [vmem:[#allocation8 + $0xa4] sm:$0xf]
    %v4415 = vld [vmem:[#allocation8 + $0xa8] sm:$0xf]
    %v4416 = vld [vmem:[#allocation8 + $0xac] sm:$0xf]
    %v4417 = vld [vmem:[#allocation8 + $0xb0] sm:$0xf]
    %v4418 = vld [vmem:[#allocation8 + $0xb4] sm:$0xf]
    %v4419 = vld [vmem:[#allocation8 + $0xb8] sm:$0xf]
    %v4420 = vld [vmem:[#allocation8 + $0xbc] sm:$0xf]
    %v4421 = vld [vmem:[#allocation8 + $0xc0] sm:$0xf]
    %v4422 = vld [vmem:[#allocation8 + $0xc4] sm:$0xf]
    %v4423 = vld [vmem:[#allocation8 + $0xc8] sm:$0xf]
    %v4424 = vld [vmem:[#allocation8 + $0xcc] sm:$0xf]
    %v4425 = vld [vmem:[#allocation8 + $0xd0] sm:$0xf]
    %v4426 = vld [vmem:[#allocation8 + $0xd4] sm:$0xf]
    %v4427 = vld [vmem:[#allocation8 + $0xd8] sm:$0xf]
    %v4428 = vld [vmem:[#allocation8 + $0xdc] sm:$0xf]
    %v4429 = vld [vmem:[#allocation8 + $0xe0] sm:$0xf]
    %v4430 = vld [vmem:[#allocation8 + $0xe4] sm:$0xf]
    %v4431 = vld [vmem:[#allocation8 + $0xe8] sm:$0xf]
    %v4432 = vld [vmem:[#allocation8 + $0xec] sm:$0xf]
    %v4433 = vld [vmem:[#allocation8 + $0xf0] sm:$0xf]
    %v4434 = vld [vmem:[#allocation8 + $0xf4] sm:$0xf]
    %v4435 = vld [vmem:[#allocation8 + $0xf8] sm:$0xf]
    %v4436 = vld [vmem:[#allocation8 + $0xfc] sm:$0xf]
    %v4437 = vld [vmem:[#allocation8 + $0x100] sm:$0xf]
    %v4438 = vld [vmem:[#allocation8 + $0x104] sm:$0xf]
    %v4439 = vld [vmem:[#allocation8 + $0x108] sm:$0xf]
    %v4440 = vld [vmem:[#allocation8 + $0x10c] sm:$0xf]
    %v4441 = vld [vmem:[#allocation8 + $0x110] sm:$0xf]
    %v4442 = vld [vmem:[#allocation8 + $0x114] sm:$0xf]
    %v4443 = vld [vmem:[#allocation8 + $0x118] sm:$0xf]
    %v4444 = vld [vmem:[#allocation8 + $0x11c] sm:$0xf]
    %v4445 = vld [vmem:[#allocation8 + $0x120] sm:$0xf]
    %v4446 = vld [vmem:[#allocation8 + $0x124] sm:$0xf]
    %v4447 = vld [vmem:[#allocation8 + $0x128] sm:$0xf]
    %v4448 = vld [vmem:[#allocation8 + $0x12c] sm:$0xf]
    %v4449 = vld [vmem:[#allocation8 + $0x130] sm:$0xf]
    %v4450 = vld [vmem:[#allocation8 + $0x134] sm:$0xf]
    %v4451 = vld [vmem:[#allocation8 + $0x138] sm:$0xf]
    %v4452 = vld [vmem:[#allocation8 + $0x13c] sm:$0xf]
    %v4453 = vld [vmem:[#allocation8 + $0x140] sm:$0xf]
    %v4454 = vld [vmem:[#allocation8 + $0x144] sm:$0xf]
    %v4455 = vld [vmem:[#allocation8 + $0x148] sm:$0xf]
    %v4456 = vld [vmem:[#allocation8 + $0x14c] sm:$0xf]
    %v4457 = vld [vmem:[#allocation8 + $0x150] sm:$0xf]
    %v4458 = vld [vmem:[#allocation8 + $0x154] sm:$0xf]
    %v4459 = vld [vmem:[#allocation8 + $0x158] sm:$0xf]
    %v4460 = vld [vmem:[#allocation8 + $0x15c] sm:$0xf]
    %v4461 = vld [vmem:[#allocation8 + $0x160] sm:$0xf]
    %v4462 = vld [vmem:[#allocation8 + $0x164] sm:$0xf]
    %v4463 = vld [vmem:[#allocation8 + $0x168] sm:$0xf]
    %v4464 = vld [vmem:[#allocation8 + $0x16c] sm:$0xf]
    %v4465 = vld [vmem:[#allocation8 + $0x170] sm:$0xf]
    %v4466 = vld [vmem:[#allocation8 + $0x174] sm:$0xf]
    %v4467 = vld [vmem:[#allocation8 + $0x178] sm:$0xf]
    %v4468 = vld [vmem:[#allocation8 + $0x17c] sm:$0xf]
    %v4469 = vld [vmem:[#allocation10] sm:$0x1]
    %v4471 = vlaneseq
    %v4472 = vshrl.u32 %v4471, 7
    %v4473 = vsub.s32 0, %v4472
    %v4474 = vrot.slane %v4469, %v4473
    %v4572 = vunpack.c.l.b16 %v4373
    %v4573 = vunpack.c.l.b16 %v4374
    %v4574 = vunpack.c.l.b16 %v4375
    %v4575 = vunpack.c.l.b16 %v4376
    %v4576 = vunpack.c.l.b16 %v4377
    %v4577 = vunpack.c.l.b16 %v4378
    %v4578 = vunpack.c.l.b16 %v4379
    %v4579 = vunpack.c.l.b16 %v4380
    %v4580 = vunpack.c.l.b16 %v4381
    %v4581 = vunpack.c.l.b16 %v4382
    %v4582 = vunpack.c.l.b16 %v4383
    %v4583 = vunpack.c.l.b16 %v4384
    %v4584 = vunpack.c.l.b16 %v4385
    %v4585 = vunpack.c.l.b16 %v4386
    %v4586 = vunpack.c.l.b16 %v4387
    %v4587 = vunpack.c.l.b16 %v4388
    %v4588 = vunpack.c.l.b16 %v4389
    %v4589 = vunpack.c.l.b16 %v4390
    %v4590 = vunpack.c.l.b16 %v4391
    %v4591 = vunpack.c.l.b16 %v4392
    %v4592 = vunpack.c.l.b16 %v4393
    %v4593 = vunpack.c.l.b16 %v4394
    %v4594 = vunpack.c.l.b16 %v4395
    %v4595 = vunpack.c.l.b16 %v4396
    %v4596 = vunpack.c.l.b16 %v4397
    %v4597 = vunpack.c.l.b16 %v4398
    %v4598 = vunpack.c.l.b16 %v4399
    %v4599 = vunpack.c.l.b16 %v4400
    %v4600 = vunpack.c.l.b16 %v4401
    %v4601 = vunpack.c.l.b16 %v4402
    %v4602 = vunpack.c.l.b16 %v4403
    %v4603 = vunpack.c.l.b16 %v4404
    %v4604 = vunpack.c.l.b16 %v4405
    %v4605 = vunpack.c.l.b16 %v4406
    %v4606 = vunpack.c.l.b16 %v4407
    %v4607 = vunpack.c.l.b16 %v4408
    %v4608 = vunpack.c.l.b16 %v4409
    %v4609 = vunpack.c.l.b16 %v4410
    %v4610 = vunpack.c.l.b16 %v4411
    %v4611 = vunpack.c.l.b16 %v4412
    %v4612 = vunpack.c.l.b16 %v4413
    %v4613 = vunpack.c.l.b16 %v4414
    %v4614 = vunpack.c.l.b16 %v4415
    %v4615 = vunpack.c.l.b16 %v4416
    %v4616 = vunpack.c.l.b16 %v4417
    %v4617 = vunpack.c.l.b16 %v4418
    %v4618 = vunpack.c.l.b16 %v4419
    %v4619 = vunpack.c.l.b16 %v4420
    %v4620 = vunpack.c.l.b16 %v4421
    %v4621 = vunpack.c.l.b16 %v4422
    %v4622 = vunpack.c.l.b16 %v4423
    %v4623 = vunpack.c.l.b16 %v4424
    %v4624 = vunpack.c.l.b16 %v4425
    %v4625 = vunpack.c.l.b16 %v4426
    %v4626 = vunpack.c.l.b16 %v4427
    %v4627 = vunpack.c.l.b16 %v4428
    %v4628 = vunpack.c.l.b16 %v4429
    %v4629 = vunpack.c.l.b16 %v4430
    %v4630 = vunpack.c.l.b16 %v4431
    %v4631 = vunpack.c.l.b16 %v4432
    %v4632 = vunpack.c.l.b16 %v4433
    %v4633 = vunpack.c.l.b16 %v4434
    %v4634 = vunpack.c.l.b16 %v4435
    %v4635 = vunpack.c.l.b16 %v4436
    %v4636 = vunpack.c.l.b16 %v4437
    %v4637 = vunpack.c.l.b16 %v4438
    %v4638 = vunpack.c.l.b16 %v4439
    %v4639 = vunpack.c.l.b16 %v4440
    %v4640 = vunpack.c.l.b16 %v4441
    %v4641 = vunpack.c.l.b16 %v4442
    %v4642 = vunpack.c.l.b16 %v4443
    %v4643 = vunpack.c.l.b16 %v4444
    %v4644 = vunpack.c.l.b16 %v4445
    %v4645 = vunpack.c.l.b16 %v4446
    %v4646 = vunpack.c.l.b16 %v4447
    %v4647 = vunpack.c.l.b16 %v4448
    %v4648 = vunpack.c.l.b16 %v4449
    %v4649 = vunpack.c.l.b16 %v4450
    %v4650 = vunpack.c.l.b16 %v4451
    %v4651 = vunpack.c.l.b16 %v4452
    %v4652 = vunpack.c.l.b16 %v4453
    %v4653 = vunpack.c.l.b16 %v4454
    %v4654 = vunpack.c.l.b16 %v4455
    %v4655 = vunpack.c.l.b16 %v4456
    %v4656 = vunpack.c.l.b16 %v4457
    %v4657 = vunpack.c.l.b16 %v4458
    %v4658 = vunpack.c.l.b16 %v4459
    %v4659 = vunpack.c.l.b16 %v4460
    %v4660 = vunpack.c.l.b16 %v4461
    %v4661 = vunpack.c.l.b16 %v4462
    %v4662 = vunpack.c.l.b16 %v4463
    %v4663 = vunpack.c.l.b16 %v4464
    %v4664 = vunpack.c.l.b16 %v4465
    %v4665 = vunpack.c.l.b16 %v4466
    %v4666 = vunpack.c.l.b16 %v4467
    %v4667 = vunpack.c.l.b16 %v4468
    %v4668 = vpack.c.b16 %v4573, %v4572
    %v4669 = vpack.c.b16 %v4575, %v4574
    %v4670 = vpack.c.b16 %v4577, %v4576
    %v4671 = vpack.c.b16 %v4579, %v4578
    %v4672 = vpack.c.b16 %v4581, %v4580
    %v4673 = vpack.c.b16 %v4583, %v4582
    %v4674 = vpack.c.b16 %v4585, %v4584
    %v4675 = vpack.c.b16 %v4587, %v4586
    %v4676 = vpack.c.b16 %v4589, %v4588
    %v4677 = vpack.c.b16 %v4591, %v4590
    %v4678 = vpack.c.b16 %v4593, %v4592
    %v4679 = vpack.c.b16 %v4595, %v4594
    %v4680 = vpack.c.b16 %v4597, %v4596
    %v4681 = vpack.c.b16 %v4599, %v4598
    %v4682 = vpack.c.b16 %v4601, %v4600
    %v4683 = vpack.c.b16 %v4603, %v4602
    %v4684 = vpack.c.b16 %v4605, %v4604
    %v4685 = vpack.c.b16 %v4607, %v4606
    %v4686 = vpack.c.b16 %v4609, %v4608
    %v4687 = vpack.c.b16 %v4611, %v4610
    %v4688 = vpack.c.b16 %v4613, %v4612
    %v4689 = vpack.c.b16 %v4615, %v4614
    %v4690 = vpack.c.b16 %v4617, %v4616
    %v4691 = vpack.c.b16 %v4619, %v4618
    %v4692 = vpack.c.b16 %v4621, %v4620
    %v4693 = vpack.c.b16 %v4623, %v4622
    %v4694 = vpack.c.b16 %v4625, %v4624
    %v4695 = vpack.c.b16 %v4627, %v4626
    %v4696 = vpack.c.b16 %v4629, %v4628
    %v4697 = vpack.c.b16 %v4631, %v4630
    %v4698 = vpack.c.b16 %v4633, %v4632
    %v4699 = vpack.c.b16 %v4635, %v4634
    %v4700 = vpack.c.b16 %v4637, %v4636
    %v4701 = vpack.c.b16 %v4639, %v4638
    %v4702 = vpack.c.b16 %v4641, %v4640
    %v4703 = vpack.c.b16 %v4643, %v4642
    %v4704 = vpack.c.b16 %v4645, %v4644
    %v4705 = vpack.c.b16 %v4647, %v4646
    %v4706 = vpack.c.b16 %v4649, %v4648
    %v4707 = vpack.c.b16 %v4651, %v4650
    %v4708 = vpack.c.b16 %v4653, %v4652
    %v4709 = vpack.c.b16 %v4655, %v4654
    %v4710 = vpack.c.b16 %v4657, %v4656
    %v4711 = vpack.c.b16 %v4659, %v4658
    %v4712 = vpack.c.b16 %v4661, %v4660
    %v4713 = vpack.c.b16 %v4663, %v4662
    %v4714 = vpack.c.b16 %v4665, %v4664
    %v4715 = vpack.c.b16 %v4667, %v4666
    %4764 = vmatprep.subr.bf16.mxu0 0
    %4765 = vmatpush1.bf16.msra.mxu0 %v4668
    %4766 = vmatprep.subr.bf16.mxu0 0
    %4767 = vmatpush1.bf16.msra.mxu0 %v4669
    %4768 = vmatprep.subr.bf16.mxu0 0
    %4769 = vmatpush1.bf16.msra.mxu0 %v4670
    %4770 = vmatprep.subr.bf16.mxu0 0
    %4771 = vmatpush1.bf16.msra.mxu0 %v4671
    %4772 = vmatprep.subr.bf16.mxu0 0
    %4773 = vmatpush1.bf16.msra.mxu0 %v4672
    %4774 = vmatprep.subr.bf16.mxu0 0
    %4775 = vmatpush1.bf16.msra.mxu0 %v4673
    %4776 = vmatprep.subr.bf16.mxu0 0
    %4777 = vmatpush1.bf16.msra.mxu0 %v4674
    %4778 = vmatprep.subr.bf16.mxu0 0
    %4779 = vmatpush1.bf16.msra.mxu0 %v4675
    %4780 = vmatprep.subr.bf16.mxu0 0
    %4781 = vmatpush1.bf16.msra.mxu0 %v4676
    %4782 = vmatprep.subr.bf16.mxu0 0
    %4783 = vmatpush1.bf16.msra.mxu0 %v4677
    %4784 = vmatprep.subr.bf16.mxu0 0
    %4785 = vmatpush1.bf16.msra.mxu0 %v4678
    %4786 = vmatprep.subr.bf16.mxu0 0
    %4787 = vmatpush1.bf16.msra.mxu0 %v4679
    %4788 = vmatprep.subr.bf16.mxu0 0
    %4789 = vmatpush1.bf16.msra.mxu0 %v4680
    %4790 = vmatprep.subr.bf16.mxu0 0
    %4791 = vmatpush1.bf16.msra.mxu0 %v4681
    %4792 = vmatprep.subr.bf16.mxu0 0
    %4793 = vmatpush1.bf16.msra.mxu0 %v4682
    %4794 = vmatprep.subr.bf16.mxu0 0
    %4795 = vmatpush1.bf16.msra.mxu0 %v4683
    %4796 = vmatprep.mubr.bf16.mxu0 %v4368
    %4797 = vmatmul.mubr.bf16.gmra.mrb[0].mxu0 %v4367
    %v4798 = vpop.f32.mrb[0].mxu0
    %v4799 = vadd.f32 %v4474, %v4798
    %v4800 = vpop.f32.mrb[0].mxu0
    %v4801 = vpop.f32.mrb[0].mxu0
    %v4802 = vpop.f32.mrb[0].mxu0
    %4803 = vdwg.mxu0
    %4804 = vmatprep.subr.bf16.mxu0 0
    %4805 = vmatpush1.bf16.msra.mxu0 %v4684
    %4806 = vmatprep.subr.bf16.mxu0 0
    %4807 = vmatpush1.bf16.msra.mxu0 %v4685
    %4808 = vmatprep.subr.bf16.mxu0 0
    %4809 = vmatpush1.bf16.msra.mxu0 %v4686
    %4810 = vmatprep.subr.bf16.mxu0 0
    %4811 = vmatpush1.bf16.msra.mxu0 %v4687
    %4812 = vmatprep.subr.bf16.mxu0 0
    %4813 = vmatpush1.bf16.msra.mxu0 %v4688
    %4814 = vmatprep.subr.bf16.mxu0 0
    %4815 = vmatpush1.bf16.msra.mxu0 %v4689
    %4816 = vmatprep.subr.bf16.mxu0 0
    %4817 = vmatpush1.bf16.msra.mxu0 %v4690
    %4818 = vmatprep.subr.bf16.mxu0 0
    %4819 = vmatpush1.bf16.msra.mxu0 %v4691
    %4820 = vmatprep.subr.bf16.mxu0 0
    %4821 = vmatpush1.bf16.msra.mxu0 %v4692
    %4822 = vmatprep.subr.bf16.mxu0 0
    %4823 = vmatpush1.bf16.msra.mxu0 %v4693
    %4824 = vmatprep.subr.bf16.mxu0 0
    %4825 = vmatpush1.bf16.msra.mxu0 %v4694
    %4826 = vmatprep.subr.bf16.mxu0 0
    %4827 = vmatpush1.bf16.msra.mxu0 %v4695
    %4828 = vmatprep.subr.bf16.mxu0 0
    %4829 = vmatpush1.bf16.msra.mxu0 %v4696
    %4830 = vmatprep.subr.bf16.mxu0 0
    %4831 = vmatpush1.bf16.msra.mxu0 %v4697
    %4832 = vmatprep.subr.bf16.mxu0 0
    %4833 = vmatpush1.bf16.msra.mxu0 %v4698
    %4834 = vmatprep.subr.bf16.mxu0 0
    %4835 = vmatpush1.bf16.msra.mxu0 %v4699
    %4836 = vmatprep.mubr.bf16.mxu0 %v4370
    %4837 = vmatmul.mubr.bf16.gmra.mrb[0].mxu0 %v4369
    %v4838 = vpop.f32.mrb[0].mxu0
    %v4839 = vadd.f32 %v4799, %v4838
    %v4840 = vpop.f32.mrb[0].mxu0
    %v4841 = vpop.f32.mrb[0].mxu0
    %v4842 = vpop.f32.mrb[0].mxu0
    %4843 = vdwg.mxu0
    %4844 = vmatprep.subr.bf16.mxu0 0
    %4845 = vmatpush1.bf16.msra.mxu0 %v4700
    %4846 = vmatprep.subr.bf16.mxu0 0
    %4847 = vmatpush1.bf16.msra.mxu0 %v4701
    %4848 = vmatprep.subr.bf16.mxu0 0
    %4849 = vmatpush1.bf16.msra.mxu0 %v4702
    %4850 = vmatprep.subr.bf16.mxu0 0
    %4851 = vmatpush1.bf16.msra.mxu0 %v4703
    %4852 = vmatprep.subr.bf16.mxu0 0
    %4853 = vmatpush1.bf16.msra.mxu0 %v4704
    %4854 = vmatprep.subr.bf16.mxu0 0
    %4855 = vmatpush1.bf16.msra.mxu0 %v4705
    %4856 = vmatprep.subr.bf16.mxu0 0
    %4857 = vmatpush1.bf16.msra.mxu0 %v4706
    %4858 = vmatprep.subr.bf16.mxu0 0
    %4859 = vmatpush1.bf16.msra.mxu0 %v4707
    %4860 = vmatprep.subr.bf16.mxu0 0
    %4861 = vmatpush1.bf16.msra.mxu0 %v4708
    %4862 = vmatprep.subr.bf16.mxu0 0
    %4863 = vmatpush1.bf16.msra.mxu0 %v4709
    %4864 = vmatprep.subr.bf16.mxu0 0
    %4865 = vmatpush1.bf16.msra.mxu0 %v4710
    %4866 = vmatprep.subr.bf16.mxu0 0
    %4867 = vmatpush1.bf16.msra.mxu0 %v4711
    %4868 = vmatprep.subr.bf16.mxu0 0
    %4869 = vmatpush1.bf16.msra.mxu0 %v4712
    %4870 = vmatprep.subr.bf16.mxu0 0
    %4871 = vmatpush1.bf16.msra.mxu0 %v4713
    %4872 = vmatprep.subr.bf16.mxu0 0
    %4873 = vmatpush1.bf16.msra.mxu0 %v4714
    %4874 = vmatprep.subr.bf16.mxu0 0
    %4875 = vmatpush1.bf16.msra.mxu0 %v4715
    %4876 = vmatprep.mubr.bf16.mxu0 %v4372
    %4877 = vmatmul.mubr.bf16.gmra.mrb[0].mxu0 %v4371
    %v4878 = vpop.f32.mrb[0].mxu0
    %v4879 = vadd.f32 %v4839, %v4878
    %v4880 = vpop.f32.mrb[0].mxu0
    %v4881 = vpop.f32.mrb[0].mxu0
    %v4882 = vpop.f32.mrb[0].mxu0
    %4883 = vdwg.mxu0
    %4884 = vst [vmem:[#allocation11] sm:$0xff] %v4879
    %4885 = vmax.xlane.f32.xlu0 %v4879
    %v4886 = vpop.xlane.xlu0 %4885
    %v4887 = vsub.f32 %v4879, %v4886
    %v4888 = vmul.f32 %v4887, 1.442695
    %v4889 = vpow.pop %v4888
    %4890 = vadd.xlane.f32.xlu0 %v4889
    %v4891 = vpop.xlane.xlu0 %4890
    %v4892 = vrcp.pop %v4891
    %v4893 = vmul.f32 %v4889, %v4892
    %4894 = vst [vmem:[#allocation12] sm:$0xff] %v4893
    // Predicated region
    $region42: #{tpu_custom_call.1} parent=1 // pred_check
      _
    $region43: #{tpu_custom_call.1} parent=1 // pred_check_branch
      %4896 = sbr.rel (0) target = $region45
    $region44: #{tpu_custom_call.1} parent=1 // pred_region
      %s4898 = ssub.s32 128, 128
      %4899 = vsyncadd [#allocation4], %s4898
      %s4901 = sshll.u32 [#allocation11], 4
      %s4902 = int_to_ptr.vmem [resolvable:$true] %s4901
      %4904 = dma.vmem_to_hbm [thread:$0]  %s4902, 128, %s5, [#allocation4]
    $region45: #{tpu_custom_call.1} parent=1 // pred_fallthru
      _
    // Predicated region
    $region46: #{tpu_custom_call.1} parent=1 // pred_check
      _
    $region47: #{tpu_custom_call.1} parent=1 // pred_check_branch
      %4906 = sbr.rel (0) target = $region49
    $region48: #{tpu_custom_call.1} parent=1 // pred_region
      %s4908 = ssub.s32 128, 128
      %4909 = vsyncadd [#allocation13], %s4908
      %s4911 = sshll.u32 [#allocation12], 4
      %s4912 = int_to_ptr.vmem [resolvable:$true] %s4911
      %4914 = dma.vmem_to_hbm [thread:$0]  %s4912, 128, %s6, [#allocation13]
    $region49: #{tpu_custom_call.1} parent=1 // pred_fallthru
      _
    // Predicated region
    $region50: #{tpu_custom_call.1} parent=1 // pred_check
      _
    $region51: #{tpu_custom_call.1} parent=1 // pred_check_branch
      %4916 = sbr.rel (0) target = $region53
    $region52: #{tpu_custom_call.1} parent=1 // pred_region
      %4917 = dma.done [#allocation4], 128
    $region53: #{tpu_custom_call.1} parent=1 // pred_fallthru
      _
    // Predicated region
    $region54: #{tpu_custom_call.1} parent=1 // pred_check
      _
    $region55: #{tpu_custom_call.1} parent=1 // pred_check_branch
      %4919 = sbr.rel (0) target = $region57
    $region56: #{tpu_custom_call.1} parent=1 // pred_region
      %4920 = dma.done [#allocation13], 128
    $region57: #{tpu_custom_call.1} parent=1 // pred_fallthru
      _
    %4921 = vsyncpa [#allocation3], 1
    %4922 = vsyncpa [#allocation6], 1
    %4923 = vsyncpa [#allocation9], 1
    %4924 = vsyncpa [#allocation4], 1
    %4925 = vsyncpa [#allocation13], 1

</llo_original>
